<compile_context>
chip_gen: v5e
topology: v5e:2x2
jax: 0.10.0
libtpu: 0.0.40
codegen_flags: <defaults>
</compile_context>

<pallas_src>
import functools

import jax
import jax.numpy as jnp
from jax.experimental import pallas as pl
from jax.experimental.pallas import tpu as pltpu


# ---------------------------------------------------------------------------
# In-kernel helpers (traced inside the kernel body)
# ---------------------------------------------------------------------------
def _layer_norm(v, g, b, eps=1e-5):
    mu = jnp.mean(v, axis=-1, keepdims=True)
    var = jnp.mean((v - mu) ** 2, axis=-1, keepdims=True)
    return (v - mu) * jax.lax.rsqrt(var + eps) * g + b


def _mha(q_bf, k_bf, v_bf, wo_bf, bo, add_mask, *, batch, q_len, kv_len, num_heads):
    """Multi-head attention core (inference; dropout = identity).

    q_bf: (B*T, C) bf16; k_bf/v_bf: (B*S, C) bf16; wo_bf: (C, C) bf16;
    bo: (1, C) f32; add_mask: (T, S) additive f32.
    Returns (attn output after out-projection, (B*T, C) f32;
             head-averaged softmax weights, (B*T, S) f32, lane-dense flat).
    Faithful to the torch MHA: scale_factor is computed in __init__ but never
    applied in forward(), so no 1/sqrt(head_dim) scaling here either.
    """
    B, T, S, H = batch, q_len, kv_len, num_heads
    C = q_bf.shape[-1]
    hd = C // H
    q3 = q_bf.reshape(B, T, C)
    k3 = k_bf.reshape(B, S, C)
    v3 = v_bf.reshape(B, S, C)
    mask_b = add_mask[None, :, :]          # hoisted: one broadcast per attention
    out2 = None
    w_sum = None
    # Heads as an unrolled loop of single-batch einsums (see module docstring:
    # the 2-batch-dim joint einsum does not lower in Mosaic).
    for h in range(H):
        sl = slice(h * hd, (h + 1) * hd)
        s = jnp.einsum('btd,bsd->bts', q3[:, :, sl], k3[:, :, sl],
                       preferred_element_type=jnp.float32)
        s = s + mask_b
        s = s - jnp.max(s, axis=-1, keepdims=True)
        e = jnp.exp(s)
        p = e / jnp.sum(e, axis=-1, keepdims=True)   # exact: weights are user-visible
        w_sum = p if w_sum is None else w_sum + p
        ctx = jnp.einsum('bts,bsd->btd', p.astype(jnp.bfloat16), v3[:, :, sl],
                         preferred_element_type=jnp.float32)
        # Summing per-head (B*T, hd) @ (hd, C) slices of the out-projection is
        # identical to concat-then-project (avoids a lane-axis concatenate).
        o = jnp.dot(ctx.reshape(B * T, hd).astype(jnp.bfloat16), wo_bf[sl, :],
                    preferred_element_type=jnp.float32)
        out2 = o if out2 is None else out2 + o
    w_avg = (w_sum * (1.0 / H)).reshape(B * T, S)
    return out2 + bo, w_avg


# ---------------------------------------------------------------------------
# Fused whole-stack kernel (one decoder layer per grid step; activation
# carried across layers inside the resident output block)
# ---------------------------------------------------------------------------
def decoder_stack_kernel(
        x_ref, mem_ref, tmask_ref, mmask_ref,
        w_sqkv, b_sqkv, w_so, b_so, ln1g, ln1b,
        w_cq, b_cq, w_ckv, b_ckv, w_co, b_co, ln2g, ln2b,
        fw1, fb1, fw2, fb2, ln3g, ln3b,
        out_ref, wself_ref, wcross_ref,
        *, num_heads, batch, tgt_len, mem_len):
    B, T, S, H = batch, tgt_len, mem_len, num_heads
    C = x_ref.shape[-1]

    # Seed the resident activation on the first layer.  out_ref doubles as the
    # layer-to-layer carry: its block index is constant over the grid, so it
    # stays in VMEM and is written back to HBM once at the end.
    @pl.when(pl.program_id(0) == 0)
    def _seed():
        out_ref[...] = x_ref[...]

    t2 = out_ref[...]                      # (B*T, C) f32 carried activation
    mem_bf = mem_ref[...]                  # (B*S, C) bf16 (cast once in wrapper)

    # --- self attention: fused QKV projection (bf16 operands, f32 accumulate) ---
    qkv = jnp.dot(t2.astype(jnp.bfloat16), w_sqkv[...],
                  preferred_element_type=jnp.float32) + b_sqkv[...]
    qkv_bf = qkv.astype(jnp.bfloat16)
    attn, w_self = _mha(qkv_bf[:, 0 * C:1 * C], qkv_bf[:, 1 * C:2 * C],
                        qkv_bf[:, 2 * C:3 * C], w_so[...], b_so[...],
                        tmask_ref[...], batch=B, q_len=T, kv_len=T, num_heads=H)
    t2 = _layer_norm(t2 + attn, ln1g[...], ln1b[...])   # dropout = identity (eval)

    # --- cross attention: Q from tgt, fused KV projection of memory ---
    qc = jnp.dot(t2.astype(jnp.bfloat16), w_cq[...],
                 preferred_element_type=jnp.float32) + b_cq[...]
    kvc = jnp.dot(mem_bf, w_ckv[...], preferred_element_type=jnp.float32) + b_ckv[...]
    kvc_bf = kvc.astype(jnp.bfloat16)
    attn, w_cross = _mha(qc.astype(jnp.bfloat16), kvc_bf[:, 0 * C:1 * C],
                         kvc_bf[:, 1 * C:2 * C], w_co[...], b_co[...],
                         mmask_ref[...], batch=B, q_len=T, kv_len=S, num_heads=H)
    t2 = _layer_norm(t2 + attn, ln2g[...], ln2b[...])

    # --- feed-forward (Linear -> ReLU -> Linear) + residual + norm3 ---
    hdn = jnp.maximum(
        jnp.dot(t2.astype(jnp.bfloat16), fw1[...],
                preferred_element_type=jnp.float32) + fb1[...], 0.0)
    ff = jnp.dot(hdn.astype(jnp.bfloat16), fw2[...],
                 preferred_element_type=jnp.float32) + fb2[...]
    t2 = _layer_norm(t2 + ff, ln3g[...], ln3b[...])

    out_ref[...] = t2                       # carry to next layer (f32)
    wself_ref[...] = w_self                 # (B*T, T) flat lane-dense
    wcross_ref[...] = w_cross               # (B*T, S) flat lane-dense


PARAM_ORDER = ("w_sqkv", "b_sqkv", "w_so", "b_so", "ln1g", "ln1b",
               "w_cq", "b_cq", "w_ckv", "b_ckv", "w_co", "b_co", "ln2g", "ln2b",
               "fw1", "fb1", "fw2", "fb2", "ln3g", "ln3b")
_BF16_WEIGHTS = ("w_sqkv", "w_so", "w_cq", "w_ckv", "w_co", "fw1", "fw2")


def _vmem_limit_bytes(B, T, S, C, F):
    """Explicit VMEM budget: double-buffered bf16 weight stream + resident
    activations/masks/outputs + intermediate headroom, clamped to ~85% of the
    chip's VMEM capacity (64 MiB on v7x, 128 MiB on v5e/v6e)."""
    bf16, f32 = 2, 4
    per_layer_w = bf16 * (3 * C * C + C * C + C * C + 2 * C * C + C * C + C * F + F * C)
    per_layer_small = f32 * (3 * C + 2 * C + 4 * C + F + C + 6 * C)
    streamed = 2 * (per_layer_w + per_layer_small)                    # double-buffered
    resident_in = f32 * B * T * C + bf16 * B * S * C + f32 * (T * T + T * S)
    outputs = f32 * B * T * C + 2 * f32 * (B * T * T + B * T * S)
    work = 6 * f32 * B * T * max(3 * C, F)                            # intermediates
    need = streamed + resident_in + outputs + work + (4 << 20)
    try:
        cap = pltpu.get_tpu_info().vmem_capacity_bytes
    except Exception:
        cap = 64 * 1024 * 1024
    return int(min(max(need, 32 * 1024 * 1024), int(cap * 0.85)))


def decoder_stack_forward(x2, mem2_bf, tmask, mmask, stacked_params, num_heads,
                          batch, tgt_len, mem_len):
    BT, C = x2.shape
    BS = mem2_bf.shape[0]
    L = stacked_params["w_sqkv"].shape[0]
    B, T, S = batch, tgt_len, mem_len
    F = stacked_params["fw1"].shape[-1]

    def w_spec(name):
        arr = stacked_params[name]
        nd = arr.ndim - 1
        # one layer's weights per grid step (streamed, double-buffered)
        return pl.BlockSpec((None,) + arr.shape[1:],
                            lambda l, nd=nd: (l,) + (0,) * nd)

    in_specs = [
        pl.BlockSpec((BT, C), lambda l: (0, 0)),   # tgt (flat, resident)
        pl.BlockSpec((BS, C), lambda l: (0, 0)),   # memory (flat bf16, DMA'd once)
        pl.BlockSpec((T, T), lambda l: (0, 0)),    # additive tgt mask
        pl.BlockSpec((T, S), lambda l: (0, 0)),    # additive memory mask
    ] + [w_spec(n) for n in PARAM_ORDER]

    out_specs = [
        pl.BlockSpec((BT, C), lambda l: (0, 0)),           # final activation (carry)
        pl.BlockSpec((None, BT, T), lambda l: (l, 0, 0)),  # per-layer self weights
        pl.BlockSpec((None, BT, S), lambda l: (l, 0, 0)),  # per-layer cross weights
    ]
    out_shape = (
        jax.ShapeDtypeStruct((BT, C), jnp.float32),
        jax.ShapeDtypeStruct((L, BT, T), jnp.float32),
        jax.ShapeDtypeStruct((L, BT, S), jnp.float32),
    )

    # TODO(synk): for very large layers on v7x, K-tile fw1/fw2 across an extra
    # grid axis (and/or use fp8 weights) so the stream stays double-buffered
    # within 64 MiB; a leading "parallel" batch-tile axis would light up the
    # second TensorCore when compute-bound.
    kernel = functools.partial(decoder_stack_kernel, num_heads=num_heads,
                               batch=B, tgt_len=T, mem_len=S)
    return pl.pallas_call(
        kernel,
        grid=(L,),
        in_specs=in_specs,
        out_specs=out_specs,
        out_shape=out_shape,
        compiler_params=pltpu.CompilerParams(
            dimension_semantics=("arbitrary",),            # layers are sequential
            vmem_limit_bytes=_vmem_limit_bytes(B, T, S, C, F),
        ),
    )(x2, mem2_bf, tmask, mmask, *[stacked_params[n] for n in PARAM_ORDER])


# ---------------------------------------------------------------------------
# Deterministic synthetic parameters, stacked over layers (no checkpoint).
# Matrices are stored in bf16 (streamed to the MXU), biases/LN params in f32.
# ---------------------------------------------------------------------------
def init_stacked_params(key, num_layers, d_model, dim_ff):
    layer_params = []
    for k in jax.random.split(key, num_layers):
        ks = jax.random.split(k, 10)

        def lin(kk, fi, fo):
            w = jax.random.normal(kk, (fi, fo), jnp.float32) * 0.05
            b = jnp.zeros((1, fo), jnp.float32)
            return w, b

        swq, sbq = lin(ks[0], d_model, d_model)
        swk, sbk = lin(ks[1], d_model, d_model)
        swv, sbv = lin(ks[2], d_model, d_model)
        swo, sbo = lin(ks[3], d_model, d_model)
        cwq, cbq = lin(ks[4], d_model, d_model)
        cwk, cbk = lin(ks[5], d_model, d_model)
        cwv, cbv = lin(ks[6], d_model, d_model)
        cwo, cbo = lin(ks[7], d_model, d_model)
        fw1, fb1 = lin(ks[8], d_model, dim_ff)
        fw2, fb2 = lin(ks[9], dim_ff, d_model)
        ones = jnp.ones((1, d_model), jnp.float32)
        zeros = jnp.zeros((1, d_model), jnp.float32)
        layer_params.append(dict(
            w_sqkv=jnp.concatenate([swq, swk, swv], axis=1),
            b_sqkv=jnp.concatenate([sbq, sbk, sbv], axis=1),
            w_so=swo, b_so=sbo, ln1g=ones, ln1b=zeros,
            w_cq=cwq, b_cq=cbq,
            w_ckv=jnp.concatenate([cwk, cwv], axis=1),
            b_ckv=jnp.concatenate([cbk, cbv], axis=1),
            w_co=cwo, b_co=cbo, ln2g=ones, ln2b=zeros,
            fw1=fw1, fb1=fb1, fw2=fw2, fb2=fb2, ln3g=ones, ln3b=zeros,
        ))
    stacked = {n: jnp.stack([lp[n] for lp in layer_params], axis=0)
               for n in PARAM_ORDER}
    for n in _BF16_WEIGHTS:
        stacked[n] = stacked[n].astype(jnp.bfloat16)
    return stacked


def _additive_mask(mask, shape):
    if mask is None:
        return jnp.zeros(shape, jnp.float32)
    if mask.dtype == jnp.bool_:
        return jnp.where(mask, -1e9, 0.0).astype(jnp.float32)
    return mask.astype(jnp.float32)


# ---------------------------------------------------------------------------
# DecoderStack forward (inference path: use_cache=False, keep_all_weights=True)
# ---------------------------------------------------------------------------
class DecoderStackPallas:
    def __init__(self, num_dec_layers, d_model, dim_ff, n_heads=4, seed=0):
        self.num_layers = num_dec_layers
        self.n_heads = n_heads
        self.params = init_stacked_params(jax.random.PRNGKey(seed),
                                          num_dec_layers, d_model, dim_ff)

    def forward(self, tgt_tbc, memory_key_sbc, memory_value_sbc=None,
                tgt_mask=None, memory_mask=None):
        # TODO(synk): key-padding masks (torch path is buggy there), use_cache,
        # predict_last_n_only and train-mode dropout are not implemented
        # (eval mode => dropout is identity).
        if memory_value_sbc is not None and memory_value_sbc is not memory_key_sbc:
            # TODO(synk): a genuinely distinct memory_value tensor would need a
            # second memory input; the module always passes value=key (or None).
            raise NotImplementedError("distinct memory_value is not supported")
        T, B, C = tgt_tbc.shape
        S = memory_key_sbc.shape[0]

        # One-time whole-stack layout change: batch-first, flattened to
        # (B*T, C)/(B*S, C) matmul slabs; memory pre-cast to bf16 (it only
        # feeds matmuls).  The fused kernel keeps the activation in VMEM
        # across all layers.
        x2 = jnp.transpose(tgt_tbc, (1, 0, 2)).reshape(B * T, C).astype(jnp.float32)
        mem2 = jnp.transpose(memory_key_sbc, (1, 0, 2)).reshape(B * S, C)
        mem2_bf = mem2.astype(jnp.bfloat16)
        tmask = _additive_mask(tgt_mask, (T, T))
        mmask = _additive_mask(memory_mask, (T, S))

        out2, w_self_flat, w_cross_flat = decoder_stack_forward(
            x2, mem2_bf, tmask, mmask, self.params, self.n_heads, B, T, S)

        out_tbc = jnp.transpose(out2.reshape(B, T, C), (1, 0, 2)).astype(tgt_tbc.dtype)
        w_self = w_self_flat.reshape(self.num_layers, B, T, T)
        w_cross = w_cross_flat.reshape(self.num_layers, B, T, S)

        # Faithful to the torch DecoderStack variable naming: the 'self' list
        # ends up holding the cross-attention averaged weights and 'mix' the
        # self-attention ones.
        all_weights = {
            "self": [w_cross[i] for i in range(self.num_layers)],   # (B, T, S)
            "mix": [w_self[i] for i in range(self.num_layers)],     # (B, T, T)
        }
        return out_tbc, all_weights, None  # cache=None


# ---------------------------------------------------------------------------
# Pure-JAX reference (for numerical validation only; uses the same
# bf16-quantized weight matrices, promoted to f32)
# ---------------------------------------------------------------------------
def _reference_forward(tgt_tbc, memory_sbc, tmask, mmask, params, num_heads):
    x = jnp.transpose(tgt_tbc, (1, 0, 2)).astype(jnp.float32)
    mem = jnp.transpose(memory_sbc, (1, 0, 2)).astype(jnp.float32)
    C = x.shape[-1]

    def f32(a):
        return a.astype(jnp.float32)

    def ln(v, g, b):
        mu = jnp.mean(v, -1, keepdims=True)
        var = jnp.mean((v - mu) ** 2, -1, keepdims=True)
        return (v - mu) / jnp.sqrt(var + 1e-5) * g + b

    def mha(q_in, k_in, v_in, wq, bq, wk, bk, wv, bv, wo, bo, mask):
        B, T, _ = q_in.shape
        S = k_in.shape[1]
        hd = C // num_heads
        q = (q_in @ f32(wq) + bq).reshape(B, T, num_heads, hd)
        k = (k_in @ f32(wk) + bk).reshape(B, S, num_heads, hd)
        v = (v_in @ f32(wv) + bv).reshape(B, S, num_heads, hd)
        s = jnp.einsum('bthd,bshd->bhts', q, k) + mask[None, None]
        p = jax.nn.softmax(s, axis=-1)
        ctx = jnp.einsum('bhts,bshd->bthd', p, v).reshape(B, T, C)
        return ctx @ f32(wo) + bo, jnp.sum(p, axis=1) / num_heads

    L = params["w_sqkv"].shape[0]
    wself_all, wcross_all = [], []
    for l in range(L):
        wqkv, bqkv = params["w_sqkv"][l], params["b_sqkv"][l]
        a, ws = mha(x, x, x,
                    wqkv[:, :C], bqkv[:, :C], wqkv[:, C:2 * C], bqkv[:, C:2 * C],
                    wqkv[:, 2 * C:], bqkv[:, 2 * C:],
                    params["w_so"][l], params["b_so"][l], tmask)
        x = ln(x + a, params["ln1g"][l], params["ln1b"][l])
        wkv, bkv = params["w_ckv"][l], params["b_ckv"][l]
        a, wc = mha(x, mem, mem,
                    params["w_cq"][l], params["b_cq"][l],
                    wkv[:, :C], bkv[:, :C], wkv[:, C:], bkv[:, C:],
                    params["w_co"][l], params["b_co"][l], mmask)
        x = ln(x + a, params["ln2g"][l], params["ln2b"][l])
        h = jax.nn.relu(x @ f32(params["fw1"][l]) + params["fb1"][l])
        a = h @ f32(params["fw2"][l]) + params["fb2"][l]
        x = ln(x + a, params["ln3g"][l], params["ln3b"][l])
        wself_all.append(ws)
        wcross_all.append(wc)
    return jnp.transpose(x, (1, 0, 2)), wself_all, wcross_all


if __name__ == "__main__":
    B, T, S, C, F, H, L = 2, 8, 16, 32, 64, 4, 2
    key = jax.random.PRNGKey(0)
    k1, k2 = jax.random.split(key)
    tgt = jax.random.normal(k1, (T, B, C), jnp.float32)       # (seq, batch, d_model)
    memory = jax.random.normal(k2, (S, B, C), jnp.float32)    # (mem_len, batch, d_model)

    # causal additive self-attention mask
    causal = jnp.where(jnp.arange(T)[:, None] >= jnp.arange(T)[None, :],
                       0.0, -1e9).astype(jnp.float32)

    model = DecoderStackPallas(num_dec_layers=L, d_model=C, dim_ff=F,
                               n_heads=H, seed=0)
    out, all_weights, cache = model.forward(tgt, memory, None,
                                            tgt_mask=causal, memory_mask=None)

    out = jax.block_until_ready(out)
    for w in all_weights["self"] + all_weights["mix"]:
        jax.block_until_ready(w)

    assert out.shape == (T, B, C)
    assert all_weights["mix"][0].shape == (B, T, T)
    assert all_weights["self"][0].shape == (B, T, S)
    assert cache is None

    # Numerical check against the pure-JAX reference (kernel uses bf16 matmul
    # operands with f32 accumulation; softmax normalization is exact).
    ref_out, ref_ws, ref_wc = _reference_forward(
        tgt, memory, causal, jnp.zeros((T, S), jnp.float32), model.params, H)
    assert float(jnp.max(jnp.abs(out - ref_out))) < 5e-2
    for i in range(L):
        assert float(jnp.max(jnp.abs(all_weights["mix"][i] - ref_ws[i]))) < 2e-2
        assert float(jnp.max(jnp.abs(all_weights["self"][i] - ref_wc[i]))) < 2e-2
        # softmax rows must (approximately) sum to 1 — exact normalization
        assert float(jnp.max(jnp.abs(jnp.sum(all_weights["self"][i], -1) - 1.0))) < 1e-3

    print("KERNEL_OK")
</pallas_src>

<mosaic_0001>
module attributes {stable_mosaic.version = 11 : i64} {
  func.func @decoder_stack_kernel(%arg0: i32, %arg1: memref<16x32xf32, #tpu.memory_space<vmem>>, %arg2: memref<32x32xbf16, #tpu.memory_space<vmem>>, %arg3: memref<8x8xf32, #tpu.memory_space<vmem>>, %arg4: memref<8x16xf32, #tpu.memory_space<vmem>>, %arg5: memref<1x32x96xbf16, #tpu.memory_space<vmem>>, %arg6: memref<1x1x96xf32, #tpu.memory_space<vmem>>, %arg7: memref<1x32x32xbf16, #tpu.memory_space<vmem>>, %arg8: memref<1x1x32xf32, #tpu.memory_space<vmem>>, %arg9: memref<1x1x32xf32, #tpu.memory_space<vmem>>, %arg10: memref<1x1x32xf32, #tpu.memory_space<vmem>>, %arg11: memref<1x32x32xbf16, #tpu.memory_space<vmem>>, %arg12: memref<1x1x32xf32, #tpu.memory_space<vmem>>, %arg13: memref<1x32x64xbf16, #tpu.memory_space<vmem>>, %arg14: memref<1x1x64xf32, #tpu.memory_space<vmem>>, %arg15: memref<1x32x32xbf16, #tpu.memory_space<vmem>>, %arg16: memref<1x1x32xf32, #tpu.memory_space<vmem>>, %arg17: memref<1x1x32xf32, #tpu.memory_space<vmem>>, %arg18: memref<1x1x32xf32, #tpu.memory_space<vmem>>, %arg19: memref<1x32x64xbf16, #tpu.memory_space<vmem>>, %arg20: memref<1x1x64xf32, #tpu.memory_space<vmem>>, %arg21: memref<1x64x32xbf16, #tpu.memory_space<vmem>>, %arg22: memref<1x1x32xf32, #tpu.memory_space<vmem>>, %arg23: memref<1x1x32xf32, #tpu.memory_space<vmem>>, %arg24: memref<1x1x32xf32, #tpu.memory_space<vmem>>, %arg25: memref<16x32xf32, #tpu.memory_space<vmem>>, %arg26: memref<1x16x8xf32, #tpu.memory_space<vmem>>, %arg27: memref<1x16x16xf32, #tpu.memory_space<vmem>>) attributes {dimension_semantics = [#tpu.dimension_semantics<arbitrary>], iteration_bounds = array<i64: 2>, scalar_prefetch = 0 : i64, scratch_operands = 0 : i64, tpu.core_type = #tpu.core_type<tc>, window_params = [{pipeline_mode = #tpu.pipeline_mode<synchronous>, transform_indices = @transform_0, window_bounds = array<i64: 16, 32>}, {pipeline_mode = #tpu.pipeline_mode<synchronous>, transform_indices = @transform_1, window_bounds = array<i64: 32, 32>}, {pipeline_mode = #tpu.pipeline_mode<synchronous>, transform_indices = @transform_2, window_bounds = array<i64: 8, 8>}, {pipeline_mode = #tpu.pipeline_mode<synchronous>, transform_indices = @transform_3, window_bounds = array<i64: 8, 16>}, {transform_indices = @transform_4, window_bounds = array<i64: 1, 32, 96>}, {transform_indices = @transform_5, window_bounds = array<i64: 1, 1, 96>}, {transform_indices = @transform_6, window_bounds = array<i64: 1, 32, 32>}, {transform_indices = @transform_7, window_bounds = array<i64: 1, 1, 32>}, {transform_indices = @transform_8, window_bounds = array<i64: 1, 1, 32>}, {transform_indices = @transform_9, window_bounds = array<i64: 1, 1, 32>}, {transform_indices = @transform_10, window_bounds = array<i64: 1, 32, 32>}, {transform_indices = @transform_11, window_bounds = array<i64: 1, 1, 32>}, {transform_indices = @transform_12, window_bounds = array<i64: 1, 32, 64>}, {transform_indices = @transform_13, window_bounds = array<i64: 1, 1, 64>}, {transform_indices = @transform_14, window_bounds = array<i64: 1, 32, 32>}, {transform_indices = @transform_15, window_bounds = array<i64: 1, 1, 32>}, {transform_indices = @transform_16, window_bounds = array<i64: 1, 1, 32>}, {transform_indices = @transform_17, window_bounds = array<i64: 1, 1, 32>}, {transform_indices = @transform_18, window_bounds = array<i64: 1, 32, 64>}, {transform_indices = @transform_19, window_bounds = array<i64: 1, 1, 64>}, {transform_indices = @transform_20, window_bounds = array<i64: 1, 64, 32>}, {transform_indices = @transform_21, window_bounds = array<i64: 1, 1, 32>}, {transform_indices = @transform_22, window_bounds = array<i64: 1, 1, 32>}, {transform_indices = @transform_23, window_bounds = array<i64: 1, 1, 32>}, {pipeline_mode = #tpu.pipeline_mode<synchronous>, transform_indices = @transform_24, window_bounds = array<i64: 16, 32>}, {transform_indices = @transform_25, window_bounds = array<i64: 1, 16, 8>}, {transform_indices = @transform_26, window_bounds = array<i64: 1, 16, 16>}]} {
    %c0_i32 = arith.constant 0 : i32
    %0 = arith.cmpi eq, %arg0, %c0_i32 : i32
    %1 = arith.extui %0 : i1 to i32
    %c0_i32_0 = arith.constant 0 : i32
    %2 = arith.cmpi ne, %1, %c0_i32_0 : i32
    scf.if %2 {
      %c0_138 = arith.constant 0 : index
      %c0_139 = arith.constant 0 : index
      %350 = vector.load %arg1[%c0_138, %c0_139] : memref<16x32xf32, #tpu.memory_space<vmem>>, vector<16x32xf32>
      %c0_140 = arith.constant 0 : index
      %c0_141 = arith.constant 0 : index
      %351 = vector.load %arg25[%c0_140, %c0_141] : memref<16x32xf32, #tpu.memory_space<vmem>>, vector<16x32xf32>
      tpu.vector_store %arg25[%c0_140, %c0_141], %350 {strides = array<i32>} : memref<16x32xf32, #tpu.memory_space<vmem>>, vector<16x32xf32>,
    } else {
    }
    %c0 = arith.constant 0 : index
    %c0_1 = arith.constant 0 : index
    %3 = vector.load %arg25[%c0, %c0_1] : memref<16x32xf32, #tpu.memory_space<vmem>>, vector<16x32xf32>
    %c0_2 = arith.constant 0 : index
    %c0_3 = arith.constant 0 : index
    %4 = vector.load %arg2[%c0_2, %c0_3] : memref<32x32xbf16, #tpu.memory_space<vmem>>, vector<32x32xbf16>
    %5 = arith.truncf %3 : vector<16x32xf32> to vector<16x32xbf16>
    %c0_4 = arith.constant 0 : index
    %c0_5 = arith.constant 0 : index
    %c0_6 = arith.constant 0 : index
    %6 = vector.load %arg5[%c0_4, %c0_5, %c0_6] : memref<1x32x96xbf16, #tpu.memory_space<vmem>>, vector<1x32x96xbf16>
    %7 = vector.shape_cast %6 : vector<1x32x96xbf16> to vector<32x96xbf16>
    %cst = arith.constant dense<0.000000e+00> : vector<16x96xf32>
    %8 = tpu.matmul %5, %7, %cst {dimension_numbers = #tpu.dot_dimension_numbers<[1], [0], [0], [1], [0, 0, 1, 1], [], []>} : vector<16x32xbf16>, vector<32x96xbf16>, vector<16x96xf32> -> vector<16x96xf32>
    %c0_7 = arith.constant 0 : index
    %c0_8 = arith.constant 0 : index
    %c0_9 = arith.constant 0 : index
    %9 = vector.load %arg6[%c0_7, %c0_8, %c0_9] : memref<1x1x96xf32, #tpu.memory_space<vmem>>, vector<1x1x96xf32>
    %10 = vector.shape_cast %9 : vector<1x1x96xf32> to vector<1x96xf32>
    %11 = vector.broadcast %10 : vector<1x96xf32> to vector<16x96xf32>
    %12 = arith.addf %8, %11 : vector<16x96xf32>
    %13 = arith.truncf %12 : vector<16x96xf32> to vector<16x96xbf16>
    %14 = vector.extract_strided_slice %13 {offsets = [0, 0], sizes = [16, 32], strides = [1, 1]} : vector<16x96xbf16> to vector<16x32xbf16>
    %15 = vector.extract_strided_slice %13 {offsets = [0, 32], sizes = [16, 32], strides = [1, 1]} : vector<16x96xbf16> to vector<16x32xbf16>
    %16 = vector.extract_strided_slice %13 {offsets = [0, 64], sizes = [16, 32], strides = [1, 1]} : vector<16x96xbf16> to vector<16x32xbf16>
    %c0_10 = arith.constant 0 : index
    %c0_11 = arith.constant 0 : index
    %c0_12 = arith.constant 0 : index
    %17 = vector.load %arg7[%c0_10, %c0_11, %c0_12] : memref<1x32x32xbf16, #tpu.memory_space<vmem>>, vector<1x32x32xbf16>
    %18 = vector.shape_cast %17 : vector<1x32x32xbf16> to vector<32x32xbf16>
    %c0_13 = arith.constant 0 : index
    %c0_14 = arith.constant 0 : index
    %c0_15 = arith.constant 0 : index
    %19 = vector.load %arg8[%c0_13, %c0_14, %c0_15] : memref<1x1x32xf32, #tpu.memory_space<vmem>>, vector<1x1x32xf32>
    %20 = vector.shape_cast %19 : vector<1x1x32xf32> to vector<1x32xf32>
    %c0_16 = arith.constant 0 : index
    %c0_17 = arith.constant 0 : index
    %21 = vector.load %arg3[%c0_16, %c0_17] : memref<8x8xf32, #tpu.memory_space<vmem>>, vector<8x8xf32>
    %22 = vector.shape_cast %14 : vector<16x32xbf16> to vector<2x8x32xbf16>
    %23 = vector.shape_cast %15 : vector<16x32xbf16> to vector<2x8x32xbf16>
    %24 = vector.shape_cast %16 : vector<16x32xbf16> to vector<2x8x32xbf16>
    %25 = vector.shape_cast %21 : vector<8x8xf32> to vector<1x8x8xf32>
    %26 = vector.extract_strided_slice %22 {offsets = [0, 0, 0], sizes = [2, 8, 8], strides = [1, 1, 1]} : vector<2x8x32xbf16> to vector<2x8x8xbf16>
    %27 = vector.extract_strided_slice %23 {offsets = [0, 0, 0], sizes = [2, 8, 8], strides = [1, 1, 1]} : vector<2x8x32xbf16> to vector<2x8x8xbf16>
    "tpu.trace_start"() <{level = 10 : i32, message = "btd,bsd->bts"}> : () -> ()
    %cst_18 = arith.constant dense<0.000000e+00> : vector<2x8x8xf32>
    %28 = tpu.matmul %26, %27, %cst_18 {dimension_numbers = #tpu.dot_dimension_numbers<[2], [2], [1], [1], [0, 0, 0, 1, 1, 1], [0], [0]>} : vector<2x8x8xbf16>, vector<2x8x8xbf16>, vector<2x8x8xf32> -> vector<2x8x8xf32>
    "tpu.trace_stop"() : () -> ()
    %29 = vector.broadcast %25 : vector<1x8x8xf32> to vector<2x8x8xf32>
    %30 = arith.addf %28, %29 : vector<2x8x8xf32>
    %cst_19 = arith.constant dense<0xFF800000> : vector<2x8xf32>
    %31 = vector.multi_reduction <maximumf>, %30, %cst_19 [2] : vector<2x8x8xf32> to vector<2x8xf32>
    %32 = vector.shape_cast %31 : vector<2x8xf32> to vector<2x8x1xf32>
    %33 = vector.broadcast %32 : vector<2x8x1xf32> to vector<2x8x8xf32>
    %34 = arith.subf %30, %33 : vector<2x8x8xf32>
    %35 = math.exp %34 : vector<2x8x8xf32>
    %cst_20 = arith.constant dense<0.000000e+00> : vector<2x8xf32>
    %36 = vector.multi_reduction <add>, %35, %cst_20 [2] : vector<2x8x8xf32> to vector<2x8xf32>
    %37 = vector.shape_cast %36 : vector<2x8xf32> to vector<2x8x1xf32>
    %38 = vector.broadcast %37 : vector<2x8x1xf32> to vector<2x8x8xf32>
    %39 = arith.divf %35, %38 : vector<2x8x8xf32>
    %40 = arith.truncf %39 : vector<2x8x8xf32> to vector<2x8x8xbf16>
    %41 = vector.extract_strided_slice %24 {offsets = [0, 0, 0], sizes = [2, 8, 8], strides = [1, 1, 1]} : vector<2x8x32xbf16> to vector<2x8x8xbf16>
    "tpu.trace_start"() <{level = 10 : i32, message = "bts,bsd->btd"}> : () -> ()
    %cst_21 = arith.constant dense<0.000000e+00> : vector<2x8x8xf32>
    %42 = tpu.matmul %40, %41, %cst_21 {dimension_numbers = #tpu.dot_dimension_numbers<[2], [1], [1], [2], [0, 0, 0, 1, 1, 2], [0], [0]>} : vector<2x8x8xbf16>, vector<2x8x8xbf16>, vector<2x8x8xf32> -> vector<2x8x8xf32>
    "tpu.trace_stop"() : () -> ()
    %43 = vector.shape_cast %42 : vector<2x8x8xf32> to vector<16x8xf32>
    %44 = arith.truncf %43 : vector<16x8xf32> to vector<16x8xbf16>
    %45 = vector.extract_strided_slice %18 {offsets = [0, 0], sizes = [8, 32], strides = [1, 1]} : vector<32x32xbf16> to vector<8x32xbf16>
    %cst_22 = arith.constant dense<0.000000e+00> : vector<16x32xf32>
    %46 = tpu.matmul %44, %45, %cst_22 {dimension_numbers = #tpu.dot_dimension_numbers<[1], [0], [0], [1], [0, 0, 1, 1], [], []>} : vector<16x8xbf16>, vector<8x32xbf16>, vector<16x32xf32> -> vector<16x32xf32>
    %47 = vector.extract_strided_slice %22 {offsets = [0, 0, 8], sizes = [2, 8, 8], strides = [1, 1, 1]} : vector<2x8x32xbf16> to vector<2x8x8xbf16>
    %48 = vector.extract_strided_slice %23 {offsets = [0, 0, 8], sizes = [2, 8, 8], strides = [1, 1, 1]} : vector<2x8x32xbf16> to vector<2x8x8xbf16>
    "tpu.trace_start"() <{level = 10 : i32, message = "btd,bsd->bts"}> : () -> ()
    %cst_23 = arith.constant dense<0.000000e+00> : vector<2x8x8xf32>
    %49 = tpu.matmul %47, %48, %cst_23 {dimension_numbers = #tpu.dot_dimension_numbers<[2], [2], [1], [1], [0, 0, 0, 1, 1, 1], [0], [0]>} : vector<2x8x8xbf16>, vector<2x8x8xbf16>, vector<2x8x8xf32> -> vector<2x8x8xf32>
    "tpu.trace_stop"() : () -> ()
    %50 = vector.broadcast %25 : vector<1x8x8xf32> to vector<2x8x8xf32>
    %51 = arith.addf %49, %50 : vector<2x8x8xf32>
    %cst_24 = arith.constant dense<0xFF800000> : vector<2x8xf32>
    %52 = vector.multi_reduction <maximumf>, %51, %cst_24 [2] : vector<2x8x8xf32> to vector<2x8xf32>
    %53 = vector.shape_cast %52 : vector<2x8xf32> to vector<2x8x1xf32>
    %54 = vector.broadcast %53 : vector<2x8x1xf32> to vector<2x8x8xf32>
    %55 = arith.subf %51, %54 : vector<2x8x8xf32>
    %56 = math.exp %55 : vector<2x8x8xf32>
    %cst_25 = arith.constant dense<0.000000e+00> : vector<2x8xf32>
    %57 = vector.multi_reduction <add>, %56, %cst_25 [2] : vector<2x8x8xf32> to vector<2x8xf32>
    %58 = vector.shape_cast %57 : vector<2x8xf32> to vector<2x8x1xf32>
    %59 = vector.broadcast %58 : vector<2x8x1xf32> to vector<2x8x8xf32>
    %60 = arith.divf %56, %59 : vector<2x8x8xf32>
    %61 = arith.addf %39, %60 : vector<2x8x8xf32>
    %62 = arith.truncf %60 : vector<2x8x8xf32> to vector<2x8x8xbf16>
    %63 = vector.extract_strided_slice %24 {offsets = [0, 0, 8], sizes = [2, 8, 8], strides = [1, 1, 1]} : vector<2x8x32xbf16> to vector<2x8x8xbf16>
    "tpu.trace_start"() <{level = 10 : i32, message = "bts,bsd->btd"}> : () -> ()
    %cst_26 = arith.constant dense<0.000000e+00> : vector<2x8x8xf32>
    %64 = tpu.matmul %62, %63, %cst_26 {dimension_numbers = #tpu.dot_dimension_numbers<[2], [1], [1], [2], [0, 0, 0, 1, 1, 2], [0], [0]>} : vector<2x8x8xbf16>, vector<2x8x8xbf16>, vector<2x8x8xf32> -> vector<2x8x8xf32>
    "tpu.trace_stop"() : () -> ()
    %65 = vector.shape_cast %64 : vector<2x8x8xf32> to vector<16x8xf32>
    %66 = arith.truncf %65 : vector<16x8xf32> to vector<16x8xbf16>
    %67 = vector.extract_strided_slice %18 {offsets = [8, 0], sizes = [8, 32], strides = [1, 1]} : vector<32x32xbf16> to vector<8x32xbf16>
    %cst_27 = arith.constant dense<0.000000e+00> : vector<16x32xf32>
    %68 = tpu.matmul %66, %67, %cst_27 {dimension_numbers = #tpu.dot_dimension_numbers<[1], [0], [0], [1], [0, 0, 1, 1], [], []>} : vector<16x8xbf16>, vector<8x32xbf16>, vector<16x32xf32> -> vector<16x32xf32>
    %69 = arith.addf %46, %68 : vector<16x32xf32>
    %70 = vector.extract_strided_slice %22 {offsets = [0, 0, 16], sizes = [2, 8, 8], strides = [1, 1, 1]} : vector<2x8x32xbf16> to vector<2x8x8xbf16>
    %71 = vector.extract_strided_slice %23 {offsets = [0, 0, 16], sizes = [2, 8, 8], strides = [1, 1, 1]} : vector<2x8x32xbf16> to vector<2x8x8xbf16>
    "tpu.trace_start"() <{level = 10 : i32, message = "btd,bsd->bts"}> : () -> ()
    %cst_28 = arith.constant dense<0.000000e+00> : vector<2x8x8xf32>
    %72 = tpu.matmul %70, %71, %cst_28 {dimension_numbers = #tpu.dot_dimension_numbers<[2], [2], [1], [1], [0, 0, 0, 1, 1, 1], [0], [0]>} : vector<2x8x8xbf16>, vector<2x8x8xbf16>, vector<2x8x8xf32> -> vector<2x8x8xf32>
    "tpu.trace_stop"() : () -> ()
    %73 = vector.broadcast %25 : vector<1x8x8xf32> to vector<2x8x8xf32>
    %74 = arith.addf %72, %73 : vector<2x8x8xf32>
    %cst_29 = arith.constant dense<0xFF800000> : vector<2x8xf32>
    %75 = vector.multi_reduction <maximumf>, %74, %cst_29 [2] : vector<2x8x8xf32> to vector<2x8xf32>
    %76 = vector.shape_cast %75 : vector<2x8xf32> to vector<2x8x1xf32>
    %77 = vector.broadcast %76 : vector<2x8x1xf32> to vector<2x8x8xf32>
    %78 = arith.subf %74, %77 : vector<2x8x8xf32>
    %79 = math.exp %78 : vector<2x8x8xf32>
    %cst_30 = arith.constant dense<0.000000e+00> : vector<2x8xf32>
    %80 = vector.multi_reduction <add>, %79, %cst_30 [2] : vector<2x8x8xf32> to vector<2x8xf32>
    %81 = vector.shape_cast %80 : vector<2x8xf32> to vector<2x8x1xf32>
    %82 = vector.broadcast %81 : vector<2x8x1xf32> to vector<2x8x8xf32>
    %83 = arith.divf %79, %82 : vector<2x8x8xf32>
    %84 = arith.addf %61, %83 : vector<2x8x8xf32>
    %85 = arith.truncf %83 : vector<2x8x8xf32> to vector<2x8x8xbf16>
    %86 = vector.extract_strided_slice %24 {offsets = [0, 0, 16], sizes = [2, 8, 8], strides = [1, 1, 1]} : vector<2x8x32xbf16> to vector<2x8x8xbf16>
    "tpu.trace_start"() <{level = 10 : i32, message = "bts,bsd->btd"}> : () -> ()
    %cst_31 = arith.constant dense<0.000000e+00> : vector<2x8x8xf32>
    %87 = tpu.matmul %85, %86, %cst_31 {dimension_numbers = #tpu.dot_dimension_numbers<[2], [1], [1], [2], [0, 0, 0, 1, 1, 2], [0], [0]>} : vector<2x8x8xbf16>, vector<2x8x8xbf16>, vector<2x8x8xf32> -> vector<2x8x8xf32>
    "tpu.trace_stop"() : () -> ()
    %88 = vector.shape_cast %87 : vector<2x8x8xf32> to vector<16x8xf32>
    %89 = arith.truncf %88 : vector<16x8xf32> to vector<16x8xbf16>
    %90 = vector.extract_strided_slice %18 {offsets = [16, 0], sizes = [8, 32], strides = [1, 1]} : vector<32x32xbf16> to vector<8x32xbf16>
    %cst_32 = arith.constant dense<0.000000e+00> : vector<16x32xf32>
    %91 = tpu.matmul %89, %90, %cst_32 {dimension_numbers = #tpu.dot_dimension_numbers<[1], [0], [0], [1], [0, 0, 1, 1], [], []>} : vector<16x8xbf16>, vector<8x32xbf16>, vector<16x32xf32> -> vector<16x32xf32>
    %92 = arith.addf %69, %91 : vector<16x32xf32>
    %93 = vector.extract_strided_slice %22 {offsets = [0, 0, 24], sizes = [2, 8, 8], strides = [1, 1, 1]} : vector<2x8x32xbf16> to vector<2x8x8xbf16>
    %94 = vector.extract_strided_slice %23 {offsets = [0, 0, 24], sizes = [2, 8, 8], strides = [1, 1, 1]} : vector<2x8x32xbf16> to vector<2x8x8xbf16>
    "tpu.trace_start"() <{level = 10 : i32, message = "btd,bsd->bts"}> : () -> ()
    %cst_33 = arith.constant dense<0.000000e+00> : vector<2x8x8xf32>
    %95 = tpu.matmul %93, %94, %cst_33 {dimension_numbers = #tpu.dot_dimension_numbers<[2], [2], [1], [1], [0, 0, 0, 1, 1, 1], [0], [0]>} : vector<2x8x8xbf16>, vector<2x8x8xbf16>, vector<2x8x8xf32> -> vector<2x8x8xf32>
    "tpu.trace_stop"() : () -> ()
    %96 = vector.broadcast %25 : vector<1x8x8xf32> to vector<2x8x8xf32>
    %97 = arith.addf %95, %96 : vector<2x8x8xf32>
    %cst_34 = arith.constant dense<0xFF800000> : vector<2x8xf32>
    %98 = vector.multi_reduction <maximumf>, %97, %cst_34 [2] : vector<2x8x8xf32> to vector<2x8xf32>
    %99 = vector.shape_cast %98 : vector<2x8xf32> to vector<2x8x1xf32>
    %100 = vector.broadcast %99 : vector<2x8x1xf32> to vector<2x8x8xf32>
    %101 = arith.subf %97, %100 : vector<2x8x8xf32>
    %102 = math.exp %101 : vector<2x8x8xf32>
    %cst_35 = arith.constant dense<0.000000e+00> : vector<2x8xf32>
    %103 = vector.multi_reduction <add>, %102, %cst_35 [2] : vector<2x8x8xf32> to vector<2x8xf32>
    %104 = vector.shape_cast %103 : vector<2x8xf32> to vector<2x8x1xf32>
    %105 = vector.broadcast %104 : vector<2x8x1xf32> to vector<2x8x8xf32>
    %106 = arith.divf %102, %105 : vector<2x8x8xf32>
    %107 = arith.addf %84, %106 : vector<2x8x8xf32>
    %108 = arith.truncf %106 : vector<2x8x8xf32> to vector<2x8x8xbf16>
    %109 = vector.extract_strided_slice %24 {offsets = [0, 0, 24], sizes = [2, 8, 8], strides = [1, 1, 1]} : vector<2x8x32xbf16> to vector<2x8x8xbf16>
    "tpu.trace_start"() <{level = 10 : i32, message = "bts,bsd->btd"}> : () -> ()
    %cst_36 = arith.constant dense<0.000000e+00> : vector<2x8x8xf32>
    %110 = tpu.matmul %108, %109, %cst_36 {dimension_numbers = #tpu.dot_dimension_numbers<[2], [1], [1], [2], [0, 0, 0, 1, 1, 2], [0], [0]>} : vector<2x8x8xbf16>, vector<2x8x8xbf16>, vector<2x8x8xf32> -> vector<2x8x8xf32>
    "tpu.trace_stop"() : () -> ()
    %111 = vector.shape_cast %110 : vector<2x8x8xf32> to vector<16x8xf32>
    %112 = arith.truncf %111 : vector<16x8xf32> to vector<16x8xbf16>
    %113 = vector.extract_strided_slice %18 {offsets = [24, 0], sizes = [8, 32], strides = [1, 1]} : vector<32x32xbf16> to vector<8x32xbf16>
    %cst_37 = arith.constant dense<0.000000e+00> : vector<16x32xf32>
    %114 = tpu.matmul %112, %113, %cst_37 {dimension_numbers = #tpu.dot_dimension_numbers<[1], [0], [0], [1], [0, 0, 1, 1], [], []>} : vector<16x8xbf16>, vector<8x32xbf16>, vector<16x32xf32> -> vector<16x32xf32>
    %115 = arith.addf %92, %114 : vector<16x32xf32>
    %cst_38 = arith.constant 2.500000e-01 : f32
    %116 = vector.broadcast %cst_38 : f32 to vector<2x8x8xf32>
    %117 = arith.mulf %107, %116 : vector<2x8x8xf32>
    %118 = vector.shape_cast %117 : vector<2x8x8xf32> to vector<16x8xf32>
    %119 = vector.broadcast %20 : vector<1x32xf32> to vector<16x32xf32>
    %120 = arith.addf %115, %119 : vector<16x32xf32>
    %121 = arith.addf %3, %120 : vector<16x32xf32>
    %c0_39 = arith.constant 0 : index
    %c0_40 = arith.constant 0 : index
    %c0_41 = arith.constant 0 : index
    %122 = vector.load %arg9[%c0_39, %c0_40, %c0_41] : memref<1x1x32xf32, #tpu.memory_space<vmem>>, vector<1x1x32xf32>
    %123 = vector.shape_cast %122 : vector<1x1x32xf32> to vector<1x32xf32>
    %c0_42 = arith.constant 0 : index
    %c0_43 = arith.constant 0 : index
    %c0_44 = arith.constant 0 : index
    %124 = vector.load %arg10[%c0_42, %c0_43, %c0_44] : memref<1x1x32xf32, #tpu.memory_space<vmem>>, vector<1x1x32xf32>
    %125 = vector.shape_cast %124 : vector<1x1x32xf32> to vector<1x32xf32>
    %cst_45 = arith.constant dense<0.000000e+00> : vector<16xf32>
    %126 = vector.multi_reduction <add>, %121, %cst_45 [1] : vector<16x32xf32> to vector<16xf32>
    %127 = vector.shape_cast %126 : vector<16xf32> to vector<16x1xf32>
    %cst_46 = arith.constant 3.200000e+01 : f32
    %128 = vector.broadcast %cst_46 : f32 to vector<16x1xf32>
    %129 = arith.divf %127, %128 : vector<16x1xf32>
    %130 = vector.broadcast %129 : vector<16x1xf32> to vector<16x32xf32>
    %131 = arith.subf %121, %130 : vector<16x32xf32>
    %132 = arith.mulf %131, %131 : vector<16x32xf32>
    %cst_47 = arith.constant dense<0.000000e+00> : vector<16xf32>
    %133 = vector.multi_reduction <add>, %132, %cst_47 [1] : vector<16x32xf32> to vector<16xf32>
    %134 = vector.shape_cast %133 : vector<16xf32> to vector<16x1xf32>
    %cst_48 = arith.constant 3.200000e+01 : f32
    %135 = vector.broadcast %cst_48 : f32 to vector<16x1xf32>
    %136 = arith.divf %134, %135 : vector<16x1xf32>
    %137 = vector.broadcast %129 : vector<16x1xf32> to vector<16x32xf32>
    %138 = arith.subf %121, %137 : vector<16x32xf32>
    %cst_49 = arith.constant 9.99999974E-6 : f32
    %139 = vector.broadcast %cst_49 : f32 to vector<16x1xf32>
    %140 = arith.addf %136, %139 : vector<16x1xf32>
    %141 = math.rsqrt %140 : vector<16x1xf32>
    %142 = vector.broadcast %141 : vector<16x1xf32> to vector<16x32xf32>
    %143 = arith.mulf %138, %142 : vector<16x32xf32>
    %144 = vector.broadcast %123 : vector<1x32xf32> to vector<16x32xf32>
    %145 = arith.mulf %143, %144 : vector<16x32xf32>
    %146 = vector.broadcast %125 : vector<1x32xf32> to vector<16x32xf32>
    %147 = arith.addf %145, %146 : vector<16x32xf32>
    %148 = arith.truncf %147 : vector<16x32xf32> to vector<16x32xbf16>
    %c0_50 = arith.constant 0 : index
    %c0_51 = arith.constant 0 : index
    %c0_52 = arith.constant 0 : index
    %149 = vector.load %arg11[%c0_50, %c0_51, %c0_52] : memref<1x32x32xbf16, #tpu.memory_space<vmem>>, vector<1x32x32xbf16>
    %150 = vector.shape_cast %149 : vector<1x32x32xbf16> to vector<32x32xbf16>
    %cst_53 = arith.constant dense<0.000000e+00> : vector<16x32xf32>
    %151 = tpu.matmul %148, %150, %cst_53 {dimension_numbers = #tpu.dot_dimension_numbers<[1], [0], [0], [1], [0, 0, 1, 1], [], []>} : vector<16x32xbf16>, vector<32x32xbf16>, vector<16x32xf32> -> vector<16x32xf32>
    %c0_54 = arith.constant 0 : index
    %c0_55 = arith.constant 0 : index
    %c0_56 = arith.constant 0 : index
    %152 = vector.load %arg12[%c0_54, %c0_55, %c0_56] : memref<1x1x32xf32, #tpu.memory_space<vmem>>, vector<1x1x32xf32>
    %153 = vector.shape_cast %152 : vector<1x1x32xf32> to vector<1x32xf32>
    %154 = vector.broadcast %153 : vector<1x32xf32> to vector<16x32xf32>
    %155 = arith.addf %151, %154 : vector<16x32xf32>
    %c0_57 = arith.constant 0 : index
    %c0_58 = arith.constant 0 : index
    %c0_59 = arith.constant 0 : index
    %156 = vector.load %arg13[%c0_57, %c0_58, %c0_59] : memref<1x32x64xbf16, #tpu.memory_space<vmem>>, vector<1x32x64xbf16>
    %157 = vector.shape_cast %156 : vector<1x32x64xbf16> to vector<32x64xbf16>
    %cst_60 = arith.constant dense<0.000000e+00> : vector<32x64xf32>
    %158 = tpu.matmul %4, %157, %cst_60 {dimension_numbers = #tpu.dot_dimension_numbers<[1], [0], [0], [1], [0, 0, 1, 1], [], []>} : vector<32x32xbf16>, vector<32x64xbf16>, vector<32x64xf32> -> vector<32x64xf32>
    %c0_61 = arith.constant 0 : index
    %c0_62 = arith.constant 0 : index
    %c0_63 = arith.constant 0 : index
    %159 = vector.load %arg14[%c0_61, %c0_62, %c0_63] : memref<1x1x64xf32, #tpu.memory_space<vmem>>, vector<1x1x64xf32>
    %160 = vector.shape_cast %159 : vector<1x1x64xf32> to vector<1x64xf32>
    %161 = vector.broadcast %160 : vector<1x64xf32> to vector<32x64xf32>
    %162 = arith.addf %158, %161 : vector<32x64xf32>
    %163 = arith.truncf %162 : vector<32x64xf32> to vector<32x64xbf16>
    %164 = arith.truncf %155 : vector<16x32xf32> to vector<16x32xbf16>
    %165 = vector.extract_strided_slice %163 {offsets = [0, 0], sizes = [32, 32], strides = [1, 1]} : vector<32x64xbf16> to vector<32x32xbf16>
    %166 = vector.extract_strided_slice %163 {offsets = [0, 32], sizes = [32, 32], strides = [1, 1]} : vector<32x64xbf16> to vector<32x32xbf16>
    %c0_64 = arith.constant 0 : index
    %c0_65 = arith.constant 0 : index
    %c0_66 = arith.constant 0 : index
    %167 = vector.load %arg15[%c0_64, %c0_65, %c0_66] : memref<1x32x32xbf16, #tpu.memory_space<vmem>>, vector<1x32x32xbf16>
    %168 = vector.shape_cast %167 : vector<1x32x32xbf16> to vector<32x32xbf16>
    %c0_67 = arith.constant 0 : index
    %c0_68 = arith.constant 0 : index
    %c0_69 = arith.constant 0 : index
    %169 = vector.load %arg16[%c0_67, %c0_68, %c0_69] : memref<1x1x32xf32, #tpu.memory_space<vmem>>, vector<1x1x32xf32>
    %170 = vector.shape_cast %169 : vector<1x1x32xf32> to vector<1x32xf32>
    %c0_70 = arith.constant 0 : index
    %c0_71 = arith.constant 0 : index
    %171 = vector.load %arg4[%c0_70, %c0_71] : memref<8x16xf32, #tpu.memory_space<vmem>>, vector<8x16xf32>
    %172 = vector.shape_cast %164 : vector<16x32xbf16> to vector<2x8x32xbf16>
    %173 = vector.shape_cast %165 : vector<32x32xbf16> to vector<2x16x32xbf16>
    %174 = vector.shape_cast %166 : vector<32x32xbf16> to vector<2x16x32xbf16>
    %175 = vector.shape_cast %171 : vector<8x16xf32> to vector<1x8x16xf32>
    %176 = vector.extract_strided_slice %172 {offsets = [0, 0, 0], sizes = [2, 8, 8], strides = [1, 1, 1]} : vector<2x8x32xbf16> to vector<2x8x8xbf16>
    %177 = vector.extract_strided_slice %173 {offsets = [0, 0, 0], sizes = [2, 16, 8], strides = [1, 1, 1]} : vector<2x16x32xbf16> to vector<2x16x8xbf16>
    "tpu.trace_start"() <{level = 10 : i32, message = "btd,bsd->bts"}> : () -> ()
    %cst_72 = arith.constant dense<0.000000e+00> : vector<2x8x16xf32>
    %178 = tpu.matmul %176, %177, %cst_72 {dimension_numbers = #tpu.dot_dimension_numbers<[2], [2], [1], [1], [0, 0, 0, 1, 1, 1], [0], [0]>} : vector<2x8x8xbf16>, vector<2x16x8xbf16>, vector<2x8x16xf32> -> vector<2x8x16xf32>
    "tpu.trace_stop"() : () -> ()
    %179 = vector.broadcast %175 : vector<1x8x16xf32> to vector<2x8x16xf32>
    %180 = arith.addf %178, %179 : vector<2x8x16xf32>
    %cst_73 = arith.constant dense<0xFF800000> : vector<2x8xf32>
    %181 = vector.multi_reduction <maximumf>, %180, %cst_73 [2] : vector<2x8x16xf32> to vector<2x8xf32>
    %182 = vector.shape_cast %181 : vector<2x8xf32> to vector<2x8x1xf32>
    %183 = vector.broadcast %182 : vector<2x8x1xf32> to vector<2x8x16xf32>
    %184 = arith.subf %180, %183 : vector<2x8x16xf32>
    %185 = math.exp %184 : vector<2x8x16xf32>
    %cst_74 = arith.constant dense<0.000000e+00> : vector<2x8xf32>
    %186 = vector.multi_reduction <add>, %185, %cst_74 [2] : vector<2x8x16xf32> to vector<2x8xf32>
    %187 = vector.shape_cast %186 : vector<2x8xf32> to vector<2x8x1xf32>
    %188 = vector.broadcast %187 : vector<2x8x1xf32> to vector<2x8x16xf32>
    %189 = arith.divf %185, %188 : vector<2x8x16xf32>
    %190 = arith.truncf %189 : vector<2x8x16xf32> to vector<2x8x16xbf16>
    %191 = vector.extract_strided_slice %174 {offsets = [0, 0, 0], sizes = [2, 16, 8], strides = [1, 1, 1]} : vector<2x16x32xbf16> to vector<2x16x8xbf16>
    "tpu.trace_start"() <{level = 10 : i32, message = "bts,bsd->btd"}> : () -> ()
    %cst_75 = arith.constant dense<0.000000e+00> : vector<2x8x8xf32>
    %192 = tpu.matmul %190, %191, %cst_75 {dimension_numbers = #tpu.dot_dimension_numbers<[2], [1], [1], [2], [0, 0, 0, 1, 1, 2], [0], [0]>} : vector<2x8x16xbf16>, vector<2x16x8xbf16>, vector<2x8x8xf32> -> vector<2x8x8xf32>
    "tpu.trace_stop"() : () -> ()
    %193 = vector.shape_cast %192 : vector<2x8x8xf32> to vector<16x8xf32>
    %194 = arith.truncf %193 : vector<16x8xf32> to vector<16x8xbf16>
    %195 = vector.extract_strided_slice %168 {offsets = [0, 0], sizes = [8, 32], strides = [1, 1]} : vector<32x32xbf16> to vector<8x32xbf16>
    %cst_76 = arith.constant dense<0.000000e+00> : vector<16x32xf32>
    %196 = tpu.matmul %194, %195, %cst_76 {dimension_numbers = #tpu.dot_dimension_numbers<[1], [0], [0], [1], [0, 0, 1, 1], [], []>} : vector<16x8xbf16>, vector<8x32xbf16>, vector<16x32xf32> -> vector<16x32xf32>
    %197 = vector.extract_strided_slice %172 {offsets = [0, 0, 8], sizes = [2, 8, 8], strides = [1, 1, 1]} : vector<2x8x32xbf16> to vector<2x8x8xbf16>
    %198 = vector.extract_strided_slice %173 {offsets = [0, 0, 8], sizes = [2, 16, 8], strides = [1, 1, 1]} : vector<2x16x32xbf16> to vector<2x16x8xbf16>
    "tpu.trace_start"() <{level = 10 : i32, message = "btd,bsd->bts"}> : () -> ()
    %cst_77 = arith.constant dense<0.000000e+00> : vector<2x8x16xf32>
    %199 = tpu.matmul %197, %198, %cst_77 {dimension_numbers = #tpu.dot_dimension_numbers<[2], [2], [1], [1], [0, 0, 0, 1, 1, 1], [0], [0]>} : vector<2x8x8xbf16>, vector<2x16x8xbf16>, vector<2x8x16xf32> -> vector<2x8x16xf32>
    "tpu.trace_stop"() : () -> ()
    %200 = vector.broadcast %175 : vector<1x8x16xf32> to vector<2x8x16xf32>
    %201 = arith.addf %199, %200 : vector<2x8x16xf32>
    %cst_78 = arith.constant dense<0xFF800000> : vector<2x8xf32>
    %202 = vector.multi_reduction <maximumf>, %201, %cst_78 [2] : vector<2x8x16xf32> to vector<2x8xf32>
    %203 = vector.shape_cast %202 : vector<2x8xf32> to vector<2x8x1xf32>
    %204 = vector.broadcast %203 : vector<2x8x1xf32> to vector<2x8x16xf32>
    %205 = arith.subf %201, %204 : vector<2x8x16xf32>
    %206 = math.exp %205 : vector<2x8x16xf32>
    %cst_79 = arith.constant dense<0.000000e+00> : vector<2x8xf32>
    %207 = vector.multi_reduction <add>, %206, %cst_79 [2] : vector<2x8x16xf32> to vector<2x8xf32>
    %208 = vector.shape_cast %207 : vector<2x8xf32> to vector<2x8x1xf32>
    %209 = vector.broadcast %208 : vector<2x8x1xf32> to vector<2x8x16xf32>
    %210 = arith.divf %206, %209 : vector<2x8x16xf32>
    %211 = arith.addf %189, %210 : vector<2x8x16xf32>
    %212 = arith.truncf %210 : vector<2x8x16xf32> to vector<2x8x16xbf16>
    %213 = vector.extract_strided_slice %174 {offsets = [0, 0, 8], sizes = [2, 16, 8], strides = [1, 1, 1]} : vector<2x16x32xbf16> to vector<2x16x8xbf16>
    "tpu.trace_start"() <{level = 10 : i32, message = "bts,bsd->btd"}> : () -> ()
    %cst_80 = arith.constant dense<0.000000e+00> : vector<2x8x8xf32>
    %214 = tpu.matmul %212, %213, %cst_80 {dimension_numbers = #tpu.dot_dimension_numbers<[2], [1], [1], [2], [0, 0, 0, 1, 1, 2], [0], [0]>} : vector<2x8x16xbf16>, vector<2x16x8xbf16>, vector<2x8x8xf32> -> vector<2x8x8xf32>
    "tpu.trace_stop"() : () -> ()
    %215 = vector.shape_cast %214 : vector<2x8x8xf32> to vector<16x8xf32>
    %216 = arith.truncf %215 : vector<16x8xf32> to vector<16x8xbf16>
    %217 = vector.extract_strided_slice %168 {offsets = [8, 0], sizes = [8, 32], strides = [1, 1]} : vector<32x32xbf16> to vector<8x32xbf16>
    %cst_81 = arith.constant dense<0.000000e+00> : vector<16x32xf32>
    %218 = tpu.matmul %216, %217, %cst_81 {dimension_numbers = #tpu.dot_dimension_numbers<[1], [0], [0], [1], [0, 0, 1, 1], [], []>} : vector<16x8xbf16>, vector<8x32xbf16>, vector<16x32xf32> -> vector<16x32xf32>
    %219 = arith.addf %196, %218 : vector<16x32xf32>
    %220 = vector.extract_strided_slice %172 {offsets = [0, 0, 16], sizes = [2, 8, 8], strides = [1, 1, 1]} : vector<2x8x32xbf16> to vector<2x8x8xbf16>
    %221 = vector.extract_strided_slice %173 {offsets = [0, 0, 16], sizes = [2, 16, 8], strides = [1, 1, 1]} : vector<2x16x32xbf16> to vector<2x16x8xbf16>
    "tpu.trace_start"() <{level = 10 : i32, message = "btd,bsd->bts"}> : () -> ()
    %cst_82 = arith.constant dense<0.000000e+00> : vector<2x8x16xf32>
    %222 = tpu.matmul %220, %221, %cst_82 {dimension_numbers = #tpu.dot_dimension_numbers<[2], [2], [1], [1], [0, 0, 0, 1, 1, 1], [0], [0]>} : vector<2x8x8xbf16>, vector<2x16x8xbf16>, vector<2x8x16xf32> -> vector<2x8x16xf32>
    "tpu.trace_stop"() : () -> ()
    %223 = vector.broadcast %175 : vector<1x8x16xf32> to vector<2x8x16xf32>
    %224 = arith.addf %222, %223 : vector<2x8x16xf32>
    %cst_83 = arith.constant dense<0xFF800000> : vector<2x8xf32>
    %225 = vector.multi_reduction <maximumf>, %224, %cst_83 [2] : vector<2x8x16xf32> to vector<2x8xf32>
    %226 = vector.shape_cast %225 : vector<2x8xf32> to vector<2x8x1xf32>
    %227 = vector.broadcast %226 : vector<2x8x1xf32> to vector<2x8x16xf32>
    %228 = arith.subf %224, %227 : vector<2x8x16xf32>
    %229 = math.exp %228 : vector<2x8x16xf32>
    %cst_84 = arith.constant dense<0.000000e+00> : vector<2x8xf32>
    %230 = vector.multi_reduction <add>, %229, %cst_84 [2] : vector<2x8x16xf32> to vector<2x8xf32>
    %231 = vector.shape_cast %230 : vector<2x8xf32> to vector<2x8x1xf32>
    %232 = vector.broadcast %231 : vector<2x8x1xf32> to vector<2x8x16xf32>
    %233 = arith.divf %229, %232 : vector<2x8x16xf32>
    %234 = arith.addf %211, %233 : vector<2x8x16xf32>
    %235 = arith.truncf %233 : vector<2x8x16xf32> to vector<2x8x16xbf16>
    %236 = vector.extract_strided_slice %174 {offsets = [0, 0, 16], sizes = [2, 16, 8], strides = [1, 1, 1]} : vector<2x16x32xbf16> to vector<2x16x8xbf16>
    "tpu.trace_start"() <{level = 10 : i32, message = "bts,bsd->btd"}> : () -> ()
    %cst_85 = arith.constant dense<0.000000e+00> : vector<2x8x8xf32>
    %237 = tpu.matmul %235, %236, %cst_85 {dimension_numbers = #tpu.dot_dimension_numbers<[2], [1], [1], [2], [0, 0, 0, 1, 1, 2], [0], [0]>} : vector<2x8x16xbf16>, vector<2x16x8xbf16>, vector<2x8x8xf32> -> vector<2x8x8xf32>
    "tpu.trace_stop"() : () -> ()
    %238 = vector.shape_cast %237 : vector<2x8x8xf32> to vector<16x8xf32>
    %239 = arith.truncf %238 : vector<16x8xf32> to vector<16x8xbf16>
    %240 = vector.extract_strided_slice %168 {offsets = [16, 0], sizes = [8, 32], strides = [1, 1]} : vector<32x32xbf16> to vector<8x32xbf16>
    %cst_86 = arith.constant dense<0.000000e+00> : vector<16x32xf32>
    %241 = tpu.matmul %239, %240, %cst_86 {dimension_numbers = #tpu.dot_dimension_numbers<[1], [0], [0], [1], [0, 0, 1, 1], [], []>} : vector<16x8xbf16>, vector<8x32xbf16>, vector<16x32xf32> -> vector<16x32xf32>
    %242 = arith.addf %219, %241 : vector<16x32xf32>
    %243 = vector.extract_strided_slice %172 {offsets = [0, 0, 24], sizes = [2, 8, 8], strides = [1, 1, 1]} : vector<2x8x32xbf16> to vector<2x8x8xbf16>
    %244 = vector.extract_strided_slice %173 {offsets = [0, 0, 24], sizes = [2, 16, 8], strides = [1, 1, 1]} : vector<2x16x32xbf16> to vector<2x16x8xbf16>
    "tpu.trace_start"() <{level = 10 : i32, message = "btd,bsd->bts"}> : () -> ()
    %cst_87 = arith.constant dense<0.000000e+00> : vector<2x8x16xf32>
    %245 = tpu.matmul %243, %244, %cst_87 {dimension_numbers = #tpu.dot_dimension_numbers<[2], [2], [1], [1], [0, 0, 0, 1, 1, 1], [0], [0]>} : vector<2x8x8xbf16>, vector<2x16x8xbf16>, vector<2x8x16xf32> -> vector<2x8x16xf32>
    "tpu.trace_stop"() : () -> ()
    %246 = vector.broadcast %175 : vector<1x8x16xf32> to vector<2x8x16xf32>
    %247 = arith.addf %245, %246 : vector<2x8x16xf32>
    %cst_88 = arith.constant dense<0xFF800000> : vector<2x8xf32>
    %248 = vector.multi_reduction <maximumf>, %247, %cst_88 [2] : vector<2x8x16xf32> to vector<2x8xf32>
    %249 = vector.shape_cast %248 : vector<2x8xf32> to vector<2x8x1xf32>
    %250 = vector.broadcast %249 : vector<2x8x1xf32> to vector<2x8x16xf32>
    %251 = arith.subf %247, %250 : vector<2x8x16xf32>
    %252 = math.exp %251 : vector<2x8x16xf32>
    %cst_89 = arith.constant dense<0.000000e+00> : vector<2x8xf32>
    %253 = vector.multi_reduction <add>, %252, %cst_89 [2] : vector<2x8x16xf32> to vector<2x8xf32>
    %254 = vector.shape_cast %253 : vector<2x8xf32> to vector<2x8x1xf32>
    %255 = vector.broadcast %254 : vector<2x8x1xf32> to vector<2x8x16xf32>
    %256 = arith.divf %252, %255 : vector<2x8x16xf32>
    %257 = arith.addf %234, %256 : vector<2x8x16xf32>
    %258 = arith.truncf %256 : vector<2x8x16xf32> to vector<2x8x16xbf16>
    %259 = vector.extract_strided_slice %174 {offsets = [0, 0, 24], sizes = [2, 16, 8], strides = [1, 1, 1]} : vector<2x16x32xbf16> to vector<2x16x8xbf16>
    "tpu.trace_start"() <{level = 10 : i32, message = "bts,bsd->btd"}> : () -> ()
    %cst_90 = arith.constant dense<0.000000e+00> : vector<2x8x8xf32>
    %260 = tpu.matmul %258, %259, %cst_90 {dimension_numbers = #tpu.dot_dimension_numbers<[2], [1], [1], [2], [0, 0, 0, 1, 1, 2], [0], [0]>} : vector<2x8x16xbf16>, vector<2x16x8xbf16>, vector<2x8x8xf32> -> vector<2x8x8xf32>
    "tpu.trace_stop"() : () -> ()
    %261 = vector.shape_cast %260 : vector<2x8x8xf32> to vector<16x8xf32>
    %262 = arith.truncf %261 : vector<16x8xf32> to vector<16x8xbf16>
    %263 = vector.extract_strided_slice %168 {offsets = [24, 0], sizes = [8, 32], strides = [1, 1]} : vector<32x32xbf16> to vector<8x32xbf16>
    %cst_91 = arith.constant dense<0.000000e+00> : vector<16x32xf32>
    %264 = tpu.matmul %262, %263, %cst_91 {dimension_numbers = #tpu.dot_dimension_numbers<[1], [0], [0], [1], [0, 0, 1, 1], [], []>} : vector<16x8xbf16>, vector<8x32xbf16>, vector<16x32xf32> -> vector<16x32xf32>
    %265 = arith.addf %242, %264 : vector<16x32xf32>
    %cst_92 = arith.constant 2.500000e-01 : f32
    %266 = vector.broadcast %cst_92 : f32 to vector<2x8x16xf32>
    %267 = arith.mulf %257, %266 : vector<2x8x16xf32>
    %268 = vector.shape_cast %267 : vector<2x8x16xf32> to vector<16x16xf32>
    %269 = vector.broadcast %170 : vector<1x32xf32> to vector<16x32xf32>
    %270 = arith.addf %265, %269 : vector<16x32xf32>
    %271 = arith.addf %147, %270 : vector<16x32xf32>
    %c0_93 = arith.constant 0 : index
    %c0_94 = arith.constant 0 : index
    %c0_95 = arith.constant 0 : index
    %272 = vector.load %arg17[%c0_93, %c0_94, %c0_95] : memref<1x1x32xf32, #tpu.memory_space<vmem>>, vector<1x1x32xf32>
    %273 = vector.shape_cast %272 : vector<1x1x32xf32> to vector<1x32xf32>
    %c0_96 = arith.constant 0 : index
    %c0_97 = arith.constant 0 : index
    %c0_98 = arith.constant 0 : index
    %274 = vector.load %arg18[%c0_96, %c0_97, %c0_98] : memref<1x1x32xf32, #tpu.memory_space<vmem>>, vector<1x1x32xf32>
    %275 = vector.shape_cast %274 : vector<1x1x32xf32> to vector<1x32xf32>
    %cst_99 = arith.constant dense<0.000000e+00> : vector<16xf32>
    %276 = vector.multi_reduction <add>, %271, %cst_99 [1] : vector<16x32xf32> to vector<16xf32>
    %277 = vector.shape_cast %276 : vector<16xf32> to vector<16x1xf32>
    %cst_100 = arith.constant 3.200000e+01 : f32
    %278 = vector.broadcast %cst_100 : f32 to vector<16x1xf32>
    %279 = arith.divf %277, %278 : vector<16x1xf32>
    %280 = vector.broadcast %279 : vector<16x1xf32> to vector<16x32xf32>
    %281 = arith.subf %271, %280 : vector<16x32xf32>
    %282 = arith.mulf %281, %281 : vector<16x32xf32>
    %cst_101 = arith.constant dense<0.000000e+00> : vector<16xf32>
    %283 = vector.multi_reduction <add>, %282, %cst_101 [1] : vector<16x32xf32> to vector<16xf32>
    %284 = vector.shape_cast %283 : vector<16xf32> to vector<16x1xf32>
    %cst_102 = arith.constant 3.200000e+01 : f32
    %285 = vector.broadcast %cst_102 : f32 to vector<16x1xf32>
    %286 = arith.divf %284, %285 : vector<16x1xf32>
    %287 = vector.broadcast %279 : vector<16x1xf32> to vector<16x32xf32>
    %288 = arith.subf %271, %287 : vector<16x32xf32>
    %cst_103 = arith.constant 9.99999974E-6 : f32
    %289 = vector.broadcast %cst_103 : f32 to vector<16x1xf32>
    %290 = arith.addf %286, %289 : vector<16x1xf32>
    %291 = math.rsqrt %290 : vector<16x1xf32>
    %292 = vector.broadcast %291 : vector<16x1xf32> to vector<16x32xf32>
    %293 = arith.mulf %288, %292 : vector<16x32xf32>
    %294 = vector.broadcast %273 : vector<1x32xf32> to vector<16x32xf32>
    %295 = arith.mulf %293, %294 : vector<16x32xf32>
    %296 = vector.broadcast %275 : vector<1x32xf32> to vector<16x32xf32>
    %297 = arith.addf %295, %296 : vector<16x32xf32>
    %298 = arith.truncf %297 : vector<16x32xf32> to vector<16x32xbf16>
    %c0_104 = arith.constant 0 : index
    %c0_105 = arith.constant 0 : index
    %c0_106 = arith.constant 0 : index
    %299 = vector.load %arg19[%c0_104, %c0_105, %c0_106] : memref<1x32x64xbf16, #tpu.memory_space<vmem>>, vector<1x32x64xbf16>
    %300 = vector.shape_cast %299 : vector<1x32x64xbf16> to vector<32x64xbf16>
    %cst_107 = arith.constant dense<0.000000e+00> : vector<16x64xf32>
    %301 = tpu.matmul %298, %300, %cst_107 {dimension_numbers = #tpu.dot_dimension_numbers<[1], [0], [0], [1], [0, 0, 1, 1], [], []>} : vector<16x32xbf16>, vector<32x64xbf16>, vector<16x64xf32> -> vector<16x64xf32>
    %c0_108 = arith.constant 0 : index
    %c0_109 = arith.constant 0 : index
    %c0_110 = arith.constant 0 : index
    %302 = vector.load %arg20[%c0_108, %c0_109, %c0_110] : memref<1x1x64xf32, #tpu.memory_space<vmem>>, vector<1x1x64xf32>
    %303 = vector.shape_cast %302 : vector<1x1x64xf32> to vector<1x64xf32>
    %304 = vector.broadcast %303 : vector<1x64xf32> to vector<16x64xf32>
    %305 = arith.addf %301, %304 : vector<16x64xf32>
    %cst_111 = arith.constant 0.000000e+00 : f32
    %306 = vector.broadcast %cst_111 : f32 to vector<16x64xf32>
    %307 = arith.maximumf %305, %306 : vector<16x64xf32>
    %308 = arith.truncf %307 : vector<16x64xf32> to vector<16x64xbf16>
    %c0_112 = arith.constant 0 : index
    %c0_113 = arith.constant 0 : index
    %c0_114 = arith.constant 0 : index
    %309 = vector.load %arg21[%c0_112, %c0_113, %c0_114] : memref<1x64x32xbf16, #tpu.memory_space<vmem>>, vector<1x64x32xbf16>
    %310 = vector.shape_cast %309 : vector<1x64x32xbf16> to vector<64x32xbf16>
    %cst_115 = arith.constant dense<0.000000e+00> : vector<16x32xf32>
    %311 = tpu.matmul %308, %310, %cst_115 {dimension_numbers = #tpu.dot_dimension_numbers<[1], [0], [0], [1], [0, 0, 1, 1], [], []>} : vector<16x64xbf16>, vector<64x32xbf16>, vector<16x32xf32> -> vector<16x32xf32>
    %c0_116 = arith.constant 0 : index
    %c0_117 = arith.constant 0 : index
    %c0_118 = arith.constant 0 : index
    %312 = vector.load %arg22[%c0_116, %c0_117, %c0_118] : memref<1x1x32xf32, #tpu.memory_space<vmem>>, vector<1x1x32xf32>
    %313 = vector.shape_cast %312 : vector<1x1x32xf32> to vector<1x32xf32>
    %314 = vector.broadcast %313 : vector<1x32xf32> to vector<16x32xf32>
    %315 = arith.addf %311, %314 : vector<16x32xf32>
    %316 = arith.addf %297, %315 : vector<16x32xf32>
    %c0_119 = arith.constant 0 : index
    %c0_120 = arith.constant 0 : index
    %c0_121 = arith.constant 0 : index
    %317 = vector.load %arg23[%c0_119, %c0_120, %c0_121] : memref<1x1x32xf32, #tpu.memory_space<vmem>>, vector<1x1x32xf32>
    %318 = vector.shape_cast %317 : vector<1x1x32xf32> to vector<1x32xf32>
    %c0_122 = arith.constant 0 : index
    %c0_123 = arith.constant 0 : index
    %c0_124 = arith.constant 0 : index
    %319 = vector.load %arg24[%c0_122, %c0_123, %c0_124] : memref<1x1x32xf32, #tpu.memory_space<vmem>>, vector<1x1x32xf32>
    %320 = vector.shape_cast %319 : vector<1x1x32xf32> to vector<1x32xf32>
    %cst_125 = arith.constant dense<0.000000e+00> : vector<16xf32>
    %321 = vector.multi_reduction <add>, %316, %cst_125 [1] : vector<16x32xf32> to vector<16xf32>
    %322 = vector.shape_cast %321 : vector<16xf32> to vector<16x1xf32>
    %cst_126 = arith.constant 3.200000e+01 : f32
    %323 = vector.broadcast %cst_126 : f32 to vector<16x1xf32>
    %324 = arith.divf %322, %323 : vector<16x1xf32>
    %325 = vector.broadcast %324 : vector<16x1xf32> to vector<16x32xf32>
    %326 = arith.subf %316, %325 : vector<16x32xf32>
    %327 = arith.mulf %326, %326 : vector<16x32xf32>
    %cst_127 = arith.constant dense<0.000000e+00> : vector<16xf32>
    %328 = vector.multi_reduction <add>, %327, %cst_127 [1] : vector<16x32xf32> to vector<16xf32>
    %329 = vector.shape_cast %328 : vector<16xf32> to vector<16x1xf32>
    %cst_128 = arith.constant 3.200000e+01 : f32
    %330 = vector.broadcast %cst_128 : f32 to vector<16x1xf32>
    %331 = arith.divf %329, %330 : vector<16x1xf32>
    %332 = vector.broadcast %324 : vector<16x1xf32> to vector<16x32xf32>
    %333 = arith.subf %316, %332 : vector<16x32xf32>
    %cst_129 = arith.constant 9.99999974E-6 : f32
    %334 = vector.broadcast %cst_129 : f32 to vector<16x1xf32>
    %335 = arith.addf %331, %334 : vector<16x1xf32>
    %336 = math.rsqrt %335 : vector<16x1xf32>
    %337 = vector.broadcast %336 : vector<16x1xf32> to vector<16x32xf32>
    %338 = arith.mulf %333, %337 : vector<16x32xf32>
    %339 = vector.broadcast %318 : vector<1x32xf32> to vector<16x32xf32>
    %340 = arith.mulf %338, %339 : vector<16x32xf32>
    %341 = vector.broadcast %320 : vector<1x32xf32> to vector<16x32xf32>
    %342 = arith.addf %340, %341 : vector<16x32xf32>
    %c0_130 = arith.constant 0 : index
    %c0_131 = arith.constant 0 : index
    %343 = vector.load %arg25[%c0_130, %c0_131] : memref<16x32xf32, #tpu.memory_space<vmem>>, vector<16x32xf32>
    tpu.vector_store %arg25[%c0_130, %c0_131], %342 {strides = array<i32>} : memref<16x32xf32, #tpu.memory_space<vmem>>, vector<16x32xf32>,
    %c0_132 = arith.constant 0 : index
    %c0_133 = arith.constant 0 : index
    %c0_134 = arith.constant 0 : index
    %344 = vector.load %arg26[%c0_132, %c0_133, %c0_134] : memref<1x16x8xf32, #tpu.memory_space<vmem>>, vector<1x16x8xf32>
    %345 = vector.shape_cast %344 : vector<1x16x8xf32> to vector<16x8xf32>
    %346 = vector.shape_cast %118 : vector<16x8xf32> to vector<1x16x8xf32>
    tpu.vector_store %arg26[%c0_132, %c0_133, %c0_134], %346 {strides = array<i32>} : memref<1x16x8xf32, #tpu.memory_space<vmem>>, vector<1x16x8xf32>,
    %c0_135 = arith.constant 0 : index
    %c0_136 = arith.constant 0 : index
    %c0_137 = arith.constant 0 : index
    %347 = vector.load %arg27[%c0_135, %c0_136, %c0_137] : memref<1x16x16xf32, #tpu.memory_space<vmem>>, vector<1x16x16xf32>
    %348 = vector.shape_cast %347 : vector<1x16x16xf32> to vector<16x16xf32>
    %349 = vector.shape_cast %268 : vector<16x16xf32> to vector<1x16x16xf32>
    tpu.vector_store %arg27[%c0_135, %c0_136, %c0_137], %349 {strides = array<i32>} : memref<1x16x16xf32, #tpu.memory_space<vmem>>, vector<1x16x16xf32>,
    return
  }
  func.func @transform_0(%arg0: i32) -> (i32, i32) {
    %c0_i32 = arith.constant 0 : i32
    %c0_i32_0 = arith.constant 0 : i32
    %c0_i32_1 = arith.constant 0 : i32
    return %c0_i32, %c0_i32_0 : i32, i32
  }
  func.func @transform_1(%arg0: i32) -> (i32, i32) {
    %c0_i32 = arith.constant 0 : i32
    %c0_i32_0 = arith.constant 0 : i32
    %c0_i32_1 = arith.constant 0 : i32
    return %c0_i32, %c0_i32_0 : i32, i32
  }
  func.func @transform_2(%arg0: i32) -> (i32, i32) {
    %c0_i32 = arith.constant 0 : i32
    %c0_i32_0 = arith.constant 0 : i32
    %c0_i32_1 = arith.constant 0 : i32
    return %c0_i32, %c0_i32_0 : i32, i32
  }
  func.func @transform_3(%arg0: i32) -> (i32, i32) {
    %c0_i32 = arith.constant 0 : i32
    %c0_i32_0 = arith.constant 0 : i32
    %c0_i32_1 = arith.constant 0 : i32
    return %c0_i32, %c0_i32_0 : i32, i32
  }
  func.func @transform_4(%arg0: i32) -> (i32, i32, i32) {
    %c0_i32 = arith.constant 0 : i32
    %c0_i32_0 = arith.constant 0 : i32
    %c0_i32_1 = arith.constant 0 : i32
    return %arg0, %c0_i32, %c0_i32_0 : i32, i32, i32
  }
  func.func @transform_5(%arg0: i32) -> (i32, i32, i32) {
    %c0_i32 = arith.constant 0 : i32
    %c0_i32_0 = arith.constant 0 : i32
    %c0_i32_1 = arith.constant 0 : i32
    return %arg0, %c0_i32, %c0_i32_0 : i32, i32, i32
  }
  func.func @transform_6(%arg0: i32) -> (i32, i32, i32) {
    %c0_i32 = arith.constant 0 : i32
    %c0_i32_0 = arith.constant 0 : i32
    %c0_i32_1 = arith.constant 0 : i32
    return %arg0, %c0_i32, %c0_i32_0 : i32, i32, i32
  }
  func.func @transform_7(%arg0: i32) -> (i32, i32, i32) {
    %c0_i32 = arith.constant 0 : i32
    %c0_i32_0 = arith.constant 0 : i32
    %c0_i32_1 = arith.constant 0 : i32
    return %arg0, %c0_i32, %c0_i32_0 : i32, i32, i32
  }
  func.func @transform_8(%arg0: i32) -> (i32, i32, i32) {
    %c0_i32 = arith.constant 0 : i32
    %c0_i32_0 = arith.constant 0 : i32
    %c0_i32_1 = arith.constant 0 : i32
    return %arg0, %c0_i32, %c0_i32_0 : i32, i32, i32
  }
  func.func @transform_9(%arg0: i32) -> (i32, i32, i32) {
    %c0_i32 = arith.constant 0 : i32
    %c0_i32_0 = arith.constant 0 : i32
    %c0_i32_1 = arith.constant 0 : i32
    return %arg0, %c0_i32, %c0_i32_0 : i32, i32, i32
  }
  func.func @transform_10(%arg0: i32) -> (i32, i32, i32) {
    %c0_i32 = arith.constant 0 : i32
    %c0_i32_0 = arith.constant 0 : i32
    %c0_i32_1 = arith.constant 0 : i32
    return %arg0, %c0_i32, %c0_i32_0 : i32, i32, i32
  }
  func.func @transform_11(%arg0: i32) -> (i32, i32, i32) {
    %c0_i32 = arith.constant 0 : i32
    %c0_i32_0 = arith.constant 0 : i32
    %c0_i32_1 = arith.constant 0 : i32
    return %arg0, %c0_i32, %c0_i32_0 : i32, i32, i32
  }
  func.func @transform_12(%arg0: i32) -> (i32, i32, i32) {
    %c0_i32 = arith.constant 0 : i32
    %c0_i32_0 = arith.constant 0 : i32
    %c0_i32_1 = arith.constant 0 : i32
    return %arg0, %c0_i32, %c0_i32_0 : i32, i32, i32
  }
  func.func @transform_13(%arg0: i32) -> (i32, i32, i32) {
    %c0_i32 = arith.constant 0 : i32
    %c0_i32_0 = arith.constant 0 : i32
    %c0_i32_1 = arith.constant 0 : i32
    return %arg0, %c0_i32, %c0_i32_0 : i32, i32, i32
  }
  func.func @transform_14(%arg0: i32) -> (i32, i32, i32) {
    %c0_i32 = arith.constant 0 : i32
    %c0_i32_0 = arith.constant 0 : i32
    %c0_i32_1 = arith.constant 0 : i32
    return %arg0, %c0_i32, %c0_i32_0 : i32, i32, i32
  }
  func.func @transform_15(%arg0: i32) -> (i32, i32, i32) {
    %c0_i32 = arith.constant 0 : i32
    %c0_i32_0 = arith.constant 0 : i32
    %c0_i32_1 = arith.constant 0 : i32
    return %arg0, %c0_i32, %c0_i32_0 : i32, i32, i32
  }
  func.func @transform_16(%arg0: i32) -> (i32, i32, i32) {
    %c0_i32 = arith.constant 0 : i32
    %c0_i32_0 = arith.constant 0 : i32
    %c0_i32_1 = arith.constant 0 : i32
    return %arg0, %c0_i32, %c0_i32_0 : i32, i32, i32
  }
  func.func @transform_17(%arg0: i32) -> (i32, i32, i32) {
    %c0_i32 = arith.constant 0 : i32
    %c0_i32_0 = arith.constant 0 : i32
    %c0_i32_1 = arith.constant 0 : i32
    return %arg0, %c0_i32, %c0_i32_0 : i32, i32, i32
  }
  func.func @transform_18(%arg0: i32) -> (i32, i32, i32) {
    %c0_i32 = arith.constant 0 : i32
    %c0_i32_0 = arith.constant 0 : i32
    %c0_i32_1 = arith.constant 0 : i32
    return %arg0, %c0_i32, %c0_i32_0 : i32, i32, i32
  }
  func.func @transform_19(%arg0: i32) -> (i32, i32, i32) {
    %c0_i32 = arith.constant 0 : i32
    %c0_i32_0 = arith.constant 0 : i32
    %c0_i32_1 = arith.constant 0 : i32
    return %arg0, %c0_i32, %c0_i32_0 : i32, i32, i32
  }
  func.func @transform_20(%arg0: i32) -> (i32, i32, i32) {
    %c0_i32 = arith.constant 0 : i32
    %c0_i32_0 = arith.constant 0 : i32
    %c0_i32_1 = arith.constant 0 : i32
    return %arg0, %c0_i32, %c0_i32_0 : i32, i32, i32
  }
  func.func @transform_21(%arg0: i32) -> (i32, i32, i32) {
    %c0_i32 = arith.constant 0 : i32
    %c0_i32_0 = arith.constant 0 : i32
    %c0_i32_1 = arith.constant 0 : i32
    return %arg0, %c0_i32, %c0_i32_0 : i32, i32, i32
  }
  func.func @transform_22(%arg0: i32) -> (i32, i32, i32) {
    %c0_i32 = arith.constant 0 : i32
    %c0_i32_0 = arith.constant 0 : i32
    %c0_i32_1 = arith.constant 0 : i32
    return %arg0, %c0_i32, %c0_i32_0 : i32, i32, i32
  }
  func.func @transform_23(%arg0: i32) -> (i32, i32, i32) {
    %c0_i32 = arith.constant 0 : i32
    %c0_i32_0 = arith.constant 0 : i32
    %c0_i32_1 = arith.constant 0 : i32
    return %arg0, %c0_i32, %c0_i32_0 : i32, i32, i32
  }
  func.func @transform_24(%arg0: i32) -> (i32, i32) {
    %c0_i32 = arith.constant 0 : i32
    %c0_i32_0 = arith.constant 0 : i32
    %c0_i32_1 = arith.constant 0 : i32
    return %c0_i32, %c0_i32_0 : i32, i32
  }
  func.func @transform_25(%arg0: i32) -> (i32, i32, i32) {
    %c0_i32 = arith.constant 0 : i32
    %c0_i32_0 = arith.constant 0 : i32
    %c0_i32_1 = arith.constant 0 : i32
    return %arg0, %c0_i32, %c0_i32_0 : i32, i32, i32
  }
  func.func @transform_26(%arg0: i32) -> (i32, i32, i32) {
    %c0_i32 = arith.constant 0 : i32
    %c0_i32_0 = arith.constant 0 : i32
    %c0_i32_1 = arith.constant 0 : i32
    return %arg0, %c0_i32, %c0_i32_0 : i32, i32, i32
  }
}

</mosaic_0001>

<llo_original>
// kernel: tpu_custom_call.1
$region0: #{tpu_custom_call.1}
  #allocation0 [shape = 'u32[]', space=smem, size = 0x4, offset = 0x4, fixed_abs, tag = 'smem constant byte address 0x4 - core index']
  #allocation1 [shape = 'u32[72,128]{1,0:T(1,128)}', space=vmem, size = 0x9000, scoped, tag = 'internal scratch']
  %s0 = inlined_call_operand.hbm [shape: f32[16,32], index: 0, kind: input, shape index: {}]
  %s1 = inlined_call_operand.hbm [shape: bf16[32,32], index: 1, kind: input, shape index: {}]
  %s2 = inlined_call_operand.hbm [shape: f32[8,8], index: 2, kind: input, shape index: {}]
  %s3 = inlined_call_operand.hbm [shape: f32[8,16], index: 3, kind: input, shape index: {}]
  %s4 = inlined_call_operand.vmem [shape: bf16[2,32,96], index: 4, kind: input, shape index: {}]
  %s5 = inlined_call_operand.vmem [shape: f32[2,1,96], index: 5, kind: input, shape index: {}]
  %s6 = inlined_call_operand.vmem [shape: bf16[2,32,32], index: 6, kind: input, shape index: {}]
  %s7 = inlined_call_operand.vmem [shape: f32[2,1,32], index: 7, kind: input, shape index: {}]
  %s8 = inlined_call_operand.vmem [shape: f32[2,1,32], index: 8, kind: input, shape index: {}]
  %s9 = inlined_call_operand.hbm [shape: f32[2,1,32], index: 9, kind: input, shape index: {}]
  %s10 = inlined_call_operand.vmem [shape: bf16[2,32,32], index: 10, kind: input, shape index: {}]
  %s11 = inlined_call_operand.vmem [shape: f32[2,1,32], index: 11, kind: input, shape index: {}]
  %s12 = inlined_call_operand.hbm [shape: bf16[2,32,64], index: 12, kind: input, shape index: {}]
  %s13 = inlined_call_operand.vmem [shape: f32[2,1,64], index: 13, kind: input, shape index: {}]
  %s14 = inlined_call_operand.hbm [shape: bf16[2,32,32], index: 14, kind: input, shape index: {}]
  %s15 = inlined_call_operand.vmem [shape: f32[2,1,32], index: 15, kind: input, shape index: {}]
  %s16 = inlined_call_operand.vmem [shape: f32[2,1,32], index: 16, kind: input, shape index: {}]
  %s17 = inlined_call_operand.hbm [shape: f32[2,1,32], index: 17, kind: input, shape index: {}]
  %s18 = inlined_call_operand.hbm [shape: bf16[2,32,64], index: 18, kind: input, shape index: {}]
  %s19 = inlined_call_operand.vmem [shape: f32[2,1,64], index: 19, kind: input, shape index: {}]
  %s20 = inlined_call_operand.vmem [shape: bf16[2,64,32], index: 20, kind: input, shape index: {}]
  %s21 = inlined_call_operand.vmem [shape: f32[2,1,32], index: 21, kind: input, shape index: {}]
  %s22 = inlined_call_operand.vmem [shape: f32[2,1,32], index: 22, kind: input, shape index: {}]
  %s23 = inlined_call_operand.hbm [shape: f32[2,1,32], index: 23, kind: input, shape index: {}]
  %s24 = inlined_call_operand.hbm [shape: f32[16,32], index: 24, kind: output, shape index: {0}]
  %s25 = inlined_call_operand.vmem [shape: f32[2,16,8], index: 25, kind: output, shape index: {1}]
  %s26 = inlined_call_operand.hbm [shape: f32[2,16,16], index: 26, kind: output, shape index: {2}]
  %27 = xla_tuple %s24, %s25, %s26
  %s28 = sld [smem:[#allocation0]]
  $region189: #{tpu_custom_call.1} parent=0
    _
  %s30 = ssub.s32 1, %s28
  %s31 = scalar_select 0, %s30, %s28
  $region1: #{tpu_custom_call.1} parent=0
    #allocation2 [shape = 'u8[8192]{0}', space=vmem, size = 0x2000, scoped, tag = 'input window, operand 0, single buffered']
    #allocation3 [shape = 's32[2]{0}', space=sflag, size = 0x8, scoped, tag = 'scoped memory for tpu_custom_call.1']
    #allocation4 [shape = 's32[2]{0}', space=sflag, size = 0x8, scoped, tag = 'scoped memory for tpu_custom_call.1']
    #allocation5 [shape = 'u8[8192]{0}', space=vmem, size = 0x2000, scoped, tag = 'input window, operand 1, single buffered']
    #allocation6 [shape = 's32[1]{0}', space=sflag, size = 0x4, scoped, tag = 'scoped memory for tpu_custom_call.1']
    #allocation7 [shape = 'u8[4096]{0}', space=vmem, size = 0x1000, scoped, tag = 'input window, operand 2, single buffered']
    #allocation8 [shape = 'u8[4096]{0}', space=vmem, size = 0x1000, scoped, tag = 'input window, operand 3, single buffered']
    #allocation9 [shape = 's32[1]{0}', space=sflag, size = 0x4, scoped, tag = 'scoped memory for tpu_custom_call.1']
    #allocation10 [shape = 'u8[1024]{0}', space=vmem, size = 0x400, scoped, tag = 'input window, operand 9']
    #allocation11 [shape = 'u8[16384]{0}', space=vmem, size = 0x4000, scoped, tag = 'input window, operand 12']
    #allocation12 [shape = 'u8[16384]{0}', space=vmem, size = 0x4000, scoped, tag = 'input window, operand 14']
    #allocation13 [shape = 'u8[1024]{0}', space=vmem, size = 0x400, scoped, tag = 'input window, operand 17']
    #allocation14 [shape = 'u8[16384]{0}', space=vmem, size = 0x4000, scoped, tag = 'input window, operand 18']
    #allocation15 [shape = 'u8[1024]{0}', space=vmem, size = 0x400, scoped, tag = 'input window, operand 23']
    #allocation16 [shape = 'u8[8192]{0}', space=vmem, size = 0x2000, scoped, tag = 'output window, operand 0, single buffered']
    #allocation17 [shape = 'u8[16384]{0}', space=vmem, size = 0x4000, scoped, tag = 'output window, operand 2']
    #allocation18 [shape = 's32[2]{0}', space=sflag, size = 0x8, scoped, tag = 'scoped memory for tpu_custom_call.1']
    %32 = vsyncpa [#allocation3], 0
    %33 = vsyncpa [#allocation6], 0
    %34 = vsyncpa [#allocation9], 0
    %35 = vsyncpa [#allocation4], 0
    %36 = vsyncpa [#allocation18], 0
    %s37 = scalar_lea.sflag [#allocation18], 1
    %38 = vsyncpa %s37, 0
    loop: start=0, step=1, limit=4
    $region2: #{tpu_custom_call.1} parent=1 // loop_pre_header
      _
    $region3: #{tpu_custom_call.1} parent=1 // loop_header
      %s40 = sphi 0, %s44
      %p41 = scmp.ge.s32.totalorder %s40, 4
      %s48 = sphi 0, %s48
      %s50 = sphi 0, %s48
      %s51 = sphi 0, %s50
      %s65 = sphi 0, %s51
      %s69 = sphi 0, %s69
      %s71 = sphi 0, %s69
      %s72 = sphi 0, %s71
      %s86 = sphi 0, %s72
      %s90 = sphi 0, %s90
      %s92 = sphi 0, %s90
      %s93 = sphi 0, %s92
      %s107 = sphi 0, %s93
      %s111 = sphi 0, %s111
      %s113 = sphi 0, %s111
      %s114 = sphi 0, %s113
      %s128 = sphi 0, %s114
      %s134 = sphi 0, %s136
      %s137 = sphi 0, %s134
      %s138 = sphi 0, %s137
      %s154 = sphi 0, %s138
      %s160 = sphi 0, %s162
      %s163 = sphi 0, %s160
      %s164 = sphi 0, %s163
      %s180 = sphi 0, %s164
      %s186 = sphi 0, %s188
      %s189 = sphi 0, %s186
      %s190 = sphi 0, %s189
      %s206 = sphi 0, %s190
      %s212 = sphi 0, %s214
      %s215 = sphi 0, %s212
      %s216 = sphi 0, %s215
      %s232 = sphi 0, %s216
      %s238 = sphi 0, %s240
      %s241 = sphi 0, %s238
      %s242 = sphi 0, %s241
      %s258 = sphi 0, %s242
      %s264 = sphi 0, %s266
      %s267 = sphi 0, %s264
      %s268 = sphi 0, %s267
      %s284 = sphi 0, %s268
      %s290 = sphi 0, %s292
      %s293 = sphi 0, %s290
      %s294 = sphi 0, %s293
      %s310 = sphi 0, %s294
      %s316 = sphi 0, %s318
      %s319 = sphi 0, %s316
      %s320 = sphi 0, %s319
      %s336 = sphi 0, %s320
      %s342 = sphi 0, %s344
      %s345 = sphi 0, %s342
      %s346 = sphi 0, %s345
      %s362 = sphi 0, %s346
      %s368 = sphi 0, %s370
      %s371 = sphi 0, %s368
      %s372 = sphi 0, %s371
      %s388 = sphi 0, %s372
      %s394 = sphi 0, %s396
      %s397 = sphi 0, %s394
      %s398 = sphi 0, %s397
      %s414 = sphi 0, %s398
      %s420 = sphi 0, %s422
      %s423 = sphi 0, %s420
      %s424 = sphi 0, %s423
      %s440 = sphi 0, %s424
      %s446 = sphi 0, %s448
      %s449 = sphi 0, %s446
      %s450 = sphi 0, %s449
      %s466 = sphi 0, %s450
      %s472 = sphi 0, %s474
      %s475 = sphi 0, %s472
      %s476 = sphi 0, %s475
      %s492 = sphi 0, %s476
      %s498 = sphi 0, %s500
      %s501 = sphi 0, %s498
      %s502 = sphi 0, %s501
      %s518 = sphi 0, %s502
      %s524 = sphi 0, %s526
      %s527 = sphi 0, %s524
      %s528 = sphi 0, %s527
      %s544 = sphi 0, %s528
      %s550 = sphi 0, %s552
      %s553 = sphi 0, %s550
      %s554 = sphi 0, %s553
      %s570 = sphi 0, %s554
      %s576 = sphi 0, %s578
      %s579 = sphi 0, %s576
      %s580 = sphi 0, %s579
      %s596 = sphi 0, %s580
      %s602 = sphi 0, %s604
      %s605 = sphi 0, %s602
      %s606 = sphi 0, %s605
      %s622 = sphi 0, %s606
      %s628 = sphi 0, %s630
      %s631 = sphi 0, %s628
      %s632 = sphi 0, %s631
      %s648 = sphi 0, %s632
      %s652 = sphi 0, %s652
      %s654 = sphi 0, %s652
      %s655 = sphi 0, %s654
      %s669 = sphi 0, %s655
      %s675 = sphi 0, %s677
      %s678 = sphi 0, %s675
      %s679 = sphi 0, %s678
      %s695 = sphi 0, %s679
      %s701 = sphi 0, %s703
      %s704 = sphi 0, %s701
      %s705 = sphi 0, %s704
      %s721 = sphi 0, %s705
    $region4: #{tpu_custom_call.1} parent=1 // loop_header_branch
      %43 = sbr.rel (%p41) target = $region8
    $region5: #{tpu_custom_call.1} parent=1 // loop_body
      %s45 = ssub.s32 %s40, 1
      %s46 = ssub.s32 %s40, 2
      %s47 = sadd.s32 %s40, 1
      %s49 = sadd.s32 %s48, 1
      %p52 = scmp.eq.s32.totalorder %s40, 1
      %p53 = scmp.ne.s32.totalorder %s48, %s50
      %p54 = scmp.eq.s32.totalorder %s40, 0
      %p55 = por %p53, %p54
      %p56 = scmp.ne.s32.totalorder %s48, %s50
      %p57 = scmp.eq.s32.totalorder %s45, 1
      %p58 = por %p56, %p57
      %p59 = scmp.ne.s32.totalorder %s50, %s51
      %p60 = scmp.eq.s32.totalorder %s45, 0
      %p61 = por %p59, %p60
      %p62 = scmp.ne.s32.totalorder %s50, %s51
      %p63 = scmp.eq.s32.totalorder %s46, 1
      %p64 = por %p62, %p63
      %p66 = scmp.ne.s32.totalorder %s51, %s65
      %p67 = scmp.eq.s32.totalorder %s46, 0
      %p68 = por %p66, %p67
      %s70 = sadd.s32 %s69, 1
      %p73 = scmp.eq.s32.totalorder %s40, 1
      %p74 = scmp.ne.s32.totalorder %s69, %s71
      %p75 = scmp.eq.s32.totalorder %s40, 0
      %p76 = por %p74, %p75
      %p77 = scmp.ne.s32.totalorder %s69, %s71
      %p78 = scmp.eq.s32.totalorder %s45, 1
      %p79 = por %p77, %p78
      %p80 = scmp.ne.s32.totalorder %s71, %s72
      %p81 = scmp.eq.s32.totalorder %s45, 0
      %p82 = por %p80, %p81
      %p83 = scmp.ne.s32.totalorder %s71, %s72
      %p84 = scmp.eq.s32.totalorder %s46, 1
      %p85 = por %p83, %p84
      %p87 = scmp.ne.s32.totalorder %s72, %s86
      %p88 = scmp.eq.s32.totalorder %s46, 0
      %p89 = por %p87, %p88
      %s91 = sadd.s32 %s90, 1
      %p94 = scmp.eq.s32.totalorder %s40, 1
      %p95 = scmp.ne.s32.totalorder %s90, %s92
      %p96 = scmp.eq.s32.totalorder %s40, 0
      %p97 = por %p95, %p96
      %p98 = scmp.ne.s32.totalorder %s90, %s92
      %p99 = scmp.eq.s32.totalorder %s45, 1
      %p100 = por %p98, %p99
      %p101 = scmp.ne.s32.totalorder %s92, %s93
      %p102 = scmp.eq.s32.totalorder %s45, 0
      %p103 = por %p101, %p102
      %p104 = scmp.ne.s32.totalorder %s92, %s93
      %p105 = scmp.eq.s32.totalorder %s46, 1
      %p106 = por %p104, %p105
      %p108 = scmp.ne.s32.totalorder %s93, %s107
      %p109 = scmp.eq.s32.totalorder %s46, 0
      %p110 = por %p108, %p109
      %s112 = sadd.s32 %s111, 1
      %p115 = scmp.eq.s32.totalorder %s40, 1
      %p116 = scmp.ne.s32.totalorder %s111, %s113
      %p117 = scmp.eq.s32.totalorder %s40, 0
      %p118 = por %p116, %p117
      %p119 = scmp.ne.s32.totalorder %s111, %s113
      %p120 = scmp.eq.s32.totalorder %s45, 1
      %p121 = por %p119, %p120
      %p122 = scmp.ne.s32.totalorder %s113, %s114
      %p123 = scmp.eq.s32.totalorder %s45, 0
      %p124 = por %p122, %p123
      %p125 = scmp.ne.s32.totalorder %s113, %s114
      %p126 = scmp.eq.s32.totalorder %s46, 1
      %p127 = por %p125, %p126
      %p129 = scmp.ne.s32.totalorder %s114, %s128
      %p130 = scmp.eq.s32.totalorder %s46, 0
      %p131 = por %p129, %p130
      %s132 = ssub.s32 %s40, %s47
      %p133 = scmp.eq.s32.totalorder %s132, 0
      %s135 = sadd.s32 %s134, 1
      %s136 = scalar_select %p133, %s134, %s135
      %p139 = pneg %p133
      %p140 = scmp.eq.s32.totalorder %s40, 1
      %p141 = por %p139, %p140
      %p142 = scmp.ne.s32.totalorder %s134, %s137
      %p143 = scmp.eq.s32.totalorder %s40, 0
      %p144 = por %p142, %p143
      %p145 = scmp.ne.s32.totalorder %s134, %s137
      %p146 = scmp.eq.s32.totalorder %s45, 1
      %p147 = por %p145, %p146
      %p148 = scmp.ne.s32.totalorder %s137, %s138
      %p149 = scmp.eq.s32.totalorder %s45, 0
      %p150 = por %p148, %p149
      %p151 = scmp.ne.s32.totalorder %s137, %s138
      %p152 = scmp.eq.s32.totalorder %s46, 1
      %p153 = por %p151, %p152
      %p155 = scmp.ne.s32.totalorder %s138, %s154
      %p156 = scmp.eq.s32.totalorder %s46, 0
      %p157 = por %p155, %p156
      %s158 = ssub.s32 %s40, %s47
      %p159 = scmp.eq.s32.totalorder %s158, 0
      %s161 = sadd.s32 %s160, 1
      %s162 = scalar_select %p159, %s160, %s161
      %p165 = pneg %p159
      %p166 = scmp.eq.s32.totalorder %s40, 1
      %p167 = por %p165, %p166
      %p168 = scmp.ne.s32.totalorder %s160, %s163
      %p169 = scmp.eq.s32.totalorder %s40, 0
      %p170 = por %p168, %p169
      %p171 = scmp.ne.s32.totalorder %s160, %s163
      %p172 = scmp.eq.s32.totalorder %s45, 1
      %p173 = por %p171, %p172
      %p174 = scmp.ne.s32.totalorder %s163, %s164
      %p175 = scmp.eq.s32.totalorder %s45, 0
      %p176 = por %p174, %p175
      %p177 = scmp.ne.s32.totalorder %s163, %s164
      %p178 = scmp.eq.s32.totalorder %s46, 1
      %p179 = por %p177, %p178
      %p181 = scmp.ne.s32.totalorder %s164, %s180
      %p182 = scmp.eq.s32.totalorder %s46, 0
      %p183 = por %p181, %p182
      %s184 = ssub.s32 %s40, %s47
      %p185 = scmp.eq.s32.totalorder %s184, 0
      %s187 = sadd.s32 %s186, 1
      %s188 = scalar_select %p185, %s186, %s187
      %p191 = pneg %p185
      %p192 = scmp.eq.s32.totalorder %s40, 1
      %p193 = por %p191, %p192
      %p194 = scmp.ne.s32.totalorder %s186, %s189
      %p195 = scmp.eq.s32.totalorder %s40, 0
      %p196 = por %p194, %p195
      %p197 = scmp.ne.s32.totalorder %s186, %s189
      %p198 = scmp.eq.s32.totalorder %s45, 1
      %p199 = por %p197, %p198
      %p200 = scmp.ne.s32.totalorder %s189, %s190
      %p201 = scmp.eq.s32.totalorder %s45, 0
      %p202 = por %p200, %p201
      %p203 = scmp.ne.s32.totalorder %s189, %s190
      %p204 = scmp.eq.s32.totalorder %s46, 1
      %p205 = por %p203, %p204
      %p207 = scmp.ne.s32.totalorder %s190, %s206
      %p208 = scmp.eq.s32.totalorder %s46, 0
      %p209 = por %p207, %p208
      %s210 = ssub.s32 %s40, %s47
      %p211 = scmp.eq.s32.totalorder %s210, 0
      %s213 = sadd.s32 %s212, 1
      %s214 = scalar_select %p211, %s212, %s213
      %p217 = pneg %p211
      %p218 = scmp.eq.s32.totalorder %s40, 1
      %p219 = por %p217, %p218
      %p220 = scmp.ne.s32.totalorder %s212, %s215
      %p221 = scmp.eq.s32.totalorder %s40, 0
      %p222 = por %p220, %p221
      %p223 = scmp.ne.s32.totalorder %s212, %s215
      %p224 = scmp.eq.s32.totalorder %s45, 1
      %p225 = por %p223, %p224
      %p226 = scmp.ne.s32.totalorder %s215, %s216
      %p227 = scmp.eq.s32.totalorder %s45, 0
      %p228 = por %p226, %p227
      %p229 = scmp.ne.s32.totalorder %s215, %s216
      %p230 = scmp.eq.s32.totalorder %s46, 1
      %p231 = por %p229, %p230
      %p233 = scmp.ne.s32.totalorder %s216, %s232
      %p234 = scmp.eq.s32.totalorder %s46, 0
      %p235 = por %p233, %p234
      %s236 = ssub.s32 %s40, %s47
      %p237 = scmp.eq.s32.totalorder %s236, 0
      %s239 = sadd.s32 %s238, 1
      %s240 = scalar_select %p237, %s238, %s239
      %p243 = pneg %p237
      %p244 = scmp.eq.s32.totalorder %s40, 1
      %p245 = por %p243, %p244
      %p246 = scmp.ne.s32.totalorder %s238, %s241
      %p247 = scmp.eq.s32.totalorder %s40, 0
      %p248 = por %p246, %p247
      %p249 = scmp.ne.s32.totalorder %s238, %s241
      %p250 = scmp.eq.s32.totalorder %s45, 1
      %p251 = por %p249, %p250
      %p252 = scmp.ne.s32.totalorder %s241, %s242
      %p253 = scmp.eq.s32.totalorder %s45, 0
      %p254 = por %p252, %p253
      %p255 = scmp.ne.s32.totalorder %s241, %s242
      %p256 = scmp.eq.s32.totalorder %s46, 1
      %p257 = por %p255, %p256
      %p259 = scmp.ne.s32.totalorder %s242, %s258
      %p260 = scmp.eq.s32.totalorder %s46, 0
      %p261 = por %p259, %p260
      %s262 = ssub.s32 %s40, %s47
      %p263 = scmp.eq.s32.totalorder %s262, 0
      %s265 = sadd.s32 %s264, 1
      %s266 = scalar_select %p263, %s264, %s265
      %p269 = pneg %p263
      %p270 = scmp.eq.s32.totalorder %s40, 1
      %p271 = por %p269, %p270
      %p272 = scmp.ne.s32.totalorder %s264, %s267
      %p273 = scmp.eq.s32.totalorder %s40, 0
      %p274 = por %p272, %p273
      %p275 = scmp.ne.s32.totalorder %s264, %s267
      %p276 = scmp.eq.s32.totalorder %s45, 1
      %p277 = por %p275, %p276
      %p278 = scmp.ne.s32.totalorder %s267, %s268
      %p279 = scmp.eq.s32.totalorder %s45, 0
      %p280 = por %p278, %p279
      %p281 = scmp.ne.s32.totalorder %s267, %s268
      %p282 = scmp.eq.s32.totalorder %s46, 1
      %p283 = por %p281, %p282
      %p285 = scmp.ne.s32.totalorder %s268, %s284
      %p286 = scmp.eq.s32.totalorder %s46, 0
      %p287 = por %p285, %p286
      %s288 = ssub.s32 %s40, %s47
      %p289 = scmp.eq.s32.totalorder %s288, 0
      %s291 = sadd.s32 %s290, 1
      %s292 = scalar_select %p289, %s290, %s291
      %p295 = pneg %p289
      %p296 = scmp.eq.s32.totalorder %s40, 1
      %p297 = por %p295, %p296
      %p298 = scmp.ne.s32.totalorder %s290, %s293
      %p299 = scmp.eq.s32.totalorder %s40, 0
      %p300 = por %p298, %p299
      %p301 = scmp.ne.s32.totalorder %s290, %s293
      %p302 = scmp.eq.s32.totalorder %s45, 1
      %p303 = por %p301, %p302
      %p304 = scmp.ne.s32.totalorder %s293, %s294
      %p305 = scmp.eq.s32.totalorder %s45, 0
      %p306 = por %p304, %p305
      %p307 = scmp.ne.s32.totalorder %s293, %s294
      %p308 = scmp.eq.s32.totalorder %s46, 1
      %p309 = por %p307, %p308
      %p311 = scmp.ne.s32.totalorder %s294, %s310
      %p312 = scmp.eq.s32.totalorder %s46, 0
      %p313 = por %p311, %p312
      %s314 = ssub.s32 %s40, %s47
      %p315 = scmp.eq.s32.totalorder %s314, 0
      %s317 = sadd.s32 %s316, 1
      %s318 = scalar_select %p315, %s316, %s317
      %p321 = pneg %p315
      %p322 = scmp.eq.s32.totalorder %s40, 1
      %p323 = por %p321, %p322
      %p324 = scmp.ne.s32.totalorder %s316, %s319
      %p325 = scmp.eq.s32.totalorder %s40, 0
      %p326 = por %p324, %p325
      %p327 = scmp.ne.s32.totalorder %s316, %s319
      %p328 = scmp.eq.s32.totalorder %s45, 1
      %p329 = por %p327, %p328
      %p330 = scmp.ne.s32.totalorder %s319, %s320
      %p331 = scmp.eq.s32.totalorder %s45, 0
      %p332 = por %p330, %p331
      %p333 = scmp.ne.s32.totalorder %s319, %s320
      %p334 = scmp.eq.s32.totalorder %s46, 1
      %p335 = por %p333, %p334
      %p337 = scmp.ne.s32.totalorder %s320, %s336
      %p338 = scmp.eq.s32.totalorder %s46, 0
      %p339 = por %p337, %p338
      %s340 = ssub.s32 %s40, %s47
      %p341 = scmp.eq.s32.totalorder %s340, 0
      %s343 = sadd.s32 %s342, 1
      %s344 = scalar_select %p341, %s342, %s343
      %p347 = pneg %p341
      %p348 = scmp.eq.s32.totalorder %s40, 1
      %p349 = por %p347, %p348
      %p350 = scmp.ne.s32.totalorder %s342, %s345
      %p351 = scmp.eq.s32.totalorder %s40, 0
      %p352 = por %p350, %p351
      %p353 = scmp.ne.s32.totalorder %s342, %s345
      %p354 = scmp.eq.s32.totalorder %s45, 1
      %p355 = por %p353, %p354
      %p356 = scmp.ne.s32.totalorder %s345, %s346
      %p357 = scmp.eq.s32.totalorder %s45, 0
      %p358 = por %p356, %p357
      %p359 = scmp.ne.s32.totalorder %s345, %s346
      %p360 = scmp.eq.s32.totalorder %s46, 1
      %p361 = por %p359, %p360
      %p363 = scmp.ne.s32.totalorder %s346, %s362
      %p364 = scmp.eq.s32.totalorder %s46, 0
      %p365 = por %p363, %p364
      %s366 = ssub.s32 %s40, %s47
      %p367 = scmp.eq.s32.totalorder %s366, 0
      %s369 = sadd.s32 %s368, 1
      %s370 = scalar_select %p367, %s368, %s369
      %p373 = pneg %p367
      %p374 = scmp.eq.s32.totalorder %s40, 1
      %p375 = por %p373, %p374
      %p376 = scmp.ne.s32.totalorder %s368, %s371
      %p377 = scmp.eq.s32.totalorder %s40, 0
      %p378 = por %p376, %p377
      %p379 = scmp.ne.s32.totalorder %s368, %s371
      %p380 = scmp.eq.s32.totalorder %s45, 1
      %p381 = por %p379, %p380
      %p382 = scmp.ne.s32.totalorder %s371, %s372
      %p383 = scmp.eq.s32.totalorder %s45, 0
      %p384 = por %p382, %p383
      %p385 = scmp.ne.s32.totalorder %s371, %s372
      %p386 = scmp.eq.s32.totalorder %s46, 1
      %p387 = por %p385, %p386
      %p389 = scmp.ne.s32.totalorder %s372, %s388
      %p390 = scmp.eq.s32.totalorder %s46, 0
      %p391 = por %p389, %p390
      %s392 = ssub.s32 %s40, %s47
      %p393 = scmp.eq.s32.totalorder %s392, 0
      %s395 = sadd.s32 %s394, 1
      %s396 = scalar_select %p393, %s394, %s395
      %p399 = pneg %p393
      %p400 = scmp.eq.s32.totalorder %s40, 1
      %p401 = por %p399, %p400
      %p402 = scmp.ne.s32.totalorder %s394, %s397
      %p403 = scmp.eq.s32.totalorder %s40, 0
      %p404 = por %p402, %p403
      %p405 = scmp.ne.s32.totalorder %s394, %s397
      %p406 = scmp.eq.s32.totalorder %s45, 1
      %p407 = por %p405, %p406
      %p408 = scmp.ne.s32.totalorder %s397, %s398
      %p409 = scmp.eq.s32.totalorder %s45, 0
      %p410 = por %p408, %p409
      %p411 = scmp.ne.s32.totalorder %s397, %s398
      %p412 = scmp.eq.s32.totalorder %s46, 1
      %p413 = por %p411, %p412
      %p415 = scmp.ne.s32.totalorder %s398, %s414
      %p416 = scmp.eq.s32.totalorder %s46, 0
      %p417 = por %p415, %p416
      %s418 = ssub.s32 %s40, %s47
      %p419 = scmp.eq.s32.totalorder %s418, 0
      %s421 = sadd.s32 %s420, 1
      %s422 = scalar_select %p419, %s420, %s421
      %p425 = pneg %p419
      %p426 = scmp.eq.s32.totalorder %s40, 1
      %p427 = por %p425, %p426
      %p428 = scmp.ne.s32.totalorder %s420, %s423
      %p429 = scmp.eq.s32.totalorder %s40, 0
      %p430 = por %p428, %p429
      %p431 = scmp.ne.s32.totalorder %s420, %s423
      %p432 = scmp.eq.s32.totalorder %s45, 1
      %p433 = por %p431, %p432
      %p434 = scmp.ne.s32.totalorder %s423, %s424
      %p435 = scmp.eq.s32.totalorder %s45, 0
      %p436 = por %p434, %p435
      %p437 = scmp.ne.s32.totalorder %s423, %s424
      %p438 = scmp.eq.s32.totalorder %s46, 1
      %p439 = por %p437, %p438
      %p441 = scmp.ne.s32.totalorder %s424, %s440
      %p442 = scmp.eq.s32.totalorder %s46, 0
      %p443 = por %p441, %p442
      %s444 = ssub.s32 %s40, %s47
      %p445 = scmp.eq.s32.totalorder %s444, 0
      %s447 = sadd.s32 %s446, 1
      %s448 = scalar_select %p445, %s446, %s447
      %p451 = pneg %p445
      %p452 = scmp.eq.s32.totalorder %s40, 1
      %p453 = por %p451, %p452
      %p454 = scmp.ne.s32.totalorder %s446, %s449
      %p455 = scmp.eq.s32.totalorder %s40, 0
      %p456 = por %p454, %p455
      %p457 = scmp.ne.s32.totalorder %s446, %s449
      %p458 = scmp.eq.s32.totalorder %s45, 1
      %p459 = por %p457, %p458
      %p460 = scmp.ne.s32.totalorder %s449, %s450
      %p461 = scmp.eq.s32.totalorder %s45, 0
      %p462 = por %p460, %p461
      %p463 = scmp.ne.s32.totalorder %s449, %s450
      %p464 = scmp.eq.s32.totalorder %s46, 1
      %p465 = por %p463, %p464
      %p467 = scmp.ne.s32.totalorder %s450, %s466
      %p468 = scmp.eq.s32.totalorder %s46, 0
      %p469 = por %p467, %p468
      %s470 = ssub.s32 %s40, %s47
      %p471 = scmp.eq.s32.totalorder %s470, 0
      %s473 = sadd.s32 %s472, 1
      %s474 = scalar_select %p471, %s472, %s473
      %p477 = pneg %p471
      %p478 = scmp.eq.s32.totalorder %s40, 1
      %p479 = por %p477, %p478
      %p480 = scmp.ne.s32.totalorder %s472, %s475
      %p481 = scmp.eq.s32.totalorder %s40, 0
      %p482 = por %p480, %p481
      %p483 = scmp.ne.s32.totalorder %s472, %s475
      %p484 = scmp.eq.s32.totalorder %s45, 1
      %p485 = por %p483, %p484
      %p486 = scmp.ne.s32.totalorder %s475, %s476
      %p487 = scmp.eq.s32.totalorder %s45, 0
      %p488 = por %p486, %p487
      %p489 = scmp.ne.s32.totalorder %s475, %s476
      %p490 = scmp.eq.s32.totalorder %s46, 1
      %p491 = por %p489, %p490
      %p493 = scmp.ne.s32.totalorder %s476, %s492
      %p494 = scmp.eq.s32.totalorder %s46, 0
      %p495 = por %p493, %p494
      %s496 = ssub.s32 %s40, %s47
      %p497 = scmp.eq.s32.totalorder %s496, 0
      %s499 = sadd.s32 %s498, 1
      %s500 = scalar_select %p497, %s498, %s499
      %p503 = pneg %p497
      %p504 = scmp.eq.s32.totalorder %s40, 1
      %p505 = por %p503, %p504
      %p506 = scmp.ne.s32.totalorder %s498, %s501
      %p507 = scmp.eq.s32.totalorder %s40, 0
      %p508 = por %p506, %p507
      %p509 = scmp.ne.s32.totalorder %s498, %s501
      %p510 = scmp.eq.s32.totalorder %s45, 1
      %p511 = por %p509, %p510
      %p512 = scmp.ne.s32.totalorder %s501, %s502
      %p513 = scmp.eq.s32.totalorder %s45, 0
      %p514 = por %p512, %p513
      %p515 = scmp.ne.s32.totalorder %s501, %s502
      %p516 = scmp.eq.s32.totalorder %s46, 1
      %p517 = por %p515, %p516
      %p519 = scmp.ne.s32.totalorder %s502, %s518
      %p520 = scmp.eq.s32.totalorder %s46, 0
      %p521 = por %p519, %p520
      %s522 = ssub.s32 %s40, %s47
      %p523 = scmp.eq.s32.totalorder %s522, 0
      %s525 = sadd.s32 %s524, 1
      %s526 = scalar_select %p523, %s524, %s525
      %p529 = pneg %p523
      %p530 = scmp.eq.s32.totalorder %s40, 1
      %p531 = por %p529, %p530
      %p532 = scmp.ne.s32.totalorder %s524, %s527
      %p533 = scmp.eq.s32.totalorder %s40, 0
      %p534 = por %p532, %p533
      %p535 = scmp.ne.s32.totalorder %s524, %s527
      %p536 = scmp.eq.s32.totalorder %s45, 1
      %p537 = por %p535, %p536
      %p538 = scmp.ne.s32.totalorder %s527, %s528
      %p539 = scmp.eq.s32.totalorder %s45, 0
      %p540 = por %p538, %p539
      %p541 = scmp.ne.s32.totalorder %s527, %s528
      %p542 = scmp.eq.s32.totalorder %s46, 1
      %p543 = por %p541, %p542
      %p545 = scmp.ne.s32.totalorder %s528, %s544
      %p546 = scmp.eq.s32.totalorder %s46, 0
      %p547 = por %p545, %p546
      %s548 = ssub.s32 %s40, %s47
      %p549 = scmp.eq.s32.totalorder %s548, 0
      %s551 = sadd.s32 %s550, 1
      %s552 = scalar_select %p549, %s550, %s551
      %p555 = pneg %p549
      %p556 = scmp.eq.s32.totalorder %s40, 1
      %p557 = por %p555, %p556
      %p558 = scmp.ne.s32.totalorder %s550, %s553
      %p559 = scmp.eq.s32.totalorder %s40, 0
      %p560 = por %p558, %p559
      %p561 = scmp.ne.s32.totalorder %s550, %s553
      %p562 = scmp.eq.s32.totalorder %s45, 1
      %p563 = por %p561, %p562
      %p564 = scmp.ne.s32.totalorder %s553, %s554
      %p565 = scmp.eq.s32.totalorder %s45, 0
      %p566 = por %p564, %p565
      %p567 = scmp.ne.s32.totalorder %s553, %s554
      %p568 = scmp.eq.s32.totalorder %s46, 1
      %p569 = por %p567, %p568
      %p571 = scmp.ne.s32.totalorder %s554, %s570
      %p572 = scmp.eq.s32.totalorder %s46, 0
      %p573 = por %p571, %p572
      %s574 = ssub.s32 %s40, %s47
      %p575 = scmp.eq.s32.totalorder %s574, 0
      %s577 = sadd.s32 %s576, 1
      %s578 = scalar_select %p575, %s576, %s577
      %p581 = pneg %p575
      %p582 = scmp.eq.s32.totalorder %s40, 1
      %p583 = por %p581, %p582
      %p584 = scmp.ne.s32.totalorder %s576, %s579
      %p585 = scmp.eq.s32.totalorder %s40, 0
      %p586 = por %p584, %p585
      %p587 = scmp.ne.s32.totalorder %s576, %s579
      %p588 = scmp.eq.s32.totalorder %s45, 1
      %p589 = por %p587, %p588
      %p590 = scmp.ne.s32.totalorder %s579, %s580
      %p591 = scmp.eq.s32.totalorder %s45, 0
      %p592 = por %p590, %p591
      %p593 = scmp.ne.s32.totalorder %s579, %s580
      %p594 = scmp.eq.s32.totalorder %s46, 1
      %p595 = por %p593, %p594
      %p597 = scmp.ne.s32.totalorder %s580, %s596
      %p598 = scmp.eq.s32.totalorder %s46, 0
      %p599 = por %p597, %p598
      %s600 = ssub.s32 %s40, %s47
      %p601 = scmp.eq.s32.totalorder %s600, 0
      %s603 = sadd.s32 %s602, 1
      %s604 = scalar_select %p601, %s602, %s603
      %p607 = pneg %p601
      %p608 = scmp.eq.s32.totalorder %s40, 1
      %p609 = por %p607, %p608
      %p610 = scmp.ne.s32.totalorder %s602, %s605
      %p611 = scmp.eq.s32.totalorder %s40, 0
      %p612 = por %p610, %p611
      %p613 = scmp.ne.s32.totalorder %s602, %s605
      %p614 = scmp.eq.s32.totalorder %s45, 1
      %p615 = por %p613, %p614
      %p616 = scmp.ne.s32.totalorder %s605, %s606
      %p617 = scmp.eq.s32.totalorder %s45, 0
      %p618 = por %p616, %p617
      %p619 = scmp.ne.s32.totalorder %s605, %s606
      %p620 = scmp.eq.s32.totalorder %s46, 1
      %p621 = por %p619, %p620
      %p623 = scmp.ne.s32.totalorder %s606, %s622
      %p624 = scmp.eq.s32.totalorder %s46, 0
      %p625 = por %p623, %p624
      %s626 = ssub.s32 %s40, %s47
      %p627 = scmp.eq.s32.totalorder %s626, 0
      %s629 = sadd.s32 %s628, 1
      %s630 = scalar_select %p627, %s628, %s629
      %p633 = pneg %p627
      %p634 = scmp.eq.s32.totalorder %s40, 1
      %p635 = por %p633, %p634
      %p636 = scmp.ne.s32.totalorder %s628, %s631
      %p637 = scmp.eq.s32.totalorder %s40, 0
      %p638 = por %p636, %p637
      %p639 = scmp.ne.s32.totalorder %s628, %s631
      %p640 = scmp.eq.s32.totalorder %s45, 1
      %p641 = por %p639, %p640
      %p642 = scmp.ne.s32.totalorder %s631, %s632
      %p643 = scmp.eq.s32.totalorder %s45, 0
      %p644 = por %p642, %p643
      %p645 = scmp.ne.s32.totalorder %s631, %s632
      %p646 = scmp.eq.s32.totalorder %s46, 1
      %p647 = por %p645, %p646
      %p649 = scmp.ne.s32.totalorder %s632, %s648
      %p650 = scmp.eq.s32.totalorder %s46, 0
      %p651 = por %p649, %p650
      %s653 = sadd.s32 %s652, 1
      %p656 = scmp.eq.s32.totalorder %s40, 1
      %p657 = scmp.ne.s32.totalorder %s652, %s654
      %p658 = scmp.eq.s32.totalorder %s40, 0
      %p659 = por %p657, %p658
      %p660 = scmp.ne.s32.totalorder %s652, %s654
      %p661 = scmp.eq.s32.totalorder %s45, 1
      %p662 = por %p660, %p661
      %p663 = scmp.ne.s32.totalorder %s654, %s655
      %p664 = scmp.eq.s32.totalorder %s45, 0
      %p665 = por %p663, %p664
      %p666 = scmp.ne.s32.totalorder %s654, %s655
      %p667 = scmp.eq.s32.totalorder %s46, 1
      %p668 = por %p666, %p667
      %p670 = scmp.ne.s32.totalorder %s655, %s669
      %p671 = scmp.eq.s32.totalorder %s46, 0
      %p672 = por %p670, %p671
      %s673 = ssub.s32 %s40, %s47
      %p674 = scmp.eq.s32.totalorder %s673, 0
      %s676 = sadd.s32 %s675, 1
      %s677 = scalar_select %p674, %s675, %s676
      %p680 = pneg %p674
      %p681 = scmp.eq.s32.totalorder %s40, 1
      %p682 = por %p680, %p681
      %p683 = scmp.ne.s32.totalorder %s675, %s678
      %p684 = scmp.eq.s32.totalorder %s40, 0
      %p685 = por %p683, %p684
      %p686 = scmp.ne.s32.totalorder %s675, %s678
      %p687 = scmp.eq.s32.totalorder %s45, 1
      %p688 = por %p686, %p687
      %p689 = scmp.ne.s32.totalorder %s678, %s679
      %p690 = scmp.eq.s32.totalorder %s45, 0
      %p691 = por %p689, %p690
      %p692 = scmp.ne.s32.totalorder %s678, %s679
      %p693 = scmp.eq.s32.totalorder %s46, 1
      %p694 = por %p692, %p693
      %p696 = scmp.ne.s32.totalorder %s679, %s695
      %p697 = scmp.eq.s32.totalorder %s46, 0
      %p698 = por %p696, %p697
      %s699 = ssub.s32 %s40, %s47
      %p700 = scmp.eq.s32.totalorder %s699, 0
      %s702 = sadd.s32 %s701, 1
      %s703 = scalar_select %p700, %s701, %s702
      %p706 = pneg %p700
      %p707 = scmp.eq.s32.totalorder %s40, 1
      %p708 = por %p706, %p707
      %p709 = scmp.ne.s32.totalorder %s701, %s704
      %p710 = scmp.eq.s32.totalorder %s40, 0
      %p711 = por %p709, %p710
      %p712 = scmp.ne.s32.totalorder %s701, %s704
      %p713 = scmp.eq.s32.totalorder %s45, 1
      %p714 = por %p712, %p713
      %p715 = scmp.ne.s32.totalorder %s704, %s705
      %p716 = scmp.eq.s32.totalorder %s45, 0
      %p717 = por %p715, %p716
      %p718 = scmp.ne.s32.totalorder %s704, %s705
      %p719 = scmp.eq.s32.totalorder %s46, 1
      %p720 = por %p718, %p719
      %p722 = scmp.ne.s32.totalorder %s705, %s721
      %p723 = scmp.eq.s32.totalorder %s46, 0
      %p724 = por %p722, %p723
      %p725 = scmp.le.s32.totalorder 1, %s40
      %p726 = scmp.lt.s32.totalorder %s40, 3
      %p727 = pnand %p725, %p726
      %p728 = pneg %p727
      // Predicated region
      $region9: #{tpu_custom_call.1} parent=5 // pred_check
        _
      $region10: #{tpu_custom_call.1} parent=5 // pred_check_branch
        %730 = sbr.rel (%p727) target = $region12
      $region11: #{tpu_custom_call.1} parent=5 // pred_region
        %s731 = ssub.s32 %s40, 1
        // Predicated region
        $region13: #{tpu_custom_call.1} parent=11 // pred_check
          %p732 = pneg %p61
        $region14: #{tpu_custom_call.1} parent=11 // pred_check_branch
          %734 = sbr.rel (%p732) target = $region16
        $region15: #{tpu_custom_call.1} parent=11 // pred_region
          %736 = vsyncadd [#allocation3], 0
          %s737 = sshll.u32 %s0, 4
          %s738 = int_to_ptr.hbm [resolvable:$true] %s737
          %s739 = sshll.u32 [#allocation2], 4
          %s740 = int_to_ptr.vmem [resolvable:$true] %s739
          %745 = dma.hbm_to_vmem [thread:$0]  %s738, 256, %s740, [#allocation3], 128, 128, 8
        $region16: #{tpu_custom_call.1} parent=11 // pred_fallthru
          _
        // Predicated region
        $region17: #{tpu_custom_call.1} parent=11 // pred_check
          %p746 = pneg %p82
        $region18: #{tpu_custom_call.1} parent=11 // pred_check_branch
          %748 = sbr.rel (%p746) target = $region20
        $region19: #{tpu_custom_call.1} parent=11 // pred_region
          %750 = vsyncadd [#allocation6], 0
          %s751 = sshll.u32 %s1, 4
          %s752 = int_to_ptr.hbm [resolvable:$true] %s751
          %s753 = sshll.u32 [#allocation5], 4
          %s754 = int_to_ptr.vmem [resolvable:$true] %s753
          %759 = dma.hbm_to_vmem [thread:$0]  %s752, 256, %s754, [#allocation6], 64, 64, 4
        $region20: #{tpu_custom_call.1} parent=11 // pred_fallthru
          _
        // Predicated region
        $region21: #{tpu_custom_call.1} parent=11 // pred_check
          %p760 = pneg %p103
        $region22: #{tpu_custom_call.1} parent=11 // pred_check_branch
          %762 = sbr.rel (%p760) target = $region24
        $region23: #{tpu_custom_call.1} parent=11 // pred_region
          %764 = vsyncadd [#allocation6], 0
          %s766 = sshll.u32 %s2, 4
          %s767 = int_to_ptr.hbm [resolvable:$true] %s766
          %s768 = sshll.u32 [#allocation7], 4
          %s769 = int_to_ptr.vmem [resolvable:$true] %s768
          %771 = dma.hbm_to_vmem [thread:$0]  %s767, 128, %s769, [#allocation6]
        $region24: #{tpu_custom_call.1} parent=11 // pred_fallthru
          _
        // Predicated region
        $region25: #{tpu_custom_call.1} parent=11 // pred_check
          %p772 = pneg %p124
        $region26: #{tpu_custom_call.1} parent=11 // pred_check_branch
          %774 = sbr.rel (%p772) target = $region28
        $region27: #{tpu_custom_call.1} parent=11 // pred_region
          %776 = vsyncadd [#allocation9], 0
          %s778 = sshll.u32 %s3, 4
          %s779 = int_to_ptr.hbm [resolvable:$true] %s778
          %s780 = sshll.u32 [#allocation8], 4
          %s781 = int_to_ptr.vmem [resolvable:$true] %s780
          %783 = dma.hbm_to_vmem [thread:$0]  %s779, 128, %s781, [#allocation9]
        $region28: #{tpu_custom_call.1} parent=11 // pred_fallthru
          _
      $region12: #{tpu_custom_call.1} parent=5 // pred_fallthru
        _
      %p784 = scmp.lt.s32.totalorder %s40, 2
      // Predicated region
      $region29: #{tpu_custom_call.1} parent=5 // pred_check
        %p785 = pneg %p784
      $region30: #{tpu_custom_call.1} parent=5 // pred_check_branch
        %787 = sbr.rel (%p785) target = $region32
      $region31: #{tpu_custom_call.1} parent=5 // pred_region
        // Predicated region
        $region33: #{tpu_custom_call.1} parent=31 // pred_check
          %p788 = pneg %p144
        $region34: #{tpu_custom_call.1} parent=31 // pred_check_branch
          %790 = sbr.rel (%p788) target = $region36
        $region35: #{tpu_custom_call.1} parent=31 // pred_region
          %p791 = scmp.lt.s32.totalorder %s40, 1
          %s792 = scalar_select %p791, %s40, 1
          %s793 = smul.addr %s792, 4
          %s794 = smul.addr %s793, 4
          %s795 = scalar_lea.vmem %s4, %s794
        $region36: #{tpu_custom_call.1} parent=31 // pred_fallthru
          _
        // Predicated region
        $region37: #{tpu_custom_call.1} parent=31 // pred_check
          %p796 = pneg %p170
        $region38: #{tpu_custom_call.1} parent=31 // pred_check_branch
          %798 = sbr.rel (%p796) target = $region40
        $region39: #{tpu_custom_call.1} parent=31 // pred_region
          %p799 = scmp.lt.s32.totalorder %s40, 1
          %s800 = scalar_select %p799, %s40, 1
          %s801 = scalar_lea.vmem %s5, %s800
        $region40: #{tpu_custom_call.1} parent=31 // pred_fallthru
          _
        // Predicated region
        $region41: #{tpu_custom_call.1} parent=31 // pred_check
          %p802 = pneg %p196
        $region42: #{tpu_custom_call.1} parent=31 // pred_check_branch
          %804 = sbr.rel (%p802) target = $region44
        $region43: #{tpu_custom_call.1} parent=31 // pred_region
          %p805 = scmp.lt.s32.totalorder %s40, 1
          %s806 = scalar_select %p805, %s40, 1
          %s807 = smul.addr %s806, 4
          %s808 = smul.addr %s807, 4
          %s809 = scalar_lea.vmem %s6, %s808
        $region44: #{tpu_custom_call.1} parent=31 // pred_fallthru
          _
        // Predicated region
        $region45: #{tpu_custom_call.1} parent=31 // pred_check
          %p810 = pneg %p222
        $region46: #{tpu_custom_call.1} parent=31 // pred_check_branch
          %812 = sbr.rel (%p810) target = $region48
        $region47: #{tpu_custom_call.1} parent=31 // pred_region
          %p813 = scmp.lt.s32.totalorder %s40, 1
          %s814 = scalar_select %p813, %s40, 1
          %s815 = scalar_lea.vmem %s7, %s814
        $region48: #{tpu_custom_call.1} parent=31 // pred_fallthru
          _
        // Predicated region
        $region49: #{tpu_custom_call.1} parent=31 // pred_check
          %p816 = pneg %p248
        $region50: #{tpu_custom_call.1} parent=31 // pred_check_branch
          %818 = sbr.rel (%p816) target = $region52
        $region51: #{tpu_custom_call.1} parent=31 // pred_region
          %p819 = scmp.lt.s32.totalorder %s40, 1
          %s820 = scalar_select %p819, %s40, 1
          %s821 = scalar_lea.vmem %s8, %s820
        $region52: #{tpu_custom_call.1} parent=31 // pred_fallthru
          _
        // Predicated region
        $region53: #{tpu_custom_call.1} parent=31 // pred_check
          %p822 = pneg %p274
        $region54: #{tpu_custom_call.1} parent=31 // pred_check_branch
          %824 = sbr.rel (%p822) target = $region56
        $region55: #{tpu_custom_call.1} parent=31 // pred_region
          %s825 = sand.u32 %s40, 1
          %s826 = scalar_lea.sflag [#allocation3], %s825
          %s827 = sand.u32 %s264, 1
          %s828 = scalar_lea.vmem [#allocation10], %s827
          %830 = vsyncadd %s826, 0
          %s831 = scalar_lea.hbm %s9, %s40
          %s833 = sshll.u32 %s831, 4
          %s834 = int_to_ptr.hbm [resolvable:$true] %s833
          %s835 = sshll.u32 %s828, 4
          %s836 = int_to_ptr.vmem [resolvable:$true] %s835
          %838 = dma.hbm_to_vmem [thread:$0]  %s834, 16, %s836, %s826
        $region56: #{tpu_custom_call.1} parent=31 // pred_fallthru
          _
        // Predicated region
        $region57: #{tpu_custom_call.1} parent=31 // pred_check
          %p839 = pneg %p300
        $region58: #{tpu_custom_call.1} parent=31 // pred_check_branch
          %841 = sbr.rel (%p839) target = $region60
        $region59: #{tpu_custom_call.1} parent=31 // pred_region
          %p842 = scmp.lt.s32.totalorder %s40, 1
          %s843 = scalar_select %p842, %s40, 1
          %s844 = smul.addr %s843, 4
          %s845 = smul.addr %s844, 4
          %s846 = scalar_lea.vmem %s10, %s845
        $region60: #{tpu_custom_call.1} parent=31 // pred_fallthru
          _
        // Predicated region
        $region61: #{tpu_custom_call.1} parent=31 // pred_check
          %p847 = pneg %p326
        $region62: #{tpu_custom_call.1} parent=31 // pred_check_branch
          %849 = sbr.rel (%p847) target = $region64
        $region63: #{tpu_custom_call.1} parent=31 // pred_region
          %p850 = scmp.lt.s32.totalorder %s40, 1
          %s851 = scalar_select %p850, %s40, 1
          %s852 = scalar_lea.vmem %s11, %s851
        $region64: #{tpu_custom_call.1} parent=31 // pred_fallthru
          _
        // Predicated region
        $region65: #{tpu_custom_call.1} parent=31 // pred_check
          %p853 = pneg %p352
        $region66: #{tpu_custom_call.1} parent=31 // pred_check_branch
          %855 = sbr.rel (%p853) target = $region68
        $region67: #{tpu_custom_call.1} parent=31 // pred_region
          %s856 = sand.u32 %s40, 1
          %s857 = scalar_lea.sflag [#allocation3], %s856
          %s858 = sand.u32 %s342, 1
          %s859 = smul.addr %s858, 16
          %s860 = scalar_lea.vmem [#allocation11], %s859
          %862 = vsyncadd %s857, 0
          %s863 = smul.addr %s40, 4
          %s864 = smul.addr %s863, 4
          %s865 = scalar_lea.hbm %s12, %s864
          %s866 = sshll.u32 %s865, 4
          %s867 = int_to_ptr.hbm [resolvable:$true] %s866
          %s868 = sshll.u32 %s860, 4
          %s869 = int_to_ptr.vmem [resolvable:$true] %s868
          %874 = dma.hbm_to_vmem [thread:$0]  %s867, 256, %s869, %s857, 64, 64, 4
        $region68: #{tpu_custom_call.1} parent=31 // pred_fallthru
          _
        // Predicated region
        $region69: #{tpu_custom_call.1} parent=31 // pred_check
          %p875 = pneg %p378
        $region70: #{tpu_custom_call.1} parent=31 // pred_check_branch
          %877 = sbr.rel (%p875) target = $region72
        $region71: #{tpu_custom_call.1} parent=31 // pred_region
          %p878 = scmp.lt.s32.totalorder %s40, 1
          %s879 = scalar_select %p878, %s40, 1
          %s880 = scalar_lea.vmem %s13, %s879
        $region72: #{tpu_custom_call.1} parent=31 // pred_fallthru
          _
        // Predicated region
        $region73: #{tpu_custom_call.1} parent=31 // pred_check
          %p881 = pneg %p404
        $region74: #{tpu_custom_call.1} parent=31 // pred_check_branch
          %883 = sbr.rel (%p881) target = $region76
        $region75: #{tpu_custom_call.1} parent=31 // pred_region
          %s884 = sand.u32 %s40, 1
          %s885 = scalar_lea.sflag [#allocation3], %s884
          %s886 = sand.u32 %s394, 1
          %s887 = smul.addr %s886, 16
          %s888 = scalar_lea.vmem [#allocation12], %s887
          %890 = vsyncadd %s885, 0
          %s891 = smul.addr %s40, 4
          %s892 = smul.addr %s891, 4
          %s893 = scalar_lea.hbm %s14, %s892
          %s894 = sshll.u32 %s893, 4
          %s895 = int_to_ptr.hbm [resolvable:$true] %s894
          %s896 = sshll.u32 %s888, 4
          %s897 = int_to_ptr.vmem [resolvable:$true] %s896
          %902 = dma.hbm_to_vmem [thread:$0]  %s895, 256, %s897, %s885, 64, 64, 4
        $region76: #{tpu_custom_call.1} parent=31 // pred_fallthru
          _
        // Predicated region
        $region77: #{tpu_custom_call.1} parent=31 // pred_check
          %p903 = pneg %p430
        $region78: #{tpu_custom_call.1} parent=31 // pred_check_branch
          %905 = sbr.rel (%p903) target = $region80
        $region79: #{tpu_custom_call.1} parent=31 // pred_region
          %p906 = scmp.lt.s32.totalorder %s40, 1
          %s907 = scalar_select %p906, %s40, 1
          %s908 = scalar_lea.vmem %s15, %s907
        $region80: #{tpu_custom_call.1} parent=31 // pred_fallthru
          _
        // Predicated region
        $region81: #{tpu_custom_call.1} parent=31 // pred_check
          %p909 = pneg %p456
        $region82: #{tpu_custom_call.1} parent=31 // pred_check_branch
          %911 = sbr.rel (%p909) target = $region84
        $region83: #{tpu_custom_call.1} parent=31 // pred_region
          %p912 = scmp.lt.s32.totalorder %s40, 1
          %s913 = scalar_select %p912, %s40, 1
          %s914 = scalar_lea.vmem %s16, %s913
        $region84: #{tpu_custom_call.1} parent=31 // pred_fallthru
          _
        // Predicated region
        $region85: #{tpu_custom_call.1} parent=31 // pred_check
          %p915 = pneg %p482
        $region86: #{tpu_custom_call.1} parent=31 // pred_check_branch
          %917 = sbr.rel (%p915) target = $region88
        $region87: #{tpu_custom_call.1} parent=31 // pred_region
          %s918 = sand.u32 %s40, 1
          %s919 = scalar_lea.sflag [#allocation3], %s918
          %s920 = sand.u32 %s472, 1
          %s921 = scalar_lea.vmem [#allocation13], %s920
          %923 = vsyncadd %s919, 0
          %s924 = scalar_lea.hbm %s17, %s40
          %s926 = sshll.u32 %s924, 4
          %s927 = int_to_ptr.hbm [resolvable:$true] %s926
          %s928 = sshll.u32 %s921, 4
          %s929 = int_to_ptr.vmem [resolvable:$true] %s928
          %931 = dma.hbm_to_vmem [thread:$0]  %s927, 16, %s929, %s919
        $region88: #{tpu_custom_call.1} parent=31 // pred_fallthru
          _
        // Predicated region
        $region89: #{tpu_custom_call.1} parent=31 // pred_check
          %p932 = pneg %p508
        $region90: #{tpu_custom_call.1} parent=31 // pred_check_branch
          %934 = sbr.rel (%p932) target = $region92
        $region91: #{tpu_custom_call.1} parent=31 // pred_region
          %s935 = sand.u32 %s40, 1
          %s936 = scalar_lea.sflag [#allocation3], %s935
          %s937 = sand.u32 %s498, 1
          %s938 = smul.addr %s937, 16
          %s939 = scalar_lea.vmem [#allocation14], %s938
          %941 = vsyncadd %s936, 0
          %s942 = smul.addr %s40, 4
          %s943 = smul.addr %s942, 4
          %s944 = scalar_lea.hbm %s18, %s943
          %s945 = sshll.u32 %s944, 4
          %s946 = int_to_ptr.hbm [resolvable:$true] %s945
          %s947 = sshll.u32 %s939, 4
          %s948 = int_to_ptr.vmem [resolvable:$true] %s947
          %953 = dma.hbm_to_vmem [thread:$0]  %s946, 256, %s948, %s936, 64, 64, 4
        $region92: #{tpu_custom_call.1} parent=31 // pred_fallthru
          _
        // Predicated region
        $region93: #{tpu_custom_call.1} parent=31 // pred_check
          %p954 = pneg %p534
        $region94: #{tpu_custom_call.1} parent=31 // pred_check_branch
          %956 = sbr.rel (%p954) target = $region96
        $region95: #{tpu_custom_call.1} parent=31 // pred_region
          %p957 = scmp.lt.s32.totalorder %s40, 1
          %s958 = scalar_select %p957, %s40, 1
          %s959 = scalar_lea.vmem %s19, %s958
        $region96: #{tpu_custom_call.1} parent=31 // pred_fallthru
          _
        // Predicated region
        $region97: #{tpu_custom_call.1} parent=31 // pred_check
          %p960 = pneg %p560
        $region98: #{tpu_custom_call.1} parent=31 // pred_check_branch
          %962 = sbr.rel (%p960) target = $region100
        $region99: #{tpu_custom_call.1} parent=31 // pred_region
          %p963 = scmp.lt.s32.totalorder %s40, 1
          %s964 = scalar_select %p963, %s40, 1
          %s965 = smul.addr %s964, 8
          %s966 = smul.addr %s965, 4
          %s967 = scalar_lea.vmem %s20, %s966
        $region100: #{tpu_custom_call.1} parent=31 // pred_fallthru
          _
        // Predicated region
        $region101: #{tpu_custom_call.1} parent=31 // pred_check
          %p968 = pneg %p586
        $region102: #{tpu_custom_call.1} parent=31 // pred_check_branch
          %970 = sbr.rel (%p968) target = $region104
        $region103: #{tpu_custom_call.1} parent=31 // pred_region
          %p971 = scmp.lt.s32.totalorder %s40, 1
          %s972 = scalar_select %p971, %s40, 1
          %s973 = scalar_lea.vmem %s21, %s972
        $region104: #{tpu_custom_call.1} parent=31 // pred_fallthru
          _
        // Predicated region
        $region105: #{tpu_custom_call.1} parent=31 // pred_check
          %p974 = pneg %p612
        $region106: #{tpu_custom_call.1} parent=31 // pred_check_branch
          %976 = sbr.rel (%p974) target = $region108
        $region107: #{tpu_custom_call.1} parent=31 // pred_region
          %p977 = scmp.lt.s32.totalorder %s40, 1
          %s978 = scalar_select %p977, %s40, 1
          %s979 = scalar_lea.vmem %s22, %s978
        $region108: #{tpu_custom_call.1} parent=31 // pred_fallthru
          _
        // Predicated region
        $region109: #{tpu_custom_call.1} parent=31 // pred_check
          %p980 = pneg %p638
        $region110: #{tpu_custom_call.1} parent=31 // pred_check_branch
          %982 = sbr.rel (%p980) target = $region112
        $region111: #{tpu_custom_call.1} parent=31 // pred_region
          %s983 = sand.u32 %s40, 1
          %s984 = scalar_lea.sflag [#allocation3], %s983
          %s985 = sand.u32 %s628, 1
          %s986 = scalar_lea.vmem [#allocation15], %s985
          %988 = vsyncadd %s984, 0
          %s989 = scalar_lea.hbm %s23, %s40
          %s991 = sshll.u32 %s989, 4
          %s992 = int_to_ptr.hbm [resolvable:$true] %s991
          %s993 = sshll.u32 %s986, 4
          %s994 = int_to_ptr.vmem [resolvable:$true] %s993
          %996 = dma.hbm_to_vmem [thread:$0]  %s992, 16, %s994, %s984
        $region112: #{tpu_custom_call.1} parent=31 // pred_fallthru
          _
      $region32: #{tpu_custom_call.1} parent=5 // pred_fallthru
        _
      %p997 = scmp.le.s32.totalorder 1, %s40
      %p998 = scmp.lt.s32.totalorder %s40, 3
      %p999 = pnand %p997, %p998
      %p1000 = pneg %p999
      // Predicated region
      $region113: #{tpu_custom_call.1} parent=5 // pred_check
        _
      $region114: #{tpu_custom_call.1} parent=5 // pred_check_branch
        %1002 = sbr.rel (%p999) target = $region116
      $region115: #{tpu_custom_call.1} parent=5 // pred_region
        %s1003 = ssub.s32 %s40, 1
        // Predicated region
        $region117: #{tpu_custom_call.1} parent=115 // pred_check
          %p1004 = pneg %p61
        $region118: #{tpu_custom_call.1} parent=115 // pred_check_branch
          %1006 = sbr.rel (%p1004) target = $region120
        $region119: #{tpu_custom_call.1} parent=115 // pred_region
          %1008 = dma.done [#allocation3], 256
        $region120: #{tpu_custom_call.1} parent=115 // pred_fallthru
          _
        // Predicated region
        $region121: #{tpu_custom_call.1} parent=115 // pred_check
          %p1009 = pneg %p82
        $region122: #{tpu_custom_call.1} parent=115 // pred_check_branch
          %1011 = sbr.rel (%p1009) target = $region124
        $region123: #{tpu_custom_call.1} parent=115 // pred_region
          %1013 = dma.done [#allocation6], 256
        $region124: #{tpu_custom_call.1} parent=115 // pred_fallthru
          _
        // Predicated region
        $region125: #{tpu_custom_call.1} parent=115 // pred_check
          %p1014 = pneg %p103
        $region126: #{tpu_custom_call.1} parent=115 // pred_check_branch
          %1016 = sbr.rel (%p1014) target = $region128
        $region127: #{tpu_custom_call.1} parent=115 // pred_region
          %1018 = dma.done [#allocation6], 128
        $region128: #{tpu_custom_call.1} parent=115 // pred_fallthru
          _
        // Predicated region
        $region129: #{tpu_custom_call.1} parent=115 // pred_check
          %p1019 = pneg %p124
        $region130: #{tpu_custom_call.1} parent=115 // pred_check_branch
          %1021 = sbr.rel (%p1019) target = $region132
        $region131: #{tpu_custom_call.1} parent=115 // pred_region
          %1023 = dma.done [#allocation9], 128
        $region132: #{tpu_custom_call.1} parent=115 // pred_fallthru
          _
        %s1024 = sand.u32 %s45, 1
        %s1025 = scalar_lea.sflag [#allocation3], %s1024
        %s1026 = sand.u32 %s267, 1
        %s1027 = scalar_lea.vmem [#allocation10], %s1026
        // Predicated region
        $region133: #{tpu_custom_call.1} parent=115 // pred_check
          %p1028 = pneg %p280
        $region134: #{tpu_custom_call.1} parent=115 // pred_check_branch
          %1030 = sbr.rel (%p1028) target = $region136
        $region135: #{tpu_custom_call.1} parent=115 // pred_region
          %1032 = dma.done %s1025, 16
        $region136: #{tpu_custom_call.1} parent=115 // pred_fallthru
          _
        %s1033 = sand.u32 %s45, 1
        %s1034 = scalar_lea.sflag [#allocation3], %s1033
        %s1035 = sand.u32 %s345, 1
        %s1036 = smul.addr %s1035, 16
        %s1037 = scalar_lea.vmem [#allocation11], %s1036
        // Predicated region
        $region137: #{tpu_custom_call.1} parent=115 // pred_check
          %p1038 = pneg %p358
        $region138: #{tpu_custom_call.1} parent=115 // pred_check_branch
          %1040 = sbr.rel (%p1038) target = $region140
        $region139: #{tpu_custom_call.1} parent=115 // pred_region
          %1042 = dma.done %s1034, 256
        $region140: #{tpu_custom_call.1} parent=115 // pred_fallthru
          _
        %s1043 = sand.u32 %s45, 1
        %s1044 = scalar_lea.sflag [#allocation3], %s1043
        %s1045 = sand.u32 %s397, 1
        %s1046 = smul.addr %s1045, 16
        %s1047 = scalar_lea.vmem [#allocation12], %s1046
        // Predicated region
        $region141: #{tpu_custom_call.1} parent=115 // pred_check
          %p1048 = pneg %p410
        $region142: #{tpu_custom_call.1} parent=115 // pred_check_branch
          %1050 = sbr.rel (%p1048) target = $region144
        $region143: #{tpu_custom_call.1} parent=115 // pred_region
          %1052 = dma.done %s1044, 256
        $region144: #{tpu_custom_call.1} parent=115 // pred_fallthru
          _
        %s1053 = sand.u32 %s45, 1
        %s1054 = scalar_lea.sflag [#allocation3], %s1053
        %s1055 = sand.u32 %s475, 1
        %s1056 = scalar_lea.vmem [#allocation13], %s1055
        // Predicated region
        $region145: #{tpu_custom_call.1} parent=115 // pred_check
          %p1057 = pneg %p488
        $region146: #{tpu_custom_call.1} parent=115 // pred_check_branch
          %1059 = sbr.rel (%p1057) target = $region148
        $region147: #{tpu_custom_call.1} parent=115 // pred_region
          %1061 = dma.done %s1054, 16
        $region148: #{tpu_custom_call.1} parent=115 // pred_fallthru
          _
        %s1062 = sand.u32 %s45, 1
        %s1063 = scalar_lea.sflag [#allocation3], %s1062
        %s1064 = sand.u32 %s501, 1
        %s1065 = smul.addr %s1064, 16
        %s1066 = scalar_lea.vmem [#allocation14], %s1065
        // Predicated region
        $region149: #{tpu_custom_call.1} parent=115 // pred_check
          %p1067 = pneg %p514
        $region150: #{tpu_custom_call.1} parent=115 // pred_check_branch
          %1069 = sbr.rel (%p1067) target = $region152
        $region151: #{tpu_custom_call.1} parent=115 // pred_region
          %1071 = dma.done %s1063, 256
        $region152: #{tpu_custom_call.1} parent=115 // pred_fallthru
          _
        %s1072 = sand.u32 %s45, 1
        %s1073 = scalar_lea.sflag [#allocation3], %s1072
        %s1074 = sand.u32 %s631, 1
        %s1075 = scalar_lea.vmem [#allocation15], %s1074
        // Predicated region
        $region153: #{tpu_custom_call.1} parent=115 // pred_check
          %p1076 = pneg %p644
        $region154: #{tpu_custom_call.1} parent=115 // pred_check_branch
          %1078 = sbr.rel (%p1076) target = $region156
        $region155: #{tpu_custom_call.1} parent=115 // pred_region
          %1080 = dma.done %s1073, 16
        $region156: #{tpu_custom_call.1} parent=115 // pred_fallthru
          _
        %p1081 = pneg %p61
        %p1082 = pneg %p58
        %p1083 = pneg %p82
        %p1084 = pneg %p79
        %p1085 = pneg %p103
        %p1086 = pneg %p100
        %p1087 = pneg %p124
        %p1088 = pneg %p121
        %p1089 = scmp.lt.s32.totalorder %s45, 1
        %s1090 = scalar_select %p1089, %s45, 1
        %s1091 = smul.addr %s1090, 4
        %s1092 = smul.addr %s1091, 4
        %s1093 = scalar_lea.vmem %s4, %s1092
        %p1094 = pneg %p150
        %p1095 = pneg %p147
        %p1096 = scmp.lt.s32.totalorder %s45, 1
        %s1097 = scalar_select %p1096, %s45, 1
        %s1098 = scalar_lea.vmem %s5, %s1097
        %p1099 = pneg %p176
        %p1100 = pneg %p173
        %p1101 = scmp.lt.s32.totalorder %s45, 1
        %s1102 = scalar_select %p1101, %s45, 1
        %s1103 = smul.addr %s1102, 4
        %s1104 = smul.addr %s1103, 4
        %s1105 = scalar_lea.vmem %s6, %s1104
        %p1106 = pneg %p202
        %p1107 = pneg %p199
        %p1108 = scmp.lt.s32.totalorder %s45, 1
        %s1109 = scalar_select %p1108, %s45, 1
        %s1110 = scalar_lea.vmem %s7, %s1109
        %p1111 = pneg %p228
        %p1112 = pneg %p225
        %p1113 = scmp.lt.s32.totalorder %s45, 1
        %s1114 = scalar_select %p1113, %s45, 1
        %s1115 = scalar_lea.vmem %s8, %s1114
        %p1116 = pneg %p254
        %p1117 = pneg %p251
        %s1118 = sand.u32 %s45, 1
        %s1119 = scalar_lea.sflag [#allocation3], %s1118
        %s1120 = sand.u32 %s267, 1
        %s1121 = scalar_lea.vmem [#allocation10], %s1120
        %p1122 = pneg %p280
        %p1123 = pneg %p277
        %p1124 = scmp.lt.s32.totalorder %s45, 1
        %s1125 = scalar_select %p1124, %s45, 1
        %s1126 = smul.addr %s1125, 4
        %s1127 = smul.addr %s1126, 4
        %s1128 = scalar_lea.vmem %s10, %s1127
        %p1129 = pneg %p306
        %p1130 = pneg %p303
        %p1131 = scmp.lt.s32.totalorder %s45, 1
        %s1132 = scalar_select %p1131, %s45, 1
        %s1133 = scalar_lea.vmem %s11, %s1132
        %p1134 = pneg %p332
        %p1135 = pneg %p329
        %s1136 = sand.u32 %s45, 1
        %s1137 = scalar_lea.sflag [#allocation3], %s1136
        %s1138 = sand.u32 %s345, 1
        %s1139 = smul.addr %s1138, 16
        %s1140 = scalar_lea.vmem [#allocation11], %s1139
        %p1141 = pneg %p358
        %p1142 = pneg %p355
        %p1143 = scmp.lt.s32.totalorder %s45, 1
        %s1144 = scalar_select %p1143, %s45, 1
        %s1145 = scalar_lea.vmem %s13, %s1144
        %p1146 = pneg %p384
        %p1147 = pneg %p381
        %s1148 = sand.u32 %s45, 1
        %s1149 = scalar_lea.sflag [#allocation3], %s1148
        %s1150 = sand.u32 %s397, 1
        %s1151 = smul.addr %s1150, 16
        %s1152 = scalar_lea.vmem [#allocation12], %s1151
        %p1153 = pneg %p410
        %p1154 = pneg %p407
        %p1155 = scmp.lt.s32.totalorder %s45, 1
        %s1156 = scalar_select %p1155, %s45, 1
        %s1157 = scalar_lea.vmem %s15, %s1156
        %p1158 = pneg %p436
        %p1159 = pneg %p433
        %p1160 = scmp.lt.s32.totalorder %s45, 1
        %s1161 = scalar_select %p1160, %s45, 1
        %s1162 = scalar_lea.vmem %s16, %s1161
        %p1163 = pneg %p462
        %p1164 = pneg %p459
        %s1165 = sand.u32 %s45, 1
        %s1166 = scalar_lea.sflag [#allocation3], %s1165
        %s1167 = sand.u32 %s475, 1
        %s1168 = scalar_lea.vmem [#allocation13], %s1167
        %p1169 = pneg %p488
        %p1170 = pneg %p485
        %s1171 = sand.u32 %s45, 1
        %s1172 = scalar_lea.sflag [#allocation3], %s1171
        %s1173 = sand.u32 %s501, 1
        %s1174 = smul.addr %s1173, 16
        %s1175 = scalar_lea.vmem [#allocation14], %s1174
        %p1176 = pneg %p514
        %p1177 = pneg %p511
        %p1178 = scmp.lt.s32.totalorder %s45, 1
        %s1179 = scalar_select %p1178, %s45, 1
        %s1180 = scalar_lea.vmem %s19, %s1179
        %p1181 = pneg %p540
        %p1182 = pneg %p537
        %p1183 = scmp.lt.s32.totalorder %s45, 1
        %s1184 = scalar_select %p1183, %s45, 1
        %s1185 = smul.addr %s1184, 8
        %s1186 = smul.addr %s1185, 4
        %s1187 = scalar_lea.vmem %s20, %s1186
        %p1188 = pneg %p566
        %p1189 = pneg %p563
        %p1190 = scmp.lt.s32.totalorder %s45, 1
        %s1191 = scalar_select %p1190, %s45, 1
        %s1192 = scalar_lea.vmem %s21, %s1191
        %p1193 = pneg %p592
        %p1194 = pneg %p589
        %p1195 = scmp.lt.s32.totalorder %s45, 1
        %s1196 = scalar_select %p1195, %s45, 1
        %s1197 = scalar_lea.vmem %s22, %s1196
        %p1198 = pneg %p618
        %p1199 = pneg %p615
        %s1200 = sand.u32 %s45, 1
        %s1201 = scalar_lea.sflag [#allocation3], %s1200
        %s1202 = sand.u32 %s631, 1
        %s1203 = scalar_lea.vmem [#allocation15], %s1202
        %p1204 = pneg %p644
        %p1205 = pneg %p641
        %p1206 = pneg %p665
        %p1207 = pneg %p662
        %p1208 = pneg %p691
        %p1209 = pneg %p688
        %p1210 = scmp.lt.s32.totalorder %s45, 1
        %s1211 = scalar_select %p1210, %s45, 1
        %s1212 = smul.addr %s1211, 2
        %s1213 = smul.addr %s1212, 8
        %s1214 = scalar_lea.vmem %s25, %s1213
        %p1215 = pneg %p717
        %p1216 = pneg %p714
        %s1217 = sand.u32 %s704, 1
        %s1218 = scalar_lea.sflag [#allocation18], %s1217
        %s1219 = sand.u32 %s704, 1
        %s1220 = smul.addr %s1219, 16
        %s1221 = scalar_lea.vmem [#allocation17], %s1220
        %p1222 = scmp.lt.s32.totalorder %s45, 1
        %s1223 = scalar_select %p1222, %s45, 1
        %s1224 = smul.addr %s1223, 4
        %s1225 = smul.addr %s1224, 4
        %s1226 = scalar_lea.vmem %s4, %s1225
        %p1227 = scmp.lt.s32.totalorder %s45, 1
        %s1228 = scalar_select %p1227, %s45, 1
        %s1229 = scalar_lea.vmem %s5, %s1228
        %p1230 = scmp.lt.s32.totalorder %s45, 1
        %s1231 = scalar_select %p1230, %s45, 1
        %s1232 = smul.addr %s1231, 4
        %s1233 = smul.addr %s1232, 4
        %s1234 = scalar_lea.vmem %s6, %s1233
        %p1235 = scmp.lt.s32.totalorder %s45, 1
        %s1236 = scalar_select %p1235, %s45, 1
        %s1237 = scalar_lea.vmem %s7, %s1236
        %p1238 = scmp.lt.s32.totalorder %s45, 1
        %s1239 = scalar_select %p1238, %s45, 1
        %s1240 = scalar_lea.vmem %s8, %s1239
        %p1241 = scmp.lt.s32.totalorder %s45, 1
        %s1242 = scalar_select %p1241, %s45, 1
        %s1243 = smul.addr %s1242, 4
        %s1244 = smul.addr %s1243, 4
        %s1245 = scalar_lea.vmem %s10, %s1244
        %p1246 = scmp.lt.s32.totalorder %s45, 1
        %s1247 = scalar_select %p1246, %s45, 1
        %s1248 = scalar_lea.vmem %s11, %s1247
        %p1249 = scmp.lt.s32.totalorder %s45, 1
        %s1250 = scalar_select %p1249, %s45, 1
        %s1251 = scalar_lea.vmem %s13, %s1250
        %p1252 = scmp.lt.s32.totalorder %s45, 1
        %s1253 = scalar_select %p1252, %s45, 1
        %s1254 = scalar_lea.vmem %s15, %s1253
        %p1255 = scmp.lt.s32.totalorder %s45, 1
        %s1256 = scalar_select %p1255, %s45, 1
        %s1257 = scalar_lea.vmem %s16, %s1256
        %p1258 = scmp.lt.s32.totalorder %s45, 1
        %s1259 = scalar_select %p1258, %s45, 1
        %s1260 = scalar_lea.vmem %s19, %s1259
        %p1261 = scmp.lt.s32.totalorder %s45, 1
        %s1262 = scalar_select %p1261, %s45, 1
        %s1263 = smul.addr %s1262, 8
        %s1264 = smul.addr %s1263, 4
        %s1265 = scalar_lea.vmem %s20, %s1264
        %p1266 = scmp.lt.s32.totalorder %s45, 1
        %s1267 = scalar_select %p1266, %s45, 1
        %s1268 = scalar_lea.vmem %s21, %s1267
        %p1269 = scmp.lt.s32.totalorder %s45, 1
        %s1270 = scalar_select %p1269, %s45, 1
        %s1271 = scalar_lea.vmem %s22, %s1270
        %p1272 = scmp.lt.s32.totalorder %s45, 1
        %s1273 = scalar_select %p1272, %s45, 1
        %s1274 = smul.addr %s1273, 2
        %s1275 = smul.addr %s1274, 8
        %s1276 = scalar_lea.vmem %s25, %s1275
        %p1278 = scmp.eq.s32.totalorder %s45, 0
        // Predicated region
        $region157: #{tpu_custom_call.1} parent=115 // pred_check
          %p1279 = pneg %p1278
        $region158: #{tpu_custom_call.1} parent=115 // pred_check_branch
          %1281 = sbr.rel (%p1279) target = $region160
        $region159: #{tpu_custom_call.1} parent=115 // pred_region
          %v1282 = vld [vmem:[#allocation2] sm:$0xff]
          %v1283 = vld [vmem:[#allocation2 + $0x8] sm:$0xff]
          %vm1284 = vcmask 261120
          %1285 = vst.msk [vmem:[#allocation16] sm:$0xff] %vm1284, %v1282
          %1286 = vst.msk [vmem:[#allocation16 + $0x8] sm:$0xff] %vm1284, %v1283
        $region160: #{tpu_custom_call.1} parent=115 // pred_fallthru
          _
        %v1287 = vld [vmem:[#allocation16] sm:$0xff]
        %v1288 = vld [vmem:[#allocation16 + $0x8] sm:$0xff]
        %v1289 = vld [vmem:[#allocation5] sm:$0xf]
        %v1290 = vld [vmem:[#allocation5 + $0x4] sm:$0xf]
        %v1291 = vld [vmem:[#allocation5 + $0x8] sm:$0xf]
        %v1292 = vld [vmem:[#allocation5 + $0xc] sm:$0xf]
        %v1293 = vpack.c.bf16 %v1288, %v1287
        %v1294 = vld [vmem:[%s1226] sm:$0xf]
        %v1295 = vld [vmem:[%s1226 + $0x4] sm:$0xf]
        %v1296 = vld [vmem:[%s1226 + $0x8] sm:$0xf]
        %v1297 = vld [vmem:[%s1226 + $0xc] sm:$0xf]
        %v1298 = vld [vmem:[%s1229] sm:$0x1]
        %v1300 = vperm.slane %v1298, 0
        %v1306 = vunpack.c.l.b16 %v1294
        %v1307 = vunpack.c.l.b16 %v1295
        %v1308 = vunpack.c.l.b16 %v1296
        %v1309 = vunpack.c.l.b16 %v1297
        %v1310 = vpack.c.b16 %v1307, %v1306
        %v1311 = vpack.c.b16 %v1309, %v1308
        %vm1314 = vcmask 261120
        %v1316 = vsel %vm1314, %v1293, 0
        %1318 = vmatpush.bf16.msra.mxu0 0
        %1319 = vmatpush.bf16.msra.mxu0 0
        %1320 = vmatpush.bf16.msra.mxu0 0
        %1321 = vmatpush.bf16.msra.mxu0 0
        %1322 = vmatpush.bf16.msra.mxu0 0
        %1323 = vmatpush.bf16.msra.mxu0 0
        %1324 = vmatpush.bf16.msra.mxu0 %v1311
        %1325 = vmatpush.bf16.msra.mxu0 %v1310
        %1326 = vmatmul.bf16.gmra.mxu0 %v1316
        %v1327 = vpop.f32.mrf.mxu0
        %v1328 = vadd.f32 %v1300, %v1327
        %v1329 = vpop.f32.mrf.mxu0
        %v1330 = vadd.f32 %v1300, %v1329
        %1331 = vdwg.mxu0
        %v1332 = vpack.c.bf16 %v1328, %v1328
        %v1333 = vpack.c.bf16 %v1330, %v1330
        %v1334 = vld [vmem:[%s1234] sm:$0xf]
        %v1335 = vld [vmem:[%s1234 + $0x4] sm:$0xf]
        %v1336 = vld [vmem:[%s1234 + $0x8] sm:$0xf]
        %v1337 = vld [vmem:[%s1234 + $0xc] sm:$0xf]
        %v1338 = vld [vmem:[%s1237] sm:$0x1]
        %v1339 = vld [vmem:[#allocation7] sm:$0xff]
        %v1341 = vunpack.c.l.b16 %v1332
        %v1342 = vpack.c.b16 %v1341, %v1341
        %1343 = vrot.lane.b32.xlu0 %v1342, 96
        %v1344 = vpop.permute.xlu0 %1343
        %vm1345 = vcmask 64512
        %v1347 = vsel %vm1345, %v1332, 0
        %v1350 = vsel %vm1345, %v1344, 0
        %1352 = vmatpush.bf16.xpose.msra.mxu0 0
        %1353 = vmatpush.bf16.xpose.msra.mxu0 0
        %1354 = vmatpush.bf16.xpose.msra.mxu0 0
        %1355 = vmatpush.bf16.xpose.msra.mxu0 0
        %1356 = vmatpush.bf16.xpose.msra.mxu0 0
        %1357 = vmatpush.bf16.xpose.msra.mxu0 0
        %1358 = vmatpush.bf16.xpose.msra.mxu0 0
        %1359 = vmatpush.bf16.xpose.msra.mxu0 %v1350
        %1360 = vmatmul.bf16.gmra.mxu0 %v1347
        %v1361 = vpop.f32.mrf.mxu0
        %v1362 = vadd.f32 %v1339, %v1361
        %v1363 = vpop.f32.mrf.mxu0
        %1364 = vdwg.mxu0
        %v1366 = vunpack.c.l.b16 %v1333
        %v1367 = vpack.c.b16 %v1366, %v1366
        %1368 = vrot.lane.b32.xlu0 %v1367, 96
        %v1369 = vpop.permute.xlu0 %1368
        %v1371 = vsel %vm1345, %v1333, 0
        %v1374 = vsel %vm1345, %v1369, 0
        %1376 = vmatpush.bf16.xpose.msra.mxu0 0
        %1377 = vmatpush.bf16.xpose.msra.mxu0 0
        %1378 = vmatpush.bf16.xpose.msra.mxu0 0
        %1379 = vmatpush.bf16.xpose.msra.mxu0 0
        %1380 = vmatpush.bf16.xpose.msra.mxu0 0
        %1381 = vmatpush.bf16.xpose.msra.mxu0 0
        %1382 = vmatpush.bf16.xpose.msra.mxu0 0
        %1383 = vmatpush.bf16.xpose.msra.mxu0 %v1374
        %1384 = vmatmul.bf16.gmra.mxu0 %v1371
        %v1385 = vpop.f32.mrf.mxu0
        %v1386 = vadd.f32 %v1339, %v1385
        %v1387 = vpop.f32.mrf.mxu0
        %1388 = vdwg.mxu0
        %v1389 = vsel %vm1345, %v1362, -inf
        %1390 = vmax.xlane.f32.xlu0 %v1389
        %v1391 = vpop.xlane.xlu0 %1390
        %v1392 = vsel %vm1345, %v1386, -inf
        %1393 = vmax.xlane.f32.xlu0 %v1392
        %v1394 = vpop.xlane.xlu0 %1393
        %v1395 = vsub.f32 %v1362, %v1391
        %v1396 = vsub.f32 %v1386, %v1394
        %v1397 = vmul.f32 %v1395, 1.442695
        %v1398 = vpow.pop %v1397
        %v1399 = vmul.f32 %v1396, 1.442695
        %v1400 = vpow.pop %v1399
        %v1401 = vsel %vm1345, %v1398, 0.0
        %1402 = vadd.xlane.f32.xlu0 %v1401
        %v1403 = vpop.xlane.xlu0 %1402
        %v1404 = vsel %vm1345, %v1400, 0.0
        %1405 = vadd.xlane.f32.xlu0 %v1404
        %v1406 = vpop.xlane.xlu0 %1405
        %v1407 = vrcp.pop %v1403
        %v1408 = vmul.f32 %v1403, %v1407
        %v1409 = vsub.f32 1.0, %v1408
        %v1410 = vmul.f32 %v1407, %v1409
        %v1411 = vadd.f32 %v1407, %v1410
        %vm1412 = vweird.f32 %v1403
        %vm1413 = vweird.f32 %v1407
        %vm1414 = vmor %vm1412, %vm1413
        %v1415 = vsel %vm1414, %v1407, %v1411
        %v1416 = vand.u32 2147483647, %v1403
        %vm1417 = vcmp.eq.f32.partialorder %v1416, 8.507059e+37
        %v1418 = vand.u32 %v1403, 2147483648
        %v1419 = vor.u32 1.1754944e-38, %v1418
        %v1420 = vsel %vm1417, %v1419, %v1415
        %v1421 = vmul.f32 %v1398, %v1420
        %v1422 = vrcp.pop %v1406
        %v1423 = vmul.f32 %v1406, %v1422
        %v1424 = vsub.f32 1.0, %v1423
        %v1425 = vmul.f32 %v1422, %v1424
        %v1426 = vadd.f32 %v1422, %v1425
        %vm1427 = vweird.f32 %v1406
        %vm1428 = vweird.f32 %v1422
        %vm1429 = vmor %vm1427, %vm1428
        %v1430 = vsel %vm1429, %v1422, %v1426
        %v1431 = vand.u32 2147483647, %v1406
        %vm1432 = vcmp.eq.f32.partialorder %v1431, 8.507059e+37
        %v1433 = vand.u32 %v1406, 2147483648
        %v1434 = vor.u32 1.1754944e-38, %v1433
        %v1435 = vsel %vm1432, %v1434, %v1430
        %v1436 = vmul.f32 %v1400, %v1435
        %v1437 = vpack.c.bf16 %v1421, %v1421
        %v1438 = vpack.c.bf16 %v1436, %v1436
        %1439 = vrot.lane.b32.xlu0 %v1342, 64
        %v1440 = vpop.permute.xlu0 %1439
        %v1442 = vsel %vm1345, %v1437, 0
        %vm1444 = vcmask 1043456
        %v1446 = vsel %vm1444, %v1440, 0
        %1448 = vmatpush.bf16.msra.mxu0 0
        %1449 = vmatpush.bf16.msra.mxu0 0
        %1450 = vmatpush.bf16.msra.mxu0 0
        %1451 = vmatpush.bf16.msra.mxu0 0
        %1452 = vmatpush.bf16.msra.mxu0 0
        %1453 = vmatpush.bf16.msra.mxu0 0
        %1454 = vmatpush.bf16.msra.mxu0 0
        %1455 = vmatpush.bf16.msra.mxu0 %v1446
        %1456 = vmatmul.bf16.gmra.mxu0 %v1442
        %v1457 = vpop.f32.mrf.mxu0
        %v1458 = vadd.f32 0.0, %v1457
        %v1459 = vpop.f32.mrf.mxu0
        %1460 = vdwg.mxu0
        %1461 = vrot.lane.b32.xlu0 %v1367, 64
        %v1462 = vpop.permute.xlu0 %1461
        %v1464 = vsel %vm1345, %v1438, 0
        %v1467 = vsel %vm1444, %v1462, 0
        %1469 = vmatpush.bf16.msra.mxu0 0
        %1470 = vmatpush.bf16.msra.mxu0 0
        %1471 = vmatpush.bf16.msra.mxu0 0
        %1472 = vmatpush.bf16.msra.mxu0 0
        %1473 = vmatpush.bf16.msra.mxu0 0
        %1474 = vmatpush.bf16.msra.mxu0 0
        %1475 = vmatpush.bf16.msra.mxu0 0
        %1476 = vmatpush.bf16.msra.mxu0 %v1467
        %1477 = vmatmul.bf16.gmra.mxu0 %v1464
        %v1478 = vpop.f32.mrf.mxu0
        %v1479 = vadd.f32 0.0, %v1478
        %v1480 = vpop.f32.mrf.mxu0
        %1481 = vdwg.mxu0
        %v1482 = vpack.c.bf16 %v1479, %v1458
        %1483 = vrot.lane.b32.xlu0 %v1342, 120
        %v1484 = vpop.permute.xlu0 %1483
        %1485 = vrot.lane.b32.xlu0 %v1342, 88
        %v1486 = vpop.permute.xlu0 %1485
        %v1488 = vsel %vm1345, %v1484, 0
        %v1491 = vsel %vm1345, %v1486, 0
        %1493 = vmatpush.bf16.xpose.msra.mxu0 0
        %1494 = vmatpush.bf16.xpose.msra.mxu0 0
        %1495 = vmatpush.bf16.xpose.msra.mxu0 0
        %1496 = vmatpush.bf16.xpose.msra.mxu0 0
        %1497 = vmatpush.bf16.xpose.msra.mxu0 0
        %1498 = vmatpush.bf16.xpose.msra.mxu0 0
        %1499 = vmatpush.bf16.xpose.msra.mxu0 0
        %1500 = vmatpush.bf16.xpose.msra.mxu0 %v1491
        %1501 = vmatmul.bf16.gmra.mxu0 %v1488
        %v1502 = vpop.f32.mrf.mxu0
        %v1503 = vadd.f32 %v1339, %v1502
        %v1504 = vpop.f32.mrf.mxu0
        %1505 = vdwg.mxu0
        %1506 = vrot.lane.b32.xlu0 %v1367, 120
        %v1507 = vpop.permute.xlu0 %1506
        %1508 = vrot.lane.b32.xlu0 %v1367, 88
        %v1509 = vpop.permute.xlu0 %1508
        %v1511 = vsel %vm1345, %v1507, 0
        %v1514 = vsel %vm1345, %v1509, 0
        %1516 = vmatpush.bf16.xpose.msra.mxu0 0
        %1517 = vmatpush.bf16.xpose.msra.mxu0 0
        %1518 = vmatpush.bf16.xpose.msra.mxu0 0
        %1519 = vmatpush.bf16.xpose.msra.mxu0 0
        %1520 = vmatpush.bf16.xpose.msra.mxu0 0
        %1521 = vmatpush.bf16.xpose.msra.mxu0 0
        %1522 = vmatpush.bf16.xpose.msra.mxu0 0
        %1523 = vmatpush.bf16.xpose.msra.mxu0 %v1514
        %1524 = vmatmul.bf16.gmra.mxu0 %v1511
        %v1525 = vpop.f32.mrf.mxu0
        %v1526 = vadd.f32 %v1339, %v1525
        %v1527 = vpop.f32.mrf.mxu0
        %1528 = vdwg.mxu0
        %v1529 = vsel %vm1345, %v1503, -inf
        %1530 = vmax.xlane.f32.xlu0 %v1529
        %v1531 = vpop.xlane.xlu0 %1530
        %v1532 = vsel %vm1345, %v1526, -inf
        %1533 = vmax.xlane.f32.xlu0 %v1532
        %v1534 = vpop.xlane.xlu0 %1533
        %v1535 = vsub.f32 %v1503, %v1531
        %v1536 = vsub.f32 %v1526, %v1534
        %v1537 = vmul.f32 %v1535, 1.442695
        %v1538 = vpow.pop %v1537
        %v1539 = vmul.f32 %v1536, 1.442695
        %v1540 = vpow.pop %v1539
        %v1541 = vsel %vm1345, %v1538, 0.0
        %1542 = vadd.xlane.f32.xlu0 %v1541
        %v1543 = vpop.xlane.xlu0 %1542
        %v1544 = vsel %vm1345, %v1540, 0.0
        %1545 = vadd.xlane.f32.xlu0 %v1544
        %v1546 = vpop.xlane.xlu0 %1545
        %v1547 = vrcp.pop %v1543
        %v1548 = vmul.f32 %v1543, %v1547
        %v1549 = vsub.f32 1.0, %v1548
        %v1550 = vmul.f32 %v1547, %v1549
        %v1551 = vadd.f32 %v1547, %v1550
        %vm1552 = vweird.f32 %v1543
        %vm1553 = vweird.f32 %v1547
        %vm1554 = vmor %vm1552, %vm1553
        %v1555 = vsel %vm1554, %v1547, %v1551
        %v1556 = vand.u32 2147483647, %v1543
        %vm1557 = vcmp.eq.f32.partialorder %v1556, 8.507059e+37
        %v1558 = vand.u32 %v1543, 2147483648
        %v1559 = vor.u32 1.1754944e-38, %v1558
        %v1560 = vsel %vm1557, %v1559, %v1555
        %v1561 = vmul.f32 %v1538, %v1560
        %v1562 = vrcp.pop %v1546
        %v1563 = vmul.f32 %v1546, %v1562
        %v1564 = vsub.f32 1.0, %v1563
        %v1565 = vmul.f32 %v1562, %v1564
        %v1566 = vadd.f32 %v1562, %v1565
        %vm1567 = vweird.f32 %v1546
        %vm1568 = vweird.f32 %v1562
        %vm1569 = vmor %vm1567, %vm1568
        %v1570 = vsel %vm1569, %v1562, %v1566
        %v1571 = vand.u32 2147483647, %v1546
        %vm1572 = vcmp.eq.f32.partialorder %v1571, 8.507059e+37
        %v1573 = vand.u32 %v1546, 2147483648
        %v1574 = vor.u32 1.1754944e-38, %v1573
        %v1575 = vsel %vm1572, %v1574, %v1570
        %v1576 = vmul.f32 %v1540, %v1575
        %v1577 = vadd.f32 %v1421, %v1561
        %v1578 = vadd.f32 %v1436, %v1576
        %v1579 = vpack.c.bf16 %v1561, %v1561
        %v1580 = vpack.c.bf16 %v1576, %v1576
        %1581 = vrot.lane.b32.xlu0 %v1342, 56
        %v1582 = vpop.permute.xlu0 %1581
        %v1584 = vsel %vm1345, %v1579, 0
        %v1587 = vsel %vm1444, %v1582, 0
        %1589 = vmatpush.bf16.msra.mxu0 0
        %1590 = vmatpush.bf16.msra.mxu0 0
        %1591 = vmatpush.bf16.msra.mxu0 0
        %1592 = vmatpush.bf16.msra.mxu0 0
        %1593 = vmatpush.bf16.msra.mxu0 0
        %1594 = vmatpush.bf16.msra.mxu0 0
        %1595 = vmatpush.bf16.msra.mxu0 0
        %1596 = vmatpush.bf16.msra.mxu0 %v1587
        %1597 = vmatmul.bf16.gmra.mxu0 %v1584
        %v1598 = vpop.f32.mrf.mxu0
        %v1599 = vadd.f32 0.0, %v1598
        %v1600 = vpop.f32.mrf.mxu0
        %1601 = vdwg.mxu0
        %1602 = vrot.lane.b32.xlu0 %v1367, 56
        %v1603 = vpop.permute.xlu0 %1602
        %v1605 = vsel %vm1345, %v1580, 0
        %v1608 = vsel %vm1444, %v1603, 0
        %1610 = vmatpush.bf16.msra.mxu0 0
        %1611 = vmatpush.bf16.msra.mxu0 0
        %1612 = vmatpush.bf16.msra.mxu0 0
        %1613 = vmatpush.bf16.msra.mxu0 0
        %1614 = vmatpush.bf16.msra.mxu0 0
        %1615 = vmatpush.bf16.msra.mxu0 0
        %1616 = vmatpush.bf16.msra.mxu0 0
        %1617 = vmatpush.bf16.msra.mxu0 %v1608
        %1618 = vmatmul.bf16.gmra.mxu0 %v1605
        %v1619 = vpop.f32.mrf.mxu0
        %v1620 = vadd.f32 0.0, %v1619
        %v1621 = vpop.f32.mrf.mxu0
        %1622 = vdwg.mxu0
        %v1623 = vpack.c.bf16 %v1620, %v1599
        %v1625 = vsel %vm1345, %v1623, 0
        %v1628 = vsel %vm1444, %v1335, 0
        %1630 = vmatpush.bf16.msra.mxu0 0
        %1631 = vmatpush.bf16.msra.mxu0 0
        %1632 = vmatpush.bf16.msra.mxu0 0
        %1633 = vmatpush.bf16.msra.mxu0 0
        %1634 = vmatpush.bf16.msra.mxu0 0
        %1635 = vmatpush.bf16.msra.mxu0 0
        %1636 = vmatpush.bf16.msra.mxu0 0
        %1637 = vmatpush.bf16.msra.mxu0 %v1628
        %1638 = vmatmul.bf16.gmra.mxu0 %v1625
        %v1639 = vpop.f32.mrf.mxu0
        %v1640 = vadd.f32 0.0, %v1639
        %v1641 = vpop.f32.mrf.mxu0
        %v1642 = vadd.f32 0.0, %v1641
        %1643 = vdwg.mxu0
        %v1645 = vsel %vm1345, %v1482, 0
        %v1648 = vsel %vm1444, %v1334, 0
        %1650 = vmatpush.bf16.msra.mxu0 0
        %1651 = vmatpush.bf16.msra.mxu0 0
        %1652 = vmatpush.bf16.msra.mxu0 0
        %1653 = vmatpush.bf16.msra.mxu0 0
        %1654 = vmatpush.bf16.msra.mxu0 0
        %1655 = vmatpush.bf16.msra.mxu0 0
        %1656 = vmatpush.bf16.msra.mxu0 0
        %1657 = vmatpush.bf16.msra.mxu0 %v1648
        %1658 = vmatmul.bf16.gmra.mxu0 %v1645
        %v1659 = vpop.f32.mrf.mxu0
        %v1660 = vadd.f32 %v1640, %v1659
        %v1661 = vpop.f32.mrf.mxu0
        %v1662 = vadd.f32 %v1642, %v1661
        %1663 = vdwg.mxu0
        %1664 = vrot.lane.b32.xlu0 %v1342, 112
        %v1665 = vpop.permute.xlu0 %1664
        %1666 = vrot.lane.b32.xlu0 %v1342, 80
        %v1667 = vpop.permute.xlu0 %1666
        %v1669 = vsel %vm1345, %v1665, 0
        %v1672 = vsel %vm1345, %v1667, 0
        %1674 = vmatpush.bf16.xpose.msra.mxu0 0
        %1675 = vmatpush.bf16.xpose.msra.mxu0 0
        %1676 = vmatpush.bf16.xpose.msra.mxu0 0
        %1677 = vmatpush.bf16.xpose.msra.mxu0 0
        %1678 = vmatpush.bf16.xpose.msra.mxu0 0
        %1679 = vmatpush.bf16.xpose.msra.mxu0 0
        %1680 = vmatpush.bf16.xpose.msra.mxu0 0
        %1681 = vmatpush.bf16.xpose.msra.mxu0 %v1672
        %1682 = vmatmul.bf16.gmra.mxu0 %v1669
        %v1683 = vpop.f32.mrf.mxu0
        %v1684 = vadd.f32 %v1339, %v1683
        %v1685 = vpop.f32.mrf.mxu0
        %1686 = vdwg.mxu0
        %1687 = vrot.lane.b32.xlu0 %v1367, 112
        %v1688 = vpop.permute.xlu0 %1687
        %1689 = vrot.lane.b32.xlu0 %v1367, 80
        %v1690 = vpop.permute.xlu0 %1689
        %v1692 = vsel %vm1345, %v1688, 0
        %v1695 = vsel %vm1345, %v1690, 0
        %1697 = vmatpush.bf16.xpose.msra.mxu0 0
        %1698 = vmatpush.bf16.xpose.msra.mxu0 0
        %1699 = vmatpush.bf16.xpose.msra.mxu0 0
        %1700 = vmatpush.bf16.xpose.msra.mxu0 0
        %1701 = vmatpush.bf16.xpose.msra.mxu0 0
        %1702 = vmatpush.bf16.xpose.msra.mxu0 0
        %1703 = vmatpush.bf16.xpose.msra.mxu0 0
        %1704 = vmatpush.bf16.xpose.msra.mxu0 %v1695
        %1705 = vmatmul.bf16.gmra.mxu0 %v1692
        %v1706 = vpop.f32.mrf.mxu0
        %v1707 = vadd.f32 %v1339, %v1706
        %v1708 = vpop.f32.mrf.mxu0
        %1709 = vdwg.mxu0
        %v1710 = vsel %vm1345, %v1684, -inf
        %1711 = vmax.xlane.f32.xlu0 %v1710
        %v1712 = vpop.xlane.xlu0 %1711
        %v1713 = vsel %vm1345, %v1707, -inf
        %1714 = vmax.xlane.f32.xlu0 %v1713
        %v1715 = vpop.xlane.xlu0 %1714
        %v1716 = vsub.f32 %v1684, %v1712
        %v1717 = vsub.f32 %v1707, %v1715
        %v1718 = vmul.f32 %v1716, 1.442695
        %v1719 = vpow.pop %v1718
        %v1720 = vmul.f32 %v1717, 1.442695
        %v1721 = vpow.pop %v1720
        %v1722 = vsel %vm1345, %v1719, 0.0
        %1723 = vadd.xlane.f32.xlu0 %v1722
        %v1724 = vpop.xlane.xlu0 %1723
        %v1725 = vsel %vm1345, %v1721, 0.0
        %1726 = vadd.xlane.f32.xlu0 %v1725
        %v1727 = vpop.xlane.xlu0 %1726
        %v1728 = vrcp.pop %v1724
        %v1729 = vmul.f32 %v1724, %v1728
        %v1730 = vsub.f32 1.0, %v1729
        %v1731 = vmul.f32 %v1728, %v1730
        %v1732 = vadd.f32 %v1728, %v1731
        %vm1733 = vweird.f32 %v1724
        %vm1734 = vweird.f32 %v1728
        %vm1735 = vmor %vm1733, %vm1734
        %v1736 = vsel %vm1735, %v1728, %v1732
        %v1737 = vand.u32 2147483647, %v1724
        %vm1738 = vcmp.eq.f32.partialorder %v1737, 8.507059e+37
        %v1739 = vand.u32 %v1724, 2147483648
        %v1740 = vor.u32 1.1754944e-38, %v1739
        %v1741 = vsel %vm1738, %v1740, %v1736
        %v1742 = vmul.f32 %v1719, %v1741
        %v1743 = vrcp.pop %v1727
        %v1744 = vmul.f32 %v1727, %v1743
        %v1745 = vsub.f32 1.0, %v1744
        %v1746 = vmul.f32 %v1743, %v1745
        %v1747 = vadd.f32 %v1743, %v1746
        %vm1748 = vweird.f32 %v1727
        %vm1749 = vweird.f32 %v1743
        %vm1750 = vmor %vm1748, %vm1749
        %v1751 = vsel %vm1750, %v1743, %v1747
        %v1752 = vand.u32 2147483647, %v1727
        %vm1753 = vcmp.eq.f32.partialorder %v1752, 8.507059e+37
        %v1754 = vand.u32 %v1727, 2147483648
        %v1755 = vor.u32 1.1754944e-38, %v1754
        %v1756 = vsel %vm1753, %v1755, %v1751
        %v1757 = vmul.f32 %v1721, %v1756
        %v1758 = vadd.f32 %v1577, %v1742
        %v1759 = vadd.f32 %v1578, %v1757
        %v1760 = vpack.c.bf16 %v1742, %v1742
        %v1761 = vpack.c.bf16 %v1757, %v1757
        %1762 = vrot.lane.b32.xlu0 %v1342, 48
        %v1763 = vpop.permute.xlu0 %1762
        %v1765 = vsel %vm1345, %v1760, 0
        %v1768 = vsel %vm1444, %v1763, 0
        %1770 = vmatpush.bf16.msra.mxu0 0
        %1771 = vmatpush.bf16.msra.mxu0 0
        %1772 = vmatpush.bf16.msra.mxu0 0
        %1773 = vmatpush.bf16.msra.mxu0 0
        %1774 = vmatpush.bf16.msra.mxu0 0
        %1775 = vmatpush.bf16.msra.mxu0 0
        %1776 = vmatpush.bf16.msra.mxu0 0
        %1777 = vmatpush.bf16.msra.mxu0 %v1768
        %1778 = vmatmul.bf16.gmra.mxu0 %v1765
        %v1779 = vpop.f32.mrf.mxu0
        %v1780 = vadd.f32 0.0, %v1779
        %v1781 = vpop.f32.mrf.mxu0
        %1782 = vdwg.mxu0
        %1783 = vrot.lane.b32.xlu0 %v1367, 48
        %v1784 = vpop.permute.xlu0 %1783
        %v1786 = vsel %vm1345, %v1761, 0
        %v1789 = vsel %vm1444, %v1784, 0
        %1791 = vmatpush.bf16.msra.mxu0 0
        %1792 = vmatpush.bf16.msra.mxu0 0
        %1793 = vmatpush.bf16.msra.mxu0 0
        %1794 = vmatpush.bf16.msra.mxu0 0
        %1795 = vmatpush.bf16.msra.mxu0 0
        %1796 = vmatpush.bf16.msra.mxu0 0
        %1797 = vmatpush.bf16.msra.mxu0 0
        %1798 = vmatpush.bf16.msra.mxu0 %v1789
        %1799 = vmatmul.bf16.gmra.mxu0 %v1786
        %v1800 = vpop.f32.mrf.mxu0
        %v1801 = vadd.f32 0.0, %v1800
        %v1802 = vpop.f32.mrf.mxu0
        %1803 = vdwg.mxu0
        %v1804 = vpack.c.bf16 %v1801, %v1780
        %v1806 = vsel %vm1345, %v1804, 0
        %v1809 = vsel %vm1444, %v1336, 0
        %1811 = vmatpush.bf16.msra.mxu0 0
        %1812 = vmatpush.bf16.msra.mxu0 0
        %1813 = vmatpush.bf16.msra.mxu0 0
        %1814 = vmatpush.bf16.msra.mxu0 0
        %1815 = vmatpush.bf16.msra.mxu0 0
        %1816 = vmatpush.bf16.msra.mxu0 0
        %1817 = vmatpush.bf16.msra.mxu0 0
        %1818 = vmatpush.bf16.msra.mxu0 %v1809
        %1819 = vmatmul.bf16.gmra.mxu0 %v1806
        %v1820 = vpop.f32.mrf.mxu0
        %v1821 = vadd.f32 0.0, %v1820
        %v1822 = vpop.f32.mrf.mxu0
        %v1823 = vadd.f32 0.0, %v1822
        %1824 = vdwg.mxu0
        %v1825 = vadd.f32 %v1660, %v1821
        %v1826 = vadd.f32 %v1662, %v1823
        %1827 = vrot.lane.b32.xlu0 %v1342, 104
        %v1828 = vpop.permute.xlu0 %1827
        %1829 = vrot.lane.b32.xlu0 %v1342, 72
        %v1830 = vpop.permute.xlu0 %1829
        %v1832 = vsel %vm1345, %v1828, 0
        %v1835 = vsel %vm1345, %v1830, 0
        %1837 = vmatpush.bf16.xpose.msra.mxu0 0
        %1838 = vmatpush.bf16.xpose.msra.mxu0 0
        %1839 = vmatpush.bf16.xpose.msra.mxu0 0
        %1840 = vmatpush.bf16.xpose.msra.mxu0 0
        %1841 = vmatpush.bf16.xpose.msra.mxu0 0
        %1842 = vmatpush.bf16.xpose.msra.mxu0 0
        %1843 = vmatpush.bf16.xpose.msra.mxu0 0
        %1844 = vmatpush.bf16.xpose.msra.mxu0 %v1835
        %1845 = vmatmul.bf16.gmra.mxu0 %v1832
        %v1846 = vpop.f32.mrf.mxu0
        %v1847 = vadd.f32 %v1339, %v1846
        %v1848 = vpop.f32.mrf.mxu0
        %1849 = vdwg.mxu0
        %1850 = vrot.lane.b32.xlu0 %v1367, 104
        %v1851 = vpop.permute.xlu0 %1850
        %1852 = vrot.lane.b32.xlu0 %v1367, 72
        %v1853 = vpop.permute.xlu0 %1852
        %v1855 = vsel %vm1345, %v1851, 0
        %v1858 = vsel %vm1345, %v1853, 0
        %1860 = vmatpush.bf16.xpose.msra.mxu0 0
        %1861 = vmatpush.bf16.xpose.msra.mxu0 0
        %1862 = vmatpush.bf16.xpose.msra.mxu0 0
        %1863 = vmatpush.bf16.xpose.msra.mxu0 0
        %1864 = vmatpush.bf16.xpose.msra.mxu0 0
        %1865 = vmatpush.bf16.xpose.msra.mxu0 0
        %1866 = vmatpush.bf16.xpose.msra.mxu0 0
        %1867 = vmatpush.bf16.xpose.msra.mxu0 %v1858
        %1868 = vmatmul.bf16.gmra.mxu0 %v1855
        %v1869 = vpop.f32.mrf.mxu0
        %v1870 = vadd.f32 %v1339, %v1869
        %v1871 = vpop.f32.mrf.mxu0
        %1872 = vdwg.mxu0
        %v1873 = vsel %vm1345, %v1847, -inf
        %1874 = vmax.xlane.f32.xlu0 %v1873
        %v1875 = vpop.xlane.xlu0 %1874
        %v1876 = vsel %vm1345, %v1870, -inf
        %1877 = vmax.xlane.f32.xlu0 %v1876
        %v1878 = vpop.xlane.xlu0 %1877
        %v1879 = vsub.f32 %v1847, %v1875
        %v1880 = vsub.f32 %v1870, %v1878
        %v1881 = vmul.f32 %v1879, 1.442695
        %v1882 = vpow.pop %v1881
        %v1883 = vmul.f32 %v1880, 1.442695
        %v1884 = vpow.pop %v1883
        %v1885 = vsel %vm1345, %v1882, 0.0
        %1886 = vadd.xlane.f32.xlu0 %v1885
        %v1887 = vpop.xlane.xlu0 %1886
        %v1888 = vsel %vm1345, %v1884, 0.0
        %1889 = vadd.xlane.f32.xlu0 %v1888
        %v1890 = vpop.xlane.xlu0 %1889
        %v1891 = vrcp.pop %v1887
        %v1892 = vmul.f32 %v1887, %v1891
        %v1893 = vsub.f32 1.0, %v1892
        %v1894 = vmul.f32 %v1891, %v1893
        %v1895 = vadd.f32 %v1891, %v1894
        %vm1896 = vweird.f32 %v1887
        %vm1897 = vweird.f32 %v1891
        %vm1898 = vmor %vm1896, %vm1897
        %v1899 = vsel %vm1898, %v1891, %v1895
        %v1900 = vand.u32 2147483647, %v1887
        %vm1901 = vcmp.eq.f32.partialorder %v1900, 8.507059e+37
        %v1902 = vand.u32 %v1887, 2147483648
        %v1903 = vor.u32 1.1754944e-38, %v1902
        %v1904 = vsel %vm1901, %v1903, %v1899
        %v1905 = vmul.f32 %v1882, %v1904
        %v1906 = vrcp.pop %v1890
        %v1907 = vmul.f32 %v1890, %v1906
        %v1908 = vsub.f32 1.0, %v1907
        %v1909 = vmul.f32 %v1906, %v1908
        %v1910 = vadd.f32 %v1906, %v1909
        %vm1911 = vweird.f32 %v1890
        %vm1912 = vweird.f32 %v1906
        %vm1913 = vmor %vm1911, %vm1912
        %v1914 = vsel %vm1913, %v1906, %v1910
        %v1915 = vand.u32 2147483647, %v1890
        %vm1916 = vcmp.eq.f32.partialorder %v1915, 8.507059e+37
        %v1917 = vand.u32 %v1890, 2147483648
        %v1918 = vor.u32 1.1754944e-38, %v1917
        %v1919 = vsel %vm1916, %v1918, %v1914
        %v1920 = vmul.f32 %v1884, %v1919
        %v1921 = vadd.f32 %v1758, %v1905
        %v1922 = vadd.f32 %v1759, %v1920
        %v1923 = vpack.c.bf16 %v1905, %v1905
        %v1924 = vpack.c.bf16 %v1920, %v1920
        %1925 = vrot.lane.b32.xlu0 %v1342, 40
        %v1926 = vpop.permute.xlu0 %1925
        %v1928 = vsel %vm1345, %v1923, 0
        %v1931 = vsel %vm1444, %v1926, 0
        %1933 = vmatpush.bf16.msra.mxu0 0
        %1934 = vmatpush.bf16.msra.mxu0 0
        %1935 = vmatpush.bf16.msra.mxu0 0
        %1936 = vmatpush.bf16.msra.mxu0 0
        %1937 = vmatpush.bf16.msra.mxu0 0
        %1938 = vmatpush.bf16.msra.mxu0 0
        %1939 = vmatpush.bf16.msra.mxu0 0
        %1940 = vmatpush.bf16.msra.mxu0 %v1931
        %1941 = vmatmul.bf16.gmra.mxu0 %v1928
        %v1942 = vpop.f32.mrf.mxu0
        %v1943 = vadd.f32 0.0, %v1942
        %v1944 = vpop.f32.mrf.mxu0
        %1945 = vdwg.mxu0
        %1946 = vrot.lane.b32.xlu0 %v1367, 40
        %v1947 = vpop.permute.xlu0 %1946
        %v1949 = vsel %vm1345, %v1924, 0
        %v1952 = vsel %vm1444, %v1947, 0
        %1954 = vmatpush.bf16.msra.mxu0 0
        %1955 = vmatpush.bf16.msra.mxu0 0
        %1956 = vmatpush.bf16.msra.mxu0 0
        %1957 = vmatpush.bf16.msra.mxu0 0
        %1958 = vmatpush.bf16.msra.mxu0 0
        %1959 = vmatpush.bf16.msra.mxu0 0
        %1960 = vmatpush.bf16.msra.mxu0 0
        %1961 = vmatpush.bf16.msra.mxu0 %v1952
        %1962 = vmatmul.bf16.gmra.mxu0 %v1949
        %v1963 = vpop.f32.mrf.mxu0
        %v1964 = vadd.f32 0.0, %v1963
        %v1965 = vpop.f32.mrf.mxu0
        %1966 = vdwg.mxu0
        %v1967 = vpack.c.bf16 %v1964, %v1943
        %v1969 = vsel %vm1345, %v1967, 0
        %v1972 = vsel %vm1444, %v1337, 0
        %1974 = vmatpush.bf16.msra.mxu0 0
        %1975 = vmatpush.bf16.msra.mxu0 0
        %1976 = vmatpush.bf16.msra.mxu0 0
        %1977 = vmatpush.bf16.msra.mxu0 0
        %1978 = vmatpush.bf16.msra.mxu0 0
        %1979 = vmatpush.bf16.msra.mxu0 0
        %1980 = vmatpush.bf16.msra.mxu0 0
        %1981 = vmatpush.bf16.msra.mxu0 %v1972
        %1982 = vmatmul.bf16.gmra.mxu0 %v1969
        %v1983 = vpop.f32.mrf.mxu0
        %v1984 = vadd.f32 0.0, %v1983
        %v1985 = vpop.f32.mrf.mxu0
        %v1986 = vadd.f32 0.0, %v1985
        %1987 = vdwg.mxu0
        %v1988 = vadd.f32 %v1825, %v1984
        %v1989 = vadd.f32 %v1826, %v1986
        %v1990 = vmul.f32 %v1921, 0.25
        %v1991 = vmul.f32 %v1922, 0.25
        %v1993 = vperm.slane %v1338, 0
        %v1995 = vadd.f32 %v1988, %v1993
        %v1996 = vadd.f32 %v1989, %v1993
        %v1997 = vadd.f32 %v1287, %v1995
        %v1998 = vadd.f32 %v1288, %v1996
        %v1999 = vld [vmem:[%s1240] sm:$0x1]
        %v2000 = vld [vmem:[%s1027] sm:$0x1]
        %v2001 = vsel %vm1314, %v1997, 0.0
        %2002 = vadd.xlane.f32.xlu0 %v2001
        %v2003 = vpop.xlane.xlu0 %2002
        %v2004 = vsel %vm1314, %v1998, 0.0
        %2005 = vadd.xlane.f32.xlu0 %v2004
        %v2006 = vpop.xlane.xlu0 %2005
        %v2007 = vrcp.pop 32.0
        %v2008 = vmul.f32 32.0, %v2007
        %v2009 = vsub.f32 1.0, %v2008
        %v2010 = vmul.f32 %v2007, %v2009
        %v2011 = vadd.f32 %v2007, %v2010
        %vm2012 = vweird.f32 %v2007
        %v2013 = vsel %vm2012, %v2007, %v2011
        %v2014 = vmul.f32 %v2003, %v2013
        %v2015 = vmul.f32 %v2006, %v2013
        %v2016 = vsub.f32 %v1997, %v2014
        %v2017 = vsub.f32 %v1998, %v2015
        %v2018 = vmul.f32 %v2016, %v2016
        %v2019 = vmul.f32 %v2017, %v2017
        %v2020 = vsel %vm1314, %v2018, 0.0
        %2021 = vadd.xlane.f32.xlu0 %v2020
        %v2022 = vpop.xlane.xlu0 %2021
        %v2023 = vsel %vm1314, %v2019, 0.0
        %2024 = vadd.xlane.f32.xlu0 %v2023
        %v2025 = vpop.xlane.xlu0 %2024
        %v2026 = vmul.f32 %v2022, %v2013
        %v2027 = vmul.f32 %v2025, %v2013
        %v2028 = vadd.f32 %v2026, 1e-05
        %v2029 = vadd.f32 %v2027, 1e-05
        %v2030 = vrsqrt.pop %v2028
        %v2031 = vmul.f32 %v2030, %v2028
        %v2032 = vmul.f32 %v2031, %v2030
        %v2033 = vmul.f32 0.5, %v2032
        %v2034 = vsub.f32 1.5, %v2033
        %v2035 = vmul.f32 %v2030, %v2034
        %vm2036 = vweird.f32 %v2028
        %vm2037 = vweird.f32 %v2030
        %vm2038 = vmor %vm2036, %vm2037
        %v2039 = vsel %vm2038, %v2030, %v2035
        %v2040 = vrsqrt.pop %v2029
        %v2041 = vmul.f32 %v2040, %v2029
        %v2042 = vmul.f32 %v2041, %v2040
        %v2043 = vmul.f32 0.5, %v2042
        %v2044 = vsub.f32 1.5, %v2043
        %v2045 = vmul.f32 %v2040, %v2044
        %vm2046 = vweird.f32 %v2029
        %vm2047 = vweird.f32 %v2040
        %vm2048 = vmor %vm2046, %vm2047
        %v2049 = vsel %vm2048, %v2040, %v2045
        %v2050 = vmul.f32 %v2016, %v2039
        %v2051 = vmul.f32 %v2017, %v2049
        %v2053 = vperm.slane %v1999, 0
        %v2055 = vmul.f32 %v2050, %v2053
        %v2056 = vmul.f32 %v2051, %v2053
        %v2058 = vperm.slane %v2000, 0
        %v2060 = vadd.f32 %v2055, %v2058
        %v2061 = vadd.f32 %v2056, %v2058
        %v2062 = vpack.c.bf16 %v2061, %v2060
        %v2063 = vld [vmem:[%s1245] sm:$0xf]
        %v2064 = vld [vmem:[%s1245 + $0x4] sm:$0xf]
        %v2065 = vld [vmem:[%s1245 + $0x8] sm:$0xf]
        %v2066 = vld [vmem:[%s1245 + $0xc] sm:$0xf]
        %v2067 = vld [vmem:[%s1248] sm:$0x1]
        %v2069 = vperm.slane %v2067, 0
        %v2075 = vunpack.c.l.b16 %v2063
        %v2076 = vunpack.c.l.b16 %v2064
        %v2077 = vunpack.c.l.b16 %v2065
        %v2078 = vunpack.c.l.b16 %v2066
        %v2079 = vpack.c.b16 %v2076, %v2075
        %v2080 = vpack.c.b16 %v2078, %v2077
        %v2084 = vsel %vm1314, %v2062, 0
        %2086 = vmatpush.bf16.msra.mxu0 0
        %2087 = vmatpush.bf16.msra.mxu0 0
        %2088 = vmatpush.bf16.msra.mxu0 0
        %2089 = vmatpush.bf16.msra.mxu0 0
        %2090 = vmatpush.bf16.msra.mxu0 0
        %2091 = vmatpush.bf16.msra.mxu0 0
        %2092 = vmatpush.bf16.msra.mxu0 %v2080
        %2093 = vmatpush.bf16.msra.mxu0 %v2079
        %2094 = vmatmul.bf16.gmra.mxu0 %v2084
        %v2095 = vpop.f32.mrf.mxu0
        %v2096 = vadd.f32 %v2069, %v2095
        %v2097 = vpop.f32.mrf.mxu0
        %v2098 = vadd.f32 %v2069, %v2097
        %2099 = vdwg.mxu0
        %v2100 = vld [vmem:[%s1037] sm:$0xf]
        %v2101 = vld [vmem:[%s1037 + $0x4] sm:$0xf]
        %v2102 = vld [vmem:[%s1037 + $0x8] sm:$0xf]
        %v2103 = vld [vmem:[%s1037 + $0xc] sm:$0xf]
        %v2104 = vld [vmem:[%s1251] sm:$0x1]
        %v2106 = vperm.slane %v2104, 0
        %v2112 = vunpack.c.l.b16 %v1289
        %v2113 = vunpack.c.l.b16 %v1290
        %v2114 = vunpack.c.l.b16 %v1291
        %v2115 = vunpack.c.l.b16 %v1292
        %v2116 = vpack.c.b16 %v2113, %v2112
        %v2117 = vpack.c.b16 %v2115, %v2114
        %v2122 = vunpack.c.l.b16 %v2100
        %v2123 = vunpack.c.l.b16 %v2101
        %v2124 = vunpack.c.l.b16 %v2102
        %v2125 = vunpack.c.l.b16 %v2103
        %v2126 = vpack.c.b16 %v2123, %v2122
        %v2127 = vpack.c.b16 %v2125, %v2124
        %v2131 = vsel %vm1314, %v2116, 0
        %v2134 = vsel %vm1314, %v2117, 0
        %2136 = vmatpush.bf16.msra.mxu0 0
        %2137 = vmatpush.bf16.msra.mxu0 0
        %2138 = vmatpush.bf16.msra.mxu0 0
        %2139 = vmatpush.bf16.msra.mxu0 0
        %2140 = vmatpush.bf16.msra.mxu0 0
        %2141 = vmatpush.bf16.msra.mxu0 0
        %2142 = vmatpush.bf16.msra.mxu0 %v2127
        %2143 = vmatpush.bf16.msra.mxu0 %v2126
        %2144 = vmatmul.bf16.gmra.mxu0 %v2131
        %v2145 = vpop.f32.mrf.mxu0
        %v2146 = vadd.f32 %v2106, %v2145
        %v2147 = vpop.f32.mrf.mxu0
        %v2148 = vadd.f32 %v2106, %v2147
        %2149 = vmatmul.bf16.gmra.mxu0 %v2134
        %v2150 = vpop.f32.mrf.mxu0
        %v2151 = vadd.f32 %v2106, %v2150
        %v2152 = vpop.f32.mrf.mxu0
        %v2153 = vadd.f32 %v2106, %v2152
        %2154 = vdwg.mxu0
        %v2155 = vpack.c.bf16 %v2146, %v2146
        %v2156 = vpack.c.bf16 %v2148, %v2148
        %v2157 = vpack.c.bf16 %v2151, %v2151
        %v2158 = vpack.c.bf16 %v2153, %v2153
        %v2159 = vpack.c.bf16 %v2096, %v2096
        %v2160 = vpack.c.bf16 %v2098, %v2098
        %v2161 = vld [vmem:[%s1047] sm:$0xf]
        %v2162 = vld [vmem:[%s1047 + $0x4] sm:$0xf]
        %v2163 = vld [vmem:[%s1047 + $0x8] sm:$0xf]
        %v2164 = vld [vmem:[%s1047 + $0xc] sm:$0xf]
        %v2165 = vld [vmem:[%s1254] sm:$0x1]
        %v2166 = vld [vmem:[#allocation8] sm:$0xff]
        %v2169 = vunpack.c.l.b16 %v2155
        %v2170 = vunpack.c.l.b16 %v2156
        %v2171 = vpack.c.b16 %v2170, %v2169
        %v2173 = vsel %vm1345, %v2159, 0
        %v2176 = vsel %vm1345, %v2171, 0
        %2178 = vmatpush.bf16.xpose.msra.mxu0 0
        %2179 = vmatpush.bf16.xpose.msra.mxu0 0
        %2180 = vmatpush.bf16.xpose.msra.mxu0 0
        %2181 = vmatpush.bf16.xpose.msra.mxu0 0
        %2182 = vmatpush.bf16.xpose.msra.mxu0 0
        %2183 = vmatpush.bf16.xpose.msra.mxu0 0
        %2184 = vmatpush.bf16.xpose.msra.mxu0 0
        %2185 = vmatpush.bf16.xpose.msra.mxu0 %v2176
        %2186 = vmatmul.bf16.gmra.mxu0 %v2173
        %v2187 = vpop.f32.mrf.mxu0
        %v2188 = vadd.f32 %v2166, %v2187
        %v2189 = vpop.f32.mrf.mxu0
        %2190 = vdwg.mxu0
        %v2193 = vunpack.c.l.b16 %v2157
        %v2194 = vunpack.c.l.b16 %v2158
        %v2195 = vpack.c.b16 %v2194, %v2193
        %v2197 = vsel %vm1345, %v2160, 0
        %v2200 = vsel %vm1345, %v2195, 0
        %2202 = vmatpush.bf16.xpose.msra.mxu0 0
        %2203 = vmatpush.bf16.xpose.msra.mxu0 0
        %2204 = vmatpush.bf16.xpose.msra.mxu0 0
        %2205 = vmatpush.bf16.xpose.msra.mxu0 0
        %2206 = vmatpush.bf16.xpose.msra.mxu0 0
        %2207 = vmatpush.bf16.xpose.msra.mxu0 0
        %2208 = vmatpush.bf16.xpose.msra.mxu0 0
        %2209 = vmatpush.bf16.xpose.msra.mxu0 %v2200
        %2210 = vmatmul.bf16.gmra.mxu0 %v2197
        %v2211 = vpop.f32.mrf.mxu0
        %v2212 = vadd.f32 %v2166, %v2211
        %v2213 = vpop.f32.mrf.mxu0
        %2214 = vdwg.mxu0
        %vm2215 = vcmask 130048
        %v2216 = vsel %vm2215, %v2188, -inf
        %2217 = vmax.xlane.f32.xlu0 %v2216
        %v2218 = vpop.xlane.xlu0 %2217
        %v2219 = vsel %vm2215, %v2212, -inf
        %2220 = vmax.xlane.f32.xlu0 %v2219
        %v2221 = vpop.xlane.xlu0 %2220
        %v2222 = vsub.f32 %v2188, %v2218
        %v2223 = vsub.f32 %v2212, %v2221
        %v2224 = vmul.f32 %v2222, 1.442695
        %v2225 = vpow.pop %v2224
        %v2226 = vmul.f32 %v2223, 1.442695
        %v2227 = vpow.pop %v2226
        %v2228 = vsel %vm2215, %v2225, 0.0
        %2229 = vadd.xlane.f32.xlu0 %v2228
        %v2230 = vpop.xlane.xlu0 %2229
        %v2231 = vsel %vm2215, %v2227, 0.0
        %2232 = vadd.xlane.f32.xlu0 %v2231
        %v2233 = vpop.xlane.xlu0 %2232
        %v2234 = vrcp.pop %v2230
        %v2235 = vmul.f32 %v2230, %v2234
        %v2236 = vsub.f32 1.0, %v2235
        %v2237 = vmul.f32 %v2234, %v2236
        %v2238 = vadd.f32 %v2234, %v2237
        %vm2239 = vweird.f32 %v2230
        %vm2240 = vweird.f32 %v2234
        %vm2241 = vmor %vm2239, %vm2240
        %v2242 = vsel %vm2241, %v2234, %v2238
        %v2243 = vand.u32 2147483647, %v2230
        %vm2244 = vcmp.eq.f32.partialorder %v2243, 8.507059e+37
        %v2245 = vand.u32 %v2230, 2147483648
        %v2246 = vor.u32 1.1754944e-38, %v2245
        %v2247 = vsel %vm2244, %v2246, %v2242
        %v2248 = vmul.f32 %v2225, %v2247
        %v2249 = vrcp.pop %v2233
        %v2250 = vmul.f32 %v2233, %v2249
        %v2251 = vsub.f32 1.0, %v2250
        %v2252 = vmul.f32 %v2249, %v2251
        %v2253 = vadd.f32 %v2249, %v2252
        %vm2254 = vweird.f32 %v2233
        %vm2255 = vweird.f32 %v2249
        %vm2256 = vmor %vm2254, %vm2255
        %v2257 = vsel %vm2256, %v2249, %v2253
        %v2258 = vand.u32 2147483647, %v2233
        %vm2259 = vcmp.eq.f32.partialorder %v2258, 8.507059e+37
        %v2260 = vand.u32 %v2233, 2147483648
        %v2261 = vor.u32 1.1754944e-38, %v2260
        %v2262 = vsel %vm2259, %v2261, %v2257
        %v2263 = vmul.f32 %v2227, %v2262
        %v2264 = vpack.c.bf16 %v2248, %v2248
        %v2265 = vpack.c.bf16 %v2263, %v2263
        %2266 = vrot.lane.b32.xlu0 %v2171, 96
        %v2267 = vpop.permute.xlu0 %2266
        %v2270 = vsel %vm2215, %v2264, 0
        %2272 = vmatpush.bf16.msra.mxu0 0
        %2273 = vmatpush.bf16.msra.mxu0 0
        %2274 = vmatpush.bf16.msra.mxu0 0
        %2275 = vmatpush.bf16.msra.mxu0 0
        %2276 = vmatpush.bf16.msra.mxu0 0
        %2277 = vmatpush.bf16.msra.mxu0 0
        %2278 = vmatpush.bf16.msra.mxu0 0
        %2279 = vmatpush.bf16.msra.mxu0 %v2267
        %2280 = vmatmul.bf16.gmra.mxu0 %v2270
        %v2281 = vpop.f32.mrf.mxu0
        %v2282 = vadd.f32 0.0, %v2281
        %v2283 = vpop.f32.mrf.mxu0
        %2284 = vdwg.mxu0
        %2285 = vrot.lane.b32.xlu0 %v2195, 96
        %v2286 = vpop.permute.xlu0 %2285
        %v2289 = vsel %vm2215, %v2265, 0
        %2291 = vmatpush.bf16.msra.mxu0 0
        %2292 = vmatpush.bf16.msra.mxu0 0
        %2293 = vmatpush.bf16.msra.mxu0 0
        %2294 = vmatpush.bf16.msra.mxu0 0
        %2295 = vmatpush.bf16.msra.mxu0 0
        %2296 = vmatpush.bf16.msra.mxu0 0
        %2297 = vmatpush.bf16.msra.mxu0 0
        %2298 = vmatpush.bf16.msra.mxu0 %v2286
        %2299 = vmatmul.bf16.gmra.mxu0 %v2289
        %v2300 = vpop.f32.mrf.mxu0
        %v2301 = vadd.f32 0.0, %v2300
        %v2302 = vpop.f32.mrf.mxu0
        %2303 = vdwg.mxu0
        %v2304 = vpack.c.bf16 %v2301, %v2282
        %v2306 = vunpack.c.l.b16 %v2159
        %v2307 = vpack.c.b16 %v2306, %v2306
        %2308 = vrot.lane.b32.xlu0 %v2307, 120
        %v2309 = vpop.permute.xlu0 %2308
        %2310 = vrot.lane.b32.xlu0 %v2171, 120
        %v2311 = vpop.permute.xlu0 %2310
        %v2313 = vsel %vm1345, %v2309, 0
        %v2316 = vsel %vm1345, %v2311, 0
        %2318 = vmatpush.bf16.xpose.msra.mxu0 0
        %2319 = vmatpush.bf16.xpose.msra.mxu0 0
        %2320 = vmatpush.bf16.xpose.msra.mxu0 0
        %2321 = vmatpush.bf16.xpose.msra.mxu0 0
        %2322 = vmatpush.bf16.xpose.msra.mxu0 0
        %2323 = vmatpush.bf16.xpose.msra.mxu0 0
        %2324 = vmatpush.bf16.xpose.msra.mxu0 0
        %2325 = vmatpush.bf16.xpose.msra.mxu0 %v2316
        %2326 = vmatmul.bf16.gmra.mxu0 %v2313
        %v2327 = vpop.f32.mrf.mxu0
        %v2328 = vadd.f32 %v2166, %v2327
        %v2329 = vpop.f32.mrf.mxu0
        %2330 = vdwg.mxu0
        %v2332 = vunpack.c.l.b16 %v2160
        %v2333 = vpack.c.b16 %v2332, %v2332
        %2334 = vrot.lane.b32.xlu0 %v2333, 120
        %v2335 = vpop.permute.xlu0 %2334
        %2336 = vrot.lane.b32.xlu0 %v2195, 120
        %v2337 = vpop.permute.xlu0 %2336
        %v2339 = vsel %vm1345, %v2335, 0
        %v2342 = vsel %vm1345, %v2337, 0
        %2344 = vmatpush.bf16.xpose.msra.mxu0 0
        %2345 = vmatpush.bf16.xpose.msra.mxu0 0
        %2346 = vmatpush.bf16.xpose.msra.mxu0 0
        %2347 = vmatpush.bf16.xpose.msra.mxu0 0
        %2348 = vmatpush.bf16.xpose.msra.mxu0 0
        %2349 = vmatpush.bf16.xpose.msra.mxu0 0
        %2350 = vmatpush.bf16.xpose.msra.mxu0 0
        %2351 = vmatpush.bf16.xpose.msra.mxu0 %v2342
        %2352 = vmatmul.bf16.gmra.mxu0 %v2339
        %v2353 = vpop.f32.mrf.mxu0
        %v2354 = vadd.f32 %v2166, %v2353
        %v2355 = vpop.f32.mrf.mxu0
        %2356 = vdwg.mxu0
        %v2357 = vsel %vm2215, %v2328, -inf
        %2358 = vmax.xlane.f32.xlu0 %v2357
        %v2359 = vpop.xlane.xlu0 %2358
        %v2360 = vsel %vm2215, %v2354, -inf
        %2361 = vmax.xlane.f32.xlu0 %v2360
        %v2362 = vpop.xlane.xlu0 %2361
        %v2363 = vsub.f32 %v2328, %v2359
        %v2364 = vsub.f32 %v2354, %v2362
        %v2365 = vmul.f32 %v2363, 1.442695
        %v2366 = vpow.pop %v2365
        %v2367 = vmul.f32 %v2364, 1.442695
        %v2368 = vpow.pop %v2367
        %v2369 = vsel %vm2215, %v2366, 0.0
        %2370 = vadd.xlane.f32.xlu0 %v2369
        %v2371 = vpop.xlane.xlu0 %2370
        %v2372 = vsel %vm2215, %v2368, 0.0
        %2373 = vadd.xlane.f32.xlu0 %v2372
        %v2374 = vpop.xlane.xlu0 %2373
        %v2375 = vrcp.pop %v2371
        %v2376 = vmul.f32 %v2371, %v2375
        %v2377 = vsub.f32 1.0, %v2376
        %v2378 = vmul.f32 %v2375, %v2377
        %v2379 = vadd.f32 %v2375, %v2378
        %vm2380 = vweird.f32 %v2371
        %vm2381 = vweird.f32 %v2375
        %vm2382 = vmor %vm2380, %vm2381
        %v2383 = vsel %vm2382, %v2375, %v2379
        %v2384 = vand.u32 2147483647, %v2371
        %vm2385 = vcmp.eq.f32.partialorder %v2384, 8.507059e+37
        %v2386 = vand.u32 %v2371, 2147483648
        %v2387 = vor.u32 1.1754944e-38, %v2386
        %v2388 = vsel %vm2385, %v2387, %v2383
        %v2389 = vmul.f32 %v2366, %v2388
        %v2390 = vrcp.pop %v2374
        %v2391 = vmul.f32 %v2374, %v2390
        %v2392 = vsub.f32 1.0, %v2391
        %v2393 = vmul.f32 %v2390, %v2392
        %v2394 = vadd.f32 %v2390, %v2393
        %vm2395 = vweird.f32 %v2374
        %vm2396 = vweird.f32 %v2390
        %vm2397 = vmor %vm2395, %vm2396
        %v2398 = vsel %vm2397, %v2390, %v2394
        %v2399 = vand.u32 2147483647, %v2374
        %vm2400 = vcmp.eq.f32.partialorder %v2399, 8.507059e+37
        %v2401 = vand.u32 %v2374, 2147483648
        %v2402 = vor.u32 1.1754944e-38, %v2401
        %v2403 = vsel %vm2400, %v2402, %v2398
        %v2404 = vmul.f32 %v2368, %v2403
        %v2405 = vadd.f32 %v2248, %v2389
        %v2406 = vadd.f32 %v2263, %v2404
        %v2407 = vpack.c.bf16 %v2389, %v2389
        %v2408 = vpack.c.bf16 %v2404, %v2404
        %2409 = vrot.lane.b32.xlu0 %v2171, 88
        %v2410 = vpop.permute.xlu0 %2409
        %v2413 = vsel %vm2215, %v2407, 0
        %2415 = vmatpush.bf16.msra.mxu0 0
        %2416 = vmatpush.bf16.msra.mxu0 0
        %2417 = vmatpush.bf16.msra.mxu0 0
        %2418 = vmatpush.bf16.msra.mxu0 0
        %2419 = vmatpush.bf16.msra.mxu0 0
        %2420 = vmatpush.bf16.msra.mxu0 0
        %2421 = vmatpush.bf16.msra.mxu0 0
        %2422 = vmatpush.bf16.msra.mxu0 %v2410
        %2423 = vmatmul.bf16.gmra.mxu0 %v2413
        %v2424 = vpop.f32.mrf.mxu0
        %v2425 = vadd.f32 0.0, %v2424
        %v2426 = vpop.f32.mrf.mxu0
        %2427 = vdwg.mxu0
        %2428 = vrot.lane.b32.xlu0 %v2195, 88
        %v2429 = vpop.permute.xlu0 %2428
        %v2432 = vsel %vm2215, %v2408, 0
        %2434 = vmatpush.bf16.msra.mxu0 0
        %2435 = vmatpush.bf16.msra.mxu0 0
        %2436 = vmatpush.bf16.msra.mxu0 0
        %2437 = vmatpush.bf16.msra.mxu0 0
        %2438 = vmatpush.bf16.msra.mxu0 0
        %2439 = vmatpush.bf16.msra.mxu0 0
        %2440 = vmatpush.bf16.msra.mxu0 0
        %2441 = vmatpush.bf16.msra.mxu0 %v2429
        %2442 = vmatmul.bf16.gmra.mxu0 %v2432
        %v2443 = vpop.f32.mrf.mxu0
        %v2444 = vadd.f32 0.0, %v2443
        %v2445 = vpop.f32.mrf.mxu0
        %2446 = vdwg.mxu0
        %v2447 = vpack.c.bf16 %v2444, %v2425
        %v2449 = vsel %vm1345, %v2447, 0
        %v2452 = vsel %vm1444, %v2162, 0
        %2454 = vmatpush.bf16.msra.mxu0 0
        %2455 = vmatpush.bf16.msra.mxu0 0
        %2456 = vmatpush.bf16.msra.mxu0 0
        %2457 = vmatpush.bf16.msra.mxu0 0
        %2458 = vmatpush.bf16.msra.mxu0 0
        %2459 = vmatpush.bf16.msra.mxu0 0
        %2460 = vmatpush.bf16.msra.mxu0 0
        %2461 = vmatpush.bf16.msra.mxu0 %v2452
        %2462 = vmatmul.bf16.gmra.mxu0 %v2449
        %v2463 = vpop.f32.mrf.mxu0
        %v2464 = vadd.f32 0.0, %v2463
        %v2465 = vpop.f32.mrf.mxu0
        %v2466 = vadd.f32 0.0, %v2465
        %2467 = vdwg.mxu0
        %v2469 = vsel %vm1345, %v2304, 0
        %v2472 = vsel %vm1444, %v2161, 0
        %2474 = vmatpush.bf16.msra.mxu0 0
        %2475 = vmatpush.bf16.msra.mxu0 0
        %2476 = vmatpush.bf16.msra.mxu0 0
        %2477 = vmatpush.bf16.msra.mxu0 0
        %2478 = vmatpush.bf16.msra.mxu0 0
        %2479 = vmatpush.bf16.msra.mxu0 0
        %2480 = vmatpush.bf16.msra.mxu0 0
        %2481 = vmatpush.bf16.msra.mxu0 %v2472
        %2482 = vmatmul.bf16.gmra.mxu0 %v2469
        %v2483 = vpop.f32.mrf.mxu0
        %v2484 = vadd.f32 %v2464, %v2483
        %v2485 = vpop.f32.mrf.mxu0
        %v2486 = vadd.f32 %v2466, %v2485
        %2487 = vdwg.mxu0
        %2488 = vrot.lane.b32.xlu0 %v2307, 112
        %v2489 = vpop.permute.xlu0 %2488
        %2490 = vrot.lane.b32.xlu0 %v2171, 112
        %v2491 = vpop.permute.xlu0 %2490
        %v2493 = vsel %vm1345, %v2489, 0
        %v2496 = vsel %vm1345, %v2491, 0
        %2498 = vmatpush.bf16.xpose.msra.mxu0 0
        %2499 = vmatpush.bf16.xpose.msra.mxu0 0
        %2500 = vmatpush.bf16.xpose.msra.mxu0 0
        %2501 = vmatpush.bf16.xpose.msra.mxu0 0
        %2502 = vmatpush.bf16.xpose.msra.mxu0 0
        %2503 = vmatpush.bf16.xpose.msra.mxu0 0
        %2504 = vmatpush.bf16.xpose.msra.mxu0 0
        %2505 = vmatpush.bf16.xpose.msra.mxu0 %v2496
        %2506 = vmatmul.bf16.gmra.mxu0 %v2493
        %v2507 = vpop.f32.mrf.mxu0
        %v2508 = vadd.f32 %v2166, %v2507
        %v2509 = vpop.f32.mrf.mxu0
        %2510 = vdwg.mxu0
        %2511 = vrot.lane.b32.xlu0 %v2333, 112
        %v2512 = vpop.permute.xlu0 %2511
        %2513 = vrot.lane.b32.xlu0 %v2195, 112
        %v2514 = vpop.permute.xlu0 %2513
        %v2516 = vsel %vm1345, %v2512, 0
        %v2519 = vsel %vm1345, %v2514, 0
        %2521 = vmatpush.bf16.xpose.msra.mxu0 0
        %2522 = vmatpush.bf16.xpose.msra.mxu0 0
        %2523 = vmatpush.bf16.xpose.msra.mxu0 0
        %2524 = vmatpush.bf16.xpose.msra.mxu0 0
        %2525 = vmatpush.bf16.xpose.msra.mxu0 0
        %2526 = vmatpush.bf16.xpose.msra.mxu0 0
        %2527 = vmatpush.bf16.xpose.msra.mxu0 0
        %2528 = vmatpush.bf16.xpose.msra.mxu0 %v2519
        %2529 = vmatmul.bf16.gmra.mxu0 %v2516
        %v2530 = vpop.f32.mrf.mxu0
        %v2531 = vadd.f32 %v2166, %v2530
        %v2532 = vpop.f32.mrf.mxu0
        %2533 = vdwg.mxu0
        %v2534 = vsel %vm2215, %v2508, -inf
        %2535 = vmax.xlane.f32.xlu0 %v2534
        %v2536 = vpop.xlane.xlu0 %2535
        %v2537 = vsel %vm2215, %v2531, -inf
        %2538 = vmax.xlane.f32.xlu0 %v2537
        %v2539 = vpop.xlane.xlu0 %2538
        %v2540 = vsub.f32 %v2508, %v2536
        %v2541 = vsub.f32 %v2531, %v2539
        %v2542 = vmul.f32 %v2540, 1.442695
        %v2543 = vpow.pop %v2542
        %v2544 = vmul.f32 %v2541, 1.442695
        %v2545 = vpow.pop %v2544
        %v2546 = vsel %vm2215, %v2543, 0.0
        %2547 = vadd.xlane.f32.xlu0 %v2546
        %v2548 = vpop.xlane.xlu0 %2547
        %v2549 = vsel %vm2215, %v2545, 0.0
        %2550 = vadd.xlane.f32.xlu0 %v2549
        %v2551 = vpop.xlane.xlu0 %2550
        %v2552 = vrcp.pop %v2548
        %v2553 = vmul.f32 %v2548, %v2552
        %v2554 = vsub.f32 1.0, %v2553
        %v2555 = vmul.f32 %v2552, %v2554
        %v2556 = vadd.f32 %v2552, %v2555
        %vm2557 = vweird.f32 %v2548
        %vm2558 = vweird.f32 %v2552
        %vm2559 = vmor %vm2557, %vm2558
        %v2560 = vsel %vm2559, %v2552, %v2556
        %v2561 = vand.u32 2147483647, %v2548
        %vm2562 = vcmp.eq.f32.partialorder %v2561, 8.507059e+37
        %v2563 = vand.u32 %v2548, 2147483648
        %v2564 = vor.u32 1.1754944e-38, %v2563
        %v2565 = vsel %vm2562, %v2564, %v2560
        %v2566 = vmul.f32 %v2543, %v2565
        %v2567 = vrcp.pop %v2551
        %v2568 = vmul.f32 %v2551, %v2567
        %v2569 = vsub.f32 1.0, %v2568
        %v2570 = vmul.f32 %v2567, %v2569
        %v2571 = vadd.f32 %v2567, %v2570
        %vm2572 = vweird.f32 %v2551
        %vm2573 = vweird.f32 %v2567
        %vm2574 = vmor %vm2572, %vm2573
        %v2575 = vsel %vm2574, %v2567, %v2571
        %v2576 = vand.u32 2147483647, %v2551
        %vm2577 = vcmp.eq.f32.partialorder %v2576, 8.507059e+37
        %v2578 = vand.u32 %v2551, 2147483648
        %v2579 = vor.u32 1.1754944e-38, %v2578
        %v2580 = vsel %vm2577, %v2579, %v2575
        %v2581 = vmul.f32 %v2545, %v2580
        %v2582 = vadd.f32 %v2405, %v2566
        %v2583 = vadd.f32 %v2406, %v2581
        %v2584 = vpack.c.bf16 %v2566, %v2566
        %v2585 = vpack.c.bf16 %v2581, %v2581
        %2586 = vrot.lane.b32.xlu0 %v2171, 80
        %v2587 = vpop.permute.xlu0 %2586
        %v2590 = vsel %vm2215, %v2584, 0
        %2592 = vmatpush.bf16.msra.mxu0 0
        %2593 = vmatpush.bf16.msra.mxu0 0
        %2594 = vmatpush.bf16.msra.mxu0 0
        %2595 = vmatpush.bf16.msra.mxu0 0
        %2596 = vmatpush.bf16.msra.mxu0 0
        %2597 = vmatpush.bf16.msra.mxu0 0
        %2598 = vmatpush.bf16.msra.mxu0 0
        %2599 = vmatpush.bf16.msra.mxu0 %v2587
        %2600 = vmatmul.bf16.gmra.mxu0 %v2590
        %v2601 = vpop.f32.mrf.mxu0
        %v2602 = vadd.f32 0.0, %v2601
        %v2603 = vpop.f32.mrf.mxu0
        %2604 = vdwg.mxu0
        %2605 = vrot.lane.b32.xlu0 %v2195, 80
        %v2606 = vpop.permute.xlu0 %2605
        %v2609 = vsel %vm2215, %v2585, 0
        %2611 = vmatpush.bf16.msra.mxu0 0
        %2612 = vmatpush.bf16.msra.mxu0 0
        %2613 = vmatpush.bf16.msra.mxu0 0
        %2614 = vmatpush.bf16.msra.mxu0 0
        %2615 = vmatpush.bf16.msra.mxu0 0
        %2616 = vmatpush.bf16.msra.mxu0 0
        %2617 = vmatpush.bf16.msra.mxu0 0
        %2618 = vmatpush.bf16.msra.mxu0 %v2606
        %2619 = vmatmul.bf16.gmra.mxu0 %v2609
        %v2620 = vpop.f32.mrf.mxu0
        %v2621 = vadd.f32 0.0, %v2620
        %v2622 = vpop.f32.mrf.mxu0
        %2623 = vdwg.mxu0
        %v2624 = vpack.c.bf16 %v2621, %v2602
        %v2626 = vsel %vm1345, %v2624, 0
        %v2629 = vsel %vm1444, %v2163, 0
        %2631 = vmatpush.bf16.msra.mxu0 0
        %2632 = vmatpush.bf16.msra.mxu0 0
        %2633 = vmatpush.bf16.msra.mxu0 0
        %2634 = vmatpush.bf16.msra.mxu0 0
        %2635 = vmatpush.bf16.msra.mxu0 0
        %2636 = vmatpush.bf16.msra.mxu0 0
        %2637 = vmatpush.bf16.msra.mxu0 0
        %2638 = vmatpush.bf16.msra.mxu0 %v2629
        %2639 = vmatmul.bf16.gmra.mxu0 %v2626
        %v2640 = vpop.f32.mrf.mxu0
        %v2641 = vadd.f32 0.0, %v2640
        %v2642 = vpop.f32.mrf.mxu0
        %v2643 = vadd.f32 0.0, %v2642
        %2644 = vdwg.mxu0
        %v2645 = vadd.f32 %v2484, %v2641
        %v2646 = vadd.f32 %v2486, %v2643
        %2647 = vrot.lane.b32.xlu0 %v2307, 104
        %v2648 = vpop.permute.xlu0 %2647
        %2649 = vrot.lane.b32.xlu0 %v2171, 104
        %v2650 = vpop.permute.xlu0 %2649
        %v2652 = vsel %vm1345, %v2648, 0
        %v2655 = vsel %vm1345, %v2650, 0
        %2657 = vmatpush.bf16.xpose.msra.mxu0 0
        %2658 = vmatpush.bf16.xpose.msra.mxu0 0
        %2659 = vmatpush.bf16.xpose.msra.mxu0 0
        %2660 = vmatpush.bf16.xpose.msra.mxu0 0
        %2661 = vmatpush.bf16.xpose.msra.mxu0 0
        %2662 = vmatpush.bf16.xpose.msra.mxu0 0
        %2663 = vmatpush.bf16.xpose.msra.mxu0 0
        %2664 = vmatpush.bf16.xpose.msra.mxu0 %v2655
        %2665 = vmatmul.bf16.gmra.mxu0 %v2652
        %v2666 = vpop.f32.mrf.mxu0
        %v2667 = vadd.f32 %v2166, %v2666
        %v2668 = vpop.f32.mrf.mxu0
        %2669 = vdwg.mxu0
        %2670 = vrot.lane.b32.xlu0 %v2333, 104
        %v2671 = vpop.permute.xlu0 %2670
        %2672 = vrot.lane.b32.xlu0 %v2195, 104
        %v2673 = vpop.permute.xlu0 %2672
        %v2675 = vsel %vm1345, %v2671, 0
        %v2678 = vsel %vm1345, %v2673, 0
        %2680 = vmatpush.bf16.xpose.msra.mxu0 0
        %2681 = vmatpush.bf16.xpose.msra.mxu0 0
        %2682 = vmatpush.bf16.xpose.msra.mxu0 0
        %2683 = vmatpush.bf16.xpose.msra.mxu0 0
        %2684 = vmatpush.bf16.xpose.msra.mxu0 0
        %2685 = vmatpush.bf16.xpose.msra.mxu0 0
        %2686 = vmatpush.bf16.xpose.msra.mxu0 0
        %2687 = vmatpush.bf16.xpose.msra.mxu0 %v2678
        %2688 = vmatmul.bf16.gmra.mxu0 %v2675
        %v2689 = vpop.f32.mrf.mxu0
        %v2690 = vadd.f32 %v2166, %v2689
        %v2691 = vpop.f32.mrf.mxu0
        %2692 = vdwg.mxu0
        %v2693 = vsel %vm2215, %v2667, -inf
        %2694 = vmax.xlane.f32.xlu0 %v2693
        %v2695 = vpop.xlane.xlu0 %2694
        %v2696 = vsel %vm2215, %v2690, -inf
        %2697 = vmax.xlane.f32.xlu0 %v2696
        %v2698 = vpop.xlane.xlu0 %2697
        %v2699 = vsub.f32 %v2667, %v2695
        %v2700 = vsub.f32 %v2690, %v2698
        %v2701 = vmul.f32 %v2699, 1.442695
        %v2702 = vpow.pop %v2701
        %v2703 = vmul.f32 %v2700, 1.442695
        %v2704 = vpow.pop %v2703
        %v2705 = vsel %vm2215, %v2702, 0.0
        %2706 = vadd.xlane.f32.xlu0 %v2705
        %v2707 = vpop.xlane.xlu0 %2706
        %v2708 = vsel %vm2215, %v2704, 0.0
        %2709 = vadd.xlane.f32.xlu0 %v2708
        %v2710 = vpop.xlane.xlu0 %2709
        %v2711 = vrcp.pop %v2707
        %v2712 = vmul.f32 %v2707, %v2711
        %v2713 = vsub.f32 1.0, %v2712
        %v2714 = vmul.f32 %v2711, %v2713
        %v2715 = vadd.f32 %v2711, %v2714
        %vm2716 = vweird.f32 %v2707
        %vm2717 = vweird.f32 %v2711
        %vm2718 = vmor %vm2716, %vm2717
        %v2719 = vsel %vm2718, %v2711, %v2715
        %v2720 = vand.u32 2147483647, %v2707
        %vm2721 = vcmp.eq.f32.partialorder %v2720, 8.507059e+37
        %v2722 = vand.u32 %v2707, 2147483648
        %v2723 = vor.u32 1.1754944e-38, %v2722
        %v2724 = vsel %vm2721, %v2723, %v2719
        %v2725 = vmul.f32 %v2702, %v2724
        %v2726 = vrcp.pop %v2710
        %v2727 = vmul.f32 %v2710, %v2726
        %v2728 = vsub.f32 1.0, %v2727
        %v2729 = vmul.f32 %v2726, %v2728
        %v2730 = vadd.f32 %v2726, %v2729
        %vm2731 = vweird.f32 %v2710
        %vm2732 = vweird.f32 %v2726
        %vm2733 = vmor %vm2731, %vm2732
        %v2734 = vsel %vm2733, %v2726, %v2730
        %v2735 = vand.u32 2147483647, %v2710
        %vm2736 = vcmp.eq.f32.partialorder %v2735, 8.507059e+37
        %v2737 = vand.u32 %v2710, 2147483648
        %v2738 = vor.u32 1.1754944e-38, %v2737
        %v2739 = vsel %vm2736, %v2738, %v2734
        %v2740 = vmul.f32 %v2704, %v2739
        %v2741 = vadd.f32 %v2582, %v2725
        %v2742 = vadd.f32 %v2583, %v2740
        %v2743 = vpack.c.bf16 %v2725, %v2725
        %v2744 = vpack.c.bf16 %v2740, %v2740
        %2745 = vrot.lane.b32.xlu0 %v2171, 72
        %v2746 = vpop.permute.xlu0 %2745
        %v2749 = vsel %vm2215, %v2743, 0
        %2751 = vmatpush.bf16.msra.mxu0 0
        %2752 = vmatpush.bf16.msra.mxu0 0
        %2753 = vmatpush.bf16.msra.mxu0 0
        %2754 = vmatpush.bf16.msra.mxu0 0
        %2755 = vmatpush.bf16.msra.mxu0 0
        %2756 = vmatpush.bf16.msra.mxu0 0
        %2757 = vmatpush.bf16.msra.mxu0 0
        %2758 = vmatpush.bf16.msra.mxu0 %v2746
        %2759 = vmatmul.bf16.gmra.mxu0 %v2749
        %v2760 = vpop.f32.mrf.mxu0
        %v2761 = vadd.f32 0.0, %v2760
        %v2762 = vpop.f32.mrf.mxu0
        %2763 = vdwg.mxu0
        %2764 = vrot.lane.b32.xlu0 %v2195, 72
        %v2765 = vpop.permute.xlu0 %2764
        %v2768 = vsel %vm2215, %v2744, 0
        %2770 = vmatpush.bf16.msra.mxu0 0
        %2771 = vmatpush.bf16.msra.mxu0 0
        %2772 = vmatpush.bf16.msra.mxu0 0
        %2773 = vmatpush.bf16.msra.mxu0 0
        %2774 = vmatpush.bf16.msra.mxu0 0
        %2775 = vmatpush.bf16.msra.mxu0 0
        %2776 = vmatpush.bf16.msra.mxu0 0
        %2777 = vmatpush.bf16.msra.mxu0 %v2765
        %2778 = vmatmul.bf16.gmra.mxu0 %v2768
        %v2779 = vpop.f32.mrf.mxu0
        %v2780 = vadd.f32 0.0, %v2779
        %v2781 = vpop.f32.mrf.mxu0
        %2782 = vdwg.mxu0
        %v2783 = vpack.c.bf16 %v2780, %v2761
        %v2785 = vsel %vm1345, %v2783, 0
        %v2788 = vsel %vm1444, %v2164, 0
        %2790 = vmatpush.bf16.msra.mxu0 0
        %2791 = vmatpush.bf16.msra.mxu0 0
        %2792 = vmatpush.bf16.msra.mxu0 0
        %2793 = vmatpush.bf16.msra.mxu0 0
        %2794 = vmatpush.bf16.msra.mxu0 0
        %2795 = vmatpush.bf16.msra.mxu0 0
        %2796 = vmatpush.bf16.msra.mxu0 0
        %2797 = vmatpush.bf16.msra.mxu0 %v2788
        %2798 = vmatmul.bf16.gmra.mxu0 %v2785
        %v2799 = vpop.f32.mrf.mxu0
        %v2800 = vadd.f32 0.0, %v2799
        %v2801 = vpop.f32.mrf.mxu0
        %v2802 = vadd.f32 0.0, %v2801
        %2803 = vdwg.mxu0
        %v2804 = vadd.f32 %v2645, %v2800
        %v2805 = vadd.f32 %v2646, %v2802
        %v2806 = vmul.f32 %v2741, 0.25
        %v2807 = vmul.f32 %v2742, 0.25
        %v2809 = vperm.slane %v2165, 0
        %v2811 = vadd.f32 %v2804, %v2809
        %v2812 = vadd.f32 %v2805, %v2809
        %v2813 = vadd.f32 %v2060, %v2811
        %v2814 = vadd.f32 %v2061, %v2812
        %v2815 = vld [vmem:[%s1257] sm:$0x1]
        %v2816 = vld [vmem:[%s1056] sm:$0x1]
        %v2817 = vsel %vm1314, %v2813, 0.0
        %2818 = vadd.xlane.f32.xlu0 %v2817
        %v2819 = vpop.xlane.xlu0 %2818
        %v2820 = vsel %vm1314, %v2814, 0.0
        %2821 = vadd.xlane.f32.xlu0 %v2820
        %v2822 = vpop.xlane.xlu0 %2821
        %v2823 = vmul.f32 %v2819, %v2013
        %v2824 = vmul.f32 %v2822, %v2013
        %v2825 = vsub.f32 %v2813, %v2823
        %v2826 = vsub.f32 %v2814, %v2824
        %v2827 = vmul.f32 %v2825, %v2825
        %v2828 = vmul.f32 %v2826, %v2826
        %v2829 = vsel %vm1314, %v2827, 0.0
        %2830 = vadd.xlane.f32.xlu0 %v2829
        %v2831 = vpop.xlane.xlu0 %2830
        %v2832 = vsel %vm1314, %v2828, 0.0
        %2833 = vadd.xlane.f32.xlu0 %v2832
        %v2834 = vpop.xlane.xlu0 %2833
        %v2835 = vmul.f32 %v2831, %v2013
        %v2836 = vmul.f32 %v2834, %v2013
        %v2837 = vadd.f32 %v2835, 1e-05
        %v2838 = vadd.f32 %v2836, 1e-05
        %v2839 = vrsqrt.pop %v2837
        %v2840 = vmul.f32 %v2839, %v2837
        %v2841 = vmul.f32 %v2840, %v2839
        %v2842 = vmul.f32 0.5, %v2841
        %v2843 = vsub.f32 1.5, %v2842
        %v2844 = vmul.f32 %v2839, %v2843
        %vm2845 = vweird.f32 %v2837
        %vm2846 = vweird.f32 %v2839
        %vm2847 = vmor %vm2845, %vm2846
        %v2848 = vsel %vm2847, %v2839, %v2844
        %v2849 = vrsqrt.pop %v2838
        %v2850 = vmul.f32 %v2849, %v2838
        %v2851 = vmul.f32 %v2850, %v2849
        %v2852 = vmul.f32 0.5, %v2851
        %v2853 = vsub.f32 1.5, %v2852
        %v2854 = vmul.f32 %v2849, %v2853
        %vm2855 = vweird.f32 %v2838
        %vm2856 = vweird.f32 %v2849
        %vm2857 = vmor %vm2855, %vm2856
        %v2858 = vsel %vm2857, %v2849, %v2854
        %v2859 = vmul.f32 %v2825, %v2848
        %v2860 = vmul.f32 %v2826, %v2858
        %v2862 = vperm.slane %v2815, 0
        %v2864 = vmul.f32 %v2859, %v2862
        %v2865 = vmul.f32 %v2860, %v2862
        %v2867 = vperm.slane %v2816, 0
        %v2869 = vadd.f32 %v2864, %v2867
        %v2870 = vadd.f32 %v2865, %v2867
        %v2871 = vpack.c.bf16 %v2870, %v2869
        %v2872 = vld [vmem:[%s1066] sm:$0xf]
        %v2873 = vld [vmem:[%s1066 + $0x4] sm:$0xf]
        %v2874 = vld [vmem:[%s1066 + $0x8] sm:$0xf]
        %v2875 = vld [vmem:[%s1066 + $0xc] sm:$0xf]
        %v2876 = vld [vmem:[%s1260] sm:$0x1]
        %v2878 = vperm.slane %v2876, 0
        %v2884 = vunpack.c.l.b16 %v2872
        %v2885 = vunpack.c.l.b16 %v2873
        %v2886 = vunpack.c.l.b16 %v2874
        %v2887 = vunpack.c.l.b16 %v2875
        %v2888 = vpack.c.b16 %v2885, %v2884
        %v2889 = vpack.c.b16 %v2887, %v2886
        %v2893 = vsel %vm1314, %v2871, 0
        %2895 = vmatpush.bf16.msra.mxu0 0
        %2896 = vmatpush.bf16.msra.mxu0 0
        %2897 = vmatpush.bf16.msra.mxu0 0
        %2898 = vmatpush.bf16.msra.mxu0 0
        %2899 = vmatpush.bf16.msra.mxu0 0
        %2900 = vmatpush.bf16.msra.mxu0 0
        %2901 = vmatpush.bf16.msra.mxu0 %v2889
        %2902 = vmatpush.bf16.msra.mxu0 %v2888
        %2903 = vmatmul.bf16.gmra.mxu0 %v2893
        %v2904 = vpop.f32.mrf.mxu0
        %v2905 = vadd.f32 %v2878, %v2904
        %v2906 = vpop.f32.mrf.mxu0
        %v2907 = vadd.f32 %v2878, %v2906
        %2908 = vdwg.mxu0
        %v2909 = vmax.f32 %v2905, 0.0
        %v2910 = vmax.f32 %v2907, 0.0
        %v2911 = vpack.c.bf16 %v2910, %v2909
        %v2912 = vld [vmem:[%s1265] sm:$0xf]
        %v2913 = vld [vmem:[%s1265 + $0x4] sm:$0xf]
        %v2914 = vld [vmem:[%s1265 + $0x8] sm:$0xf]
        %v2915 = vld [vmem:[%s1265 + $0xc] sm:$0xf]
        %v2916 = vld [vmem:[%s1265 + $0x10] sm:$0xf]
        %v2917 = vld [vmem:[%s1265 + $0x14] sm:$0xf]
        %v2918 = vld [vmem:[%s1265 + $0x18] sm:$0xf]
        %v2919 = vld [vmem:[%s1265 + $0x1c] sm:$0xf]
        %v2920 = vld [vmem:[%s1268] sm:$0x1]
        %v2922 = vperm.slane %v2920, 0
        %v2932 = vunpack.c.l.b16 %v2912
        %v2933 = vunpack.c.l.b16 %v2913
        %v2934 = vunpack.c.l.b16 %v2914
        %v2935 = vunpack.c.l.b16 %v2915
        %v2936 = vunpack.c.l.b16 %v2916
        %v2937 = vunpack.c.l.b16 %v2917
        %v2938 = vunpack.c.l.b16 %v2918
        %v2939 = vunpack.c.l.b16 %v2919
        %v2940 = vpack.c.b16 %v2933, %v2932
        %v2941 = vpack.c.b16 %v2935, %v2934
        %v2942 = vpack.c.b16 %v2937, %v2936
        %v2943 = vpack.c.b16 %v2939, %v2938
        %vm2948 = vcmask 523264
        %v2950 = vsel %vm2948, %v2911, 0
        %2952 = vmatpush.bf16.msra.mxu0 0
        %2953 = vmatpush.bf16.msra.mxu0 0
        %2954 = vmatpush.bf16.msra.mxu0 0
        %2955 = vmatpush.bf16.msra.mxu0 0
        %2956 = vmatpush.bf16.msra.mxu0 %v2943
        %2957 = vmatpush.bf16.msra.mxu0 %v2942
        %2958 = vmatpush.bf16.msra.mxu0 %v2941
        %2959 = vmatpush.bf16.msra.mxu0 %v2940
        %2960 = vmatmul.bf16.gmra.mxu0 %v2950
        %v2961 = vpop.f32.mrf.mxu0
        %v2962 = vadd.f32 %v2922, %v2961
        %v2963 = vpop.f32.mrf.mxu0
        %v2964 = vadd.f32 %v2922, %v2963
        %2965 = vdwg.mxu0
        %v2966 = vadd.f32 %v2869, %v2962
        %v2967 = vadd.f32 %v2870, %v2964
        %v2968 = vld [vmem:[%s1271] sm:$0x1]
        %v2969 = vld [vmem:[%s1075] sm:$0x1]
        %v2970 = vsel %vm1314, %v2966, 0.0
        %2971 = vadd.xlane.f32.xlu0 %v2970
        %v2972 = vpop.xlane.xlu0 %2971
        %v2973 = vsel %vm1314, %v2967, 0.0
        %2974 = vadd.xlane.f32.xlu0 %v2973
        %v2975 = vpop.xlane.xlu0 %2974
        %v2976 = vmul.f32 %v2972, %v2013
        %v2977 = vmul.f32 %v2975, %v2013
        %v2978 = vsub.f32 %v2966, %v2976
        %v2979 = vsub.f32 %v2967, %v2977
        %v2980 = vmul.f32 %v2978, %v2978
        %v2981 = vmul.f32 %v2979, %v2979
        %v2982 = vsel %vm1314, %v2980, 0.0
        %2983 = vadd.xlane.f32.xlu0 %v2982
        %v2984 = vpop.xlane.xlu0 %2983
        %v2985 = vsel %vm1314, %v2981, 0.0
        %2986 = vadd.xlane.f32.xlu0 %v2985
        %v2987 = vpop.xlane.xlu0 %2986
        %v2988 = vmul.f32 %v2984, %v2013
        %v2989 = vmul.f32 %v2987, %v2013
        %v2990 = vadd.f32 %v2988, 1e-05
        %v2991 = vadd.f32 %v2989, 1e-05
        %v2992 = vrsqrt.pop %v2990
        %v2993 = vmul.f32 %v2992, %v2990
        %v2994 = vmul.f32 %v2993, %v2992
        %v2995 = vmul.f32 0.5, %v2994
        %v2996 = vsub.f32 1.5, %v2995
        %v2997 = vmul.f32 %v2992, %v2996
        %vm2998 = vweird.f32 %v2990
        %vm2999 = vweird.f32 %v2992
        %vm3000 = vmor %vm2998, %vm2999
        %v3001 = vsel %vm3000, %v2992, %v2997
        %v3002 = vrsqrt.pop %v2991
        %v3003 = vmul.f32 %v3002, %v2991
        %v3004 = vmul.f32 %v3003, %v3002
        %v3005 = vmul.f32 0.5, %v3004
        %v3006 = vsub.f32 1.5, %v3005
        %v3007 = vmul.f32 %v3002, %v3006
        %vm3008 = vweird.f32 %v2991
        %vm3009 = vweird.f32 %v3002
        %vm3010 = vmor %vm3008, %vm3009
        %v3011 = vsel %vm3010, %v3002, %v3007
        %v3012 = vmul.f32 %v2978, %v3001
        %v3013 = vmul.f32 %v2979, %v3011
        %v3015 = vperm.slane %v2968, 0
        %v3017 = vmul.f32 %v3012, %v3015
        %v3018 = vmul.f32 %v3013, %v3015
        %v3020 = vperm.slane %v2969, 0
        %v3022 = vadd.f32 %v3017, %v3020
        %v3023 = vadd.f32 %v3018, %v3020
        %3024 = vst.msk [vmem:[#allocation16] sm:$0xff] %vm1314, %v3022
        %3025 = vst.msk [vmem:[#allocation16 + $0x8] sm:$0xff] %vm1314, %v3023
        %3026 = vst.msk [vmem:[%s1276] sm:$0xff] %vm1345, %v1990
        %3027 = vst.msk [vmem:[%s1276 + $0x8] sm:$0xff] %vm1345, %v1991
        %3028 = vst.msk [vmem:[%s1221] sm:$0xff] %vm2215, %v2806
        %3029 = vst.msk [vmem:[%s1221 + $0x8] sm:$0xff] %vm2215, %v2807
        %p3030 = scmp.lt.s32.totalorder %s45, 1
        %s3031 = scalar_select %p3030, %s45, 1
        %s3032 = smul.addr %s3031, 2
        %s3033 = smul.addr %s3032, 8
        %s3034 = scalar_lea.vmem %s25, %s3033
        %s3035 = sand.u32 %s704, 1
        %s3036 = scalar_lea.sflag [#allocation18], %s3035
        %s3037 = sand.u32 %s704, 1
        %s3038 = smul.addr %s3037, 16
        %s3039 = scalar_lea.vmem [#allocation17], %s3038
        // Predicated region
        $region161: #{tpu_custom_call.1} parent=115 // pred_check
          %p3040 = pneg %p662
        $region162: #{tpu_custom_call.1} parent=115 // pred_check_branch
          %3042 = sbr.rel (%p3040) target = $region164
        $region163: #{tpu_custom_call.1} parent=115 // pred_region
          %3044 = vsyncadd [#allocation4], 0
          %s3045 = sshll.u32 [#allocation16], 4
          %s3046 = int_to_ptr.vmem [resolvable:$true] %s3045
          %s3047 = sshll.u32 %s24, 4
          %s3048 = int_to_ptr.hbm [resolvable:$true] %s3047
          %3053 = dma.vmem_to_hbm [thread:$0]  %s3046, 256, %s3048, [#allocation4], 128, 128, 8
        $region164: #{tpu_custom_call.1} parent=115 // pred_fallthru
          _
        // Predicated region
        $region165: #{tpu_custom_call.1} parent=115 // pred_check
          %p3054 = pneg %p688
        $region166: #{tpu_custom_call.1} parent=115 // pred_check_branch
          %3056 = sbr.rel (%p3054) target = $region168
        $region167: #{tpu_custom_call.1} parent=115 // pred_region
          _
        $region168: #{tpu_custom_call.1} parent=115 // pred_fallthru
          _
        // Predicated region
        $region169: #{tpu_custom_call.1} parent=115 // pred_check
          %p3057 = pneg %p714
        $region170: #{tpu_custom_call.1} parent=115 // pred_check_branch
          %3059 = sbr.rel (%p3057) target = $region172
        $region171: #{tpu_custom_call.1} parent=115 // pred_region
          %3061 = vsyncadd %s3036, 0
          %s3062 = smul.addr %s45, 2
          %s3063 = smul.addr %s3062, 8
          %s3064 = scalar_lea.hbm %s26, %s3063
          %s3065 = sshll.u32 %s3039, 4
          %s3066 = int_to_ptr.vmem [resolvable:$true] %s3065
          %s3067 = sshll.u32 %s3064, 4
          %s3068 = int_to_ptr.hbm [resolvable:$true] %s3067
          %3073 = dma.vmem_to_hbm [thread:$0]  %s3066, 256, %s3068, %s3036, 128, 128, 8
        $region172: #{tpu_custom_call.1} parent=115 // pred_fallthru
          _
        // Predicated region
        $region173: #{tpu_custom_call.1} parent=115 // pred_check
          %p3074 = pneg %p662
        $region174: #{tpu_custom_call.1} parent=115 // pred_check_branch
          %3076 = sbr.rel (%p3074) target = $region176
        $region175: #{tpu_custom_call.1} parent=115 // pred_region
          %3078 = dma.done [#allocation4], 256
        $region176: #{tpu_custom_call.1} parent=115 // pred_fallthru
          _
      $region116: #{tpu_custom_call.1} parent=5 // pred_fallthru
        _
      %p3079 = scmp.le.s32.totalorder 2, %s40
      // Predicated region
      $region177: #{tpu_custom_call.1} parent=5 // pred_check
        %p3080 = pneg %p3079
      $region178: #{tpu_custom_call.1} parent=5 // pred_check_branch
        %3082 = sbr.rel (%p3080) target = $region180
      $region179: #{tpu_custom_call.1} parent=5 // pred_region
        %s3083 = ssub.s32 %s40, 2
        // Predicated region
        $region181: #{tpu_custom_call.1} parent=179 // pred_check
          %p3084 = pneg %p694
        $region182: #{tpu_custom_call.1} parent=179 // pred_check_branch
          %3086 = sbr.rel (%p3084) target = $region184
        $region183: #{tpu_custom_call.1} parent=179 // pred_region
          %p3087 = scmp.lt.s32.totalorder %s46, 1
          %s3088 = scalar_select %p3087, %s46, 1
          %s3089 = smul.addr %s3088, 2
          %s3090 = smul.addr %s3089, 8
          %s3091 = scalar_lea.vmem %s25, %s3090
        $region184: #{tpu_custom_call.1} parent=179 // pred_fallthru
          _
        // Predicated region
        $region185: #{tpu_custom_call.1} parent=179 // pred_check
          %p3092 = pneg %p720
        $region186: #{tpu_custom_call.1} parent=179 // pred_check_branch
          %3094 = sbr.rel (%p3092) target = $region188
        $region187: #{tpu_custom_call.1} parent=179 // pred_region
          %s3095 = sand.u32 %s705, 1
          %s3096 = scalar_lea.sflag [#allocation18], %s3095
          %s3097 = sand.u32 %s705, 1
          %s3098 = smul.addr %s3097, 16
          %s3099 = scalar_lea.vmem [#allocation17], %s3098
          %3101 = dma.done %s3096, 256
        $region188: #{tpu_custom_call.1} parent=179 // pred_fallthru
          _
      $region180: #{tpu_custom_call.1} parent=5 // pred_fallthru
        _
    $region6: #{tpu_custom_call.1} parent=1 // loop_footer
      %s44 = sadd.s32 1, %s40
    $region7: #{tpu_custom_call.1} parent=1 // loop_footer_branch
      %39 = sbr.rel target = $region3
    $region8: #{tpu_custom_call.1} parent=1 // loop_exit
      _
    %3102 = vsyncpa [#allocation3], 1
    %s3103 = scalar_lea.sflag [#allocation3], 1
    %3104 = vsyncpa %s3103, 1
    %3105 = vsyncpa [#allocation6], 1
    %3106 = vsyncpa [#allocation9], 1
    %3107 = vsyncpa [#allocation4], 1
    %s3108 = scalar_lea.sflag [#allocation4], 1
    %3109 = vsyncpa %s3108, 1
    %3110 = vsyncpa [#allocation18], 1
    %s3111 = scalar_lea.sflag [#allocation18], 1
    %3112 = vsyncpa %s3111, 1

</llo_original>
